<compile_context>
chip_gen: v5e
topology: v5e:2x2
jax: 0.10.0
libtpu: 0.0.40
codegen_flags: <defaults>
</compile_context>

<pallas_src>
import functools
import math

import jax
import jax.numpy as jnp
from jax.experimental import pallas as pl
from jax.experimental.pallas import tpu as pltpu


# ----------------------------- tiling helpers ------------------------------

def _round_up(x, m):
    return (x + m - 1) // m * m


def _tile(dim, target):
    """Return (tile, padded_dim). Full dim if it fits in one tile (always a
    legal block shape), otherwise `target` (a multiple of 8/128) + padding."""
    if dim <= target:
        return dim, dim
    return target, _round_up(dim, target)


def _pad2d(x, rows, cols):
    r, c = x.shape
    if r == rows and c == cols:
        return x
    return jnp.pad(x, ((0, rows - r), (0, cols - c)))


# ----------------------------- tiled linear ---------------------------------

def _linear_kernel(x_ref, w_ref, b_ref, o_ref, acc_ref, *, act):
    k = pl.program_id(2)

    @pl.when(k == 0)
    def _():
        acc_ref[...] = jnp.zeros_like(acc_ref)

    acc_ref[...] += jnp.dot(x_ref[...], w_ref[...],
                            preferred_element_type=jnp.float32)

    @pl.when(k == pl.num_programs(2) - 1)
    def _():
        y = acc_ref[...] + b_ref[...]
        if act == "tanh":
            y = jnp.tanh(y)
        elif act == "relu":
            y = jnp.maximum(y, 0.0)
        o_ref[...] = y.astype(o_ref.dtype)


def linear_pallas(x, w_t, b, act=None, out_dtype=jnp.bfloat16,
                  tm=256, tk=512, tn=512):
    """y = act(x @ w_t + b).  x: [M,K], w_t: [K,N] (bf16), b: [N] (f32)."""
    M, K = x.shape
    N = w_t.shape[1]
    tm, Mp = _tile(M, tm)
    tk, Kp = _tile(K, tk)
    tn, Np = _tile(N, tn)
    xp = _pad2d(x.astype(jnp.bfloat16), Mp, Kp)
    wp = _pad2d(w_t.astype(jnp.bfloat16), Kp, Np)
    bp = _pad2d(b.reshape(1, N).astype(jnp.float32), 1, Np)
    out = pl.pallas_call(
        functools.partial(_linear_kernel, act=act),
        out_shape=jax.ShapeDtypeStruct((Mp, Np), out_dtype),
        grid=(Mp // tm, Np // tn, Kp // tk),
        in_specs=[
            pl.BlockSpec((tm, tk), lambda i, j, k: (i, k)),
            pl.BlockSpec((tk, tn), lambda i, j, k: (k, j)),
            pl.BlockSpec((1, tn), lambda i, j, k: (0, j)),
        ],
        out_specs=pl.BlockSpec((tm, tn), lambda i, j, k: (i, j)),
        scratch_shapes=[pltpu.VMEM((tm, tn), jnp.float32)],
        compiler_params=pltpu.CompilerParams(
            dimension_semantics=("parallel", "parallel", "arbitrary")),
    )(xp, wp, bp)
    return out[:M, :N]


# --------------- fused linear + residual + LayerNorm kernel -----------------

def _linear_res_ln_kernel(x_ref, w_ref, b_ref, res_ref, g_ref, beta_ref,
                          o_ref, acc_ref, *, eps):
    k = pl.program_id(1)

    @pl.when(k == 0)
    def _():
        acc_ref[...] = jnp.zeros_like(acc_ref)

    acc_ref[...] += jnp.dot(x_ref[...], w_ref[...],
                            preferred_element_type=jnp.float32)

    @pl.when(k == pl.num_programs(1) - 1)
    def _():
        y = acc_ref[...] + b_ref[...] + res_ref[...].astype(jnp.float32)
        mu = jnp.mean(y, axis=-1, keepdims=True)
        var = jnp.mean((y - mu) ** 2, axis=-1, keepdims=True)
        yn = (y - mu) * jax.lax.rsqrt(var + eps) * g_ref[...] + beta_ref[...]
        o_ref[...] = yn.astype(o_ref.dtype)


def linear_res_ln_pallas(x, w_t, b, residual, gamma, beta, eps=1e-5,
                         out_dtype=jnp.bfloat16, tm=256, tk=512):
    """LayerNorm(residual + x @ w_t + b); output feature dim kept whole."""
    M, K = x.shape
    N = w_t.shape[1]
    tm, Mp = _tile(M, tm)
    tk, Kp = _tile(K, tk)
    xp = _pad2d(x.astype(jnp.bfloat16), Mp, Kp)
    wp = _pad2d(w_t.astype(jnp.bfloat16), Kp, N)
    rp = _pad2d(residual.astype(jnp.bfloat16), Mp, N)
    out = pl.pallas_call(
        functools.partial(_linear_res_ln_kernel, eps=eps),
        out_shape=jax.ShapeDtypeStruct((Mp, N), out_dtype),
        grid=(Mp // tm, Kp // tk),
        in_specs=[
            pl.BlockSpec((tm, tk), lambda i, k: (i, k)),
            pl.BlockSpec((tk, N), lambda i, k: (k, 0)),
            pl.BlockSpec((1, N), lambda i, k: (0, 0)),
            pl.BlockSpec((tm, N), lambda i, k: (i, 0)),
            pl.BlockSpec((1, N), lambda i, k: (0, 0)),
            pl.BlockSpec((1, N), lambda i, k: (0, 0)),
        ],
        out_specs=pl.BlockSpec((tm, N), lambda i, k: (i, 0)),
        scratch_shapes=[pltpu.VMEM((tm, N), jnp.float32)],
        compiler_params=pltpu.CompilerParams(
            dimension_semantics=("parallel", "arbitrary")),
    )(xp, wp, b.reshape(1, N).astype(jnp.float32), rp,
      gamma.reshape(1, N).astype(jnp.float32),
      beta.reshape(1, N).astype(jnp.float32))
    return out[:M]


# ------------------------ multi-head attention kernel -----------------------

def _mha_kernel(q_ref, k_ref, v_ref, kpm_ref, o_ref, *, nheads, scale, causal):
    tq = q_ref.shape[1]
    tk_len = k_ref.shape[1]
    H = q_ref.shape[2]
    dh = H // nheads

    q = q_ref[0]                       # [tq, H]   bf16
    k = k_ref[0]                       # [Tk, H]   bf16
    v = v_ref[0]                       # [Tk, H]   bf16

    # Additive masks computed in-kernel (no [B*heads, Tq, Tk] slab in HBM).
    kpm = kpm_ref[0]                   # [1, Tk] f32, 1.0 = keep
    bias = jnp.where(kpm > 0.5, 0.0, -1e9)                       # [1, Tk]
    if causal:
        q0 = pl.program_id(1) * tq
        row = jax.lax.broadcasted_iota(jnp.int32, (tq, tk_len), 0) + q0
        col = jax.lax.broadcasted_iota(jnp.int32, (tq, tk_len), 1)
        bias = bias + jnp.where(row >= col, 0.0, -10000.0)       # [tq, Tk]

    for h in range(nheads):            # static unroll; head split stays in VMEM
        lo, hi = h * dh, (h + 1) * dh
        qh = q[:, lo:hi]
        kh = k[:, lo:hi]
        vh = v[:, lo:hi]
        s = jnp.dot(qh, kh.T, preferred_element_type=jnp.float32) * scale
        s = s + bias
        m = jnp.max(s, axis=-1, keepdims=True)
        p = jnp.exp(s - m)
        l = jnp.sum(p, axis=-1, keepdims=True)
        o = jnp.dot(p.astype(jnp.bfloat16), vh,
                    preferred_element_type=jnp.float32)          # [tq, dh]
        o = o * pl.reciprocal(l, approx=True)                    # EUP, not VALU
        o_ref[0, :, lo:hi] = o.astype(o_ref.dtype)


def mha_pallas(q, k, v, kpm, *, nheads, causal, tq_target=256):
    """q: [B,Tq,H], k/v: [B,Tk,H], kpm: [B,1,Tk] (1.0 = keep)."""
    B, Tq, H = q.shape
    Tk = k.shape[1]
    scale = 1.0 / math.sqrt(H // nheads)
    tq, Tqp = _tile(Tq, tq_target)
    if Tqp != Tq:
        q = jnp.pad(q, ((0, 0), (0, Tqp - Tq), (0, 0)))
    out = pl.pallas_call(
        functools.partial(_mha_kernel, nheads=nheads, scale=scale,
                          causal=causal),
        out_shape=jax.ShapeDtypeStruct((B, Tqp, H), jnp.bfloat16),
        grid=(B, Tqp // tq),
        in_specs=[
            pl.BlockSpec((1, tq, H), lambda b, i: (b, i, 0)),
            pl.BlockSpec((1, Tk, H), lambda b, i: (b, 0, 0)),
            pl.BlockSpec((1, Tk, H), lambda b, i: (b, 0, 0)),
            pl.BlockSpec((1, 1, Tk), lambda b, i: (b, 0, 0)),
        ],
        out_specs=pl.BlockSpec((1, tq, H), lambda b, i: (b, i, 0)),
        compiler_params=pltpu.CompilerParams(
            dimension_semantics=("parallel", "parallel")),
    )(q.astype(jnp.bfloat16), k.astype(jnp.bfloat16), v.astype(jnp.bfloat16),
      kpm.astype(jnp.float32))
    # TODO(synk): flash-style online-softmax KV tiling for very long Tk
    # (v7x 64 MiB VMEM) not implemented; full K/V per batch fits VMEM here.
    return out[:, :Tq]


# ------------- fused tied lm_head + cross-entropy (online logsumexp) --------

def _lmhead_xent_kernel(x_ref, w_ref, lbl_ref, nll_ref,
                        m_sc, l_sc, pick_sc, *, vocab, tv):
    j = pl.program_id(1)

    @pl.when(j == 0)
    def _():
        m_sc[...] = jnp.full_like(m_sc, -1e30)
        l_sc[...] = jnp.zeros_like(l_sc)
        pick_sc[...] = jnp.zeros_like(pick_sc)

    s = jnp.dot(x_ref[...], w_ref[...],
                preferred_element_type=jnp.float32)              # [tm, tv]
    col = jax.lax.broadcasted_iota(jnp.int32, s.shape, 1) + j * tv
    s = jnp.where(col < vocab, s, -1e30)          # mask vocab padding columns
    lbl = lbl_ref[...]                            # [tm, 1] int32
    pick_sc[...] += jnp.sum(jnp.where(col == lbl, s, 0.0),
                            axis=-1, keepdims=True)

    m_new = jnp.maximum(m_sc[...], jnp.max(s, axis=-1, keepdims=True))
    l_sc[...] = l_sc[...] * jnp.exp(m_sc[...] - m_new) + \
        jnp.sum(jnp.exp(s - m_new), axis=-1, keepdims=True)
    m_sc[...] = m_new

    @pl.when(j == pl.num_programs(1) - 1)
    def _():
        nll_ref[...] = (m_sc[...] + jnp.log(l_sc[...]) - pick_sc[...]
                        ).astype(nll_ref.dtype)


def lmhead_xent_pallas(hidden, emb_t, labels, tm=256, tv=512):
    """Per-row -log softmax(hidden @ emb_t)[label]; logits never hit HBM."""
    N, H = hidden.shape
    V = emb_t.shape[1]
    tm, Np = _tile(N, tm)
    tv, Vp = _tile(V, tv)
    xp = _pad2d(hidden.astype(jnp.bfloat16), Np, H)
    wp = _pad2d(emb_t.astype(jnp.bfloat16), H, Vp)
    lbl = jnp.pad(labels.reshape(N, 1).astype(jnp.int32),
                  ((0, Np - N), (0, 0)), constant_values=-1)
    nll = pl.pallas_call(
        functools.partial(_lmhead_xent_kernel, vocab=V, tv=tv),
        out_shape=jax.ShapeDtypeStruct((Np, 1), jnp.float32),
        grid=(Np // tm, Vp // tv),
        in_specs=[
            pl.BlockSpec((tm, H), lambda i, j: (i, 0)),
            pl.BlockSpec((H, tv), lambda i, j: (0, j)),
            pl.BlockSpec((tm, 1), lambda i, j: (i, 0)),
        ],
        out_specs=pl.BlockSpec((tm, 1), lambda i, j: (i, 0)),
        scratch_shapes=[pltpu.VMEM((tm, 1), jnp.float32)] * 3,
        compiler_params=pltpu.CompilerParams(
            dimension_semantics=("parallel", "arbitrary")),
    )(xp, wp, lbl)
    return nll[:N, 0]


# ----------------------------- model glue -----------------------------------

def attention_block(x_q, x_kv, p, kpm, ln_g, ln_b, *, nheads, causal,
                    self_attn):
    """fused-QKV projection -> MHA -> fused (out-proj + residual + LN)."""
    B, Tq, H = x_q.shape
    Tk = x_kv.shape[1]
    xq2 = x_q.reshape(B * Tq, H)
    if self_attn:
        qkv = linear_pallas(xq2, p["wqkv_t"], p["bqkv"])         # [B*Tq, 3H]
        q = qkv[:, :H].reshape(B, Tq, H)
        k = qkv[:, H:2 * H].reshape(B, Tq, H)
        v = qkv[:, 2 * H:].reshape(B, Tq, H)
    else:
        q = linear_pallas(xq2, p["wqkv_t"][:, :H],
                          p["bqkv"][:H]).reshape(B, Tq, H)
        kv = linear_pallas(x_kv.reshape(B * Tk, H),
                           p["wqkv_t"][:, H:], p["bqkv"][H:])    # [B*Tk, 2H]
        k = kv[:, :H].reshape(B, Tk, H)
        v = kv[:, H:].reshape(B, Tk, H)
    ctx = mha_pallas(q, k, v, kpm, nheads=nheads, causal=causal)  # [B,Tq,H]
    out = linear_res_ln_pallas(ctx.reshape(B * Tq, H), p["wo_t"], p["bo"],
                               residual=xq2, gamma=ln_g, beta=ln_b)
    return out.reshape(B, Tq, H)


def encoder_forward(params, src_ids, src_mask, nheads):
    """Stand-in roberta encoder: word embedding + one self-attention block."""
    # TODO(synk): embedding gather (token-id lookup) left to XLA.
    x = params["emb"][src_ids].astype(jnp.bfloat16)              # [B,S,H]
    kpm = (src_mask != 0).astype(jnp.float32)[:, None, :]        # [B,1,S]
    x = attention_block(x, x, params["enc_attn"], kpm,
                        params["enc_ln_g"], params["enc_ln_b"],
                        nheads=nheads, causal=False, self_attn=True)
    return x                                                     # [B,S,H]


def decoder_forward(params, tgt_emb, memory, mem_kpm, nheads):
    """Single post-norm TransformerDecoderLayer (stand-in decoder)."""
    B, T, H = tgt_emb.shape
    ones_kpm = jnp.ones((B, 1, T), jnp.float32)
    x = attention_block(tgt_emb, tgt_emb, params["dec_self"], ones_kpm,
                        params["dec_ln1_g"], params["dec_ln1_b"],
                        nheads=nheads, causal=True, self_attn=True)
    x = attention_block(x, memory, params["dec_cross"], mem_kpm,
                        params["dec_ln2_g"], params["dec_ln2_b"],
                        nheads=nheads, causal=False, self_attn=False)
    x2 = x.reshape(B * T, H)
    h = linear_pallas(x2, params["dec_ff1_t"], params["dec_ff1_b"],
                      act="relu")
    x = linear_res_ln_pallas(h, params["dec_ff2_t"], params["dec_ff2_b"],
                             residual=x2, gamma=params["dec_ln3_g"],
                             beta=params["dec_ln3_b"])
    return x.reshape(B, T, H)


def seq2seq_forward(params, source_ids, source_mask, target_ids, target_mask,
                    nheads):
    B, S = source_ids.shape
    T = target_ids.shape[1]
    H = params["emb"].shape[1]

    # encoder (reference permutes to time-major; we stay batch-major, same math)
    memory = encoder_forward(params, source_ids, source_mask, nheads)  # [B,S,H]

    # decoder: causal -10000*(1-tril) mask + memory key-padding (~source_mask)
    # are both generated inside the attention kernel.
    tgt_emb = params["emb"][target_ids].astype(jnp.bfloat16)           # [B,T,H]
    mem_kpm = (source_mask != 0).astype(jnp.float32)[:, None, :]       # [B,1,S]
    out = decoder_forward(params, tgt_emb, memory, mem_kpm, nheads)    # [B,T,H]

    # hidden_states = tanh(dense(out))
    hidden = linear_pallas(out.reshape(B * T, H), params["dense_t"],
                           params["dense_b"], act="tanh").reshape(B, T, H)

    # fused tied lm_head + shifted masked cross-entropy (ignore_index=-1)
    shift_hidden = hidden[:, :-1, :].reshape(B * (T - 1), H)
    shift_labels = target_ids[:, 1:].reshape(-1)
    active = (target_mask[:, 1:] != 0).reshape(-1).astype(jnp.float32)
    nll = lmhead_xent_pallas(shift_hidden, params["emb_t"], shift_labels)

    valid = active * (shift_labels != -1).astype(jnp.float32)
    loss_sum = jnp.sum(nll * valid)
    vcnt = jnp.sum(valid)
    acnt = jnp.sum(active)
    loss = loss_sum / jnp.maximum(vcnt, 1.0)   # guard all-masked -> 0, not NaN
    return loss, loss * acnt, acnt

# TODO(synk): beam-search inference branch (data-dependent Python loop with
# dynamic-length hypotheses and Beam bookkeeping) has no clean Pallas
# equivalent; only the training branch is implemented.


# ----------------------------- params ---------------------------------------

def init_params(key, vocab, hidden, ffn):
    ks = iter(jax.random.split(key, 32))

    def nrm(shape):
        return 0.1 * jax.random.normal(next(ks), shape, dtype=jnp.float32)

    def mha():
        return {
            # fused QKV projection: one [H, 3H] matmul instead of three [H, H]
            "wqkv_t": nrm((hidden, 3 * hidden)).astype(jnp.bfloat16),
            "bqkv": jnp.zeros((3 * hidden,), jnp.float32),
            "wo_t": nrm((hidden, hidden)).astype(jnp.bfloat16),
            "bo": jnp.zeros((hidden,), jnp.float32),
        }

    emb = nrm((vocab, hidden))
    p = {"emb": emb,
         # tied lm_head weight, pre-transposed once (not per forward call)
         "emb_t": emb.T.astype(jnp.bfloat16)}
    p["enc_attn"] = mha()
    p["enc_ln_g"] = jnp.ones((hidden,), jnp.float32)
    p["enc_ln_b"] = jnp.zeros((hidden,), jnp.float32)
    p["dec_self"] = mha()
    p["dec_cross"] = mha()
    for i in (1, 2, 3):
        p[f"dec_ln{i}_g"] = jnp.ones((hidden,), jnp.float32)
        p[f"dec_ln{i}_b"] = jnp.zeros((hidden,), jnp.float32)
    p["dec_ff1_t"] = nrm((hidden, ffn)).astype(jnp.bfloat16)
    p["dec_ff1_b"] = jnp.zeros((ffn,), jnp.float32)
    p["dec_ff2_t"] = nrm((ffn, hidden)).astype(jnp.bfloat16)
    p["dec_ff2_b"] = jnp.zeros((hidden,), jnp.float32)
    p["dense_t"] = nrm((hidden, hidden)).astype(jnp.bfloat16)
    p["dense_b"] = jnp.zeros((hidden,), jnp.float32)
    return p


# ----------------------------- main ------------------------------------------

if __name__ == "__main__":
    vocab, hidden, nheads, ffn = 128, 32, 4, 64
    B, S, T = 2, 8, 8

    key = jax.random.PRNGKey(0)
    pkey, k1, k2 = jax.random.split(key, 3)
    params = init_params(pkey, vocab, hidden, ffn)

    source_ids = jax.random.randint(k1, (B, S), 0, vocab, dtype=jnp.int32)
    target_ids = jax.random.randint(k2, (B, T), 0, vocab, dtype=jnp.int32)
    source_mask = jnp.ones((B, S), jnp.int32).at[1, -2:].set(0)
    target_mask = jnp.ones((B, T), jnp.int32).at[1, -3:].set(0)

    fwd = jax.jit(functools.partial(seq2seq_forward, nheads=nheads))
    loss, scaled_loss, n_active = fwd(params, source_ids, source_mask,
                                      target_ids, target_mask)
    jax.block_until_ready((loss, scaled_loss, n_active))
    print("KERNEL_OK")
</pallas_src>

<mosaic_0001>
module attributes {stable_mosaic.version = 11 : i64} {
  func.func @_linear_kernel(%arg0: i32, %arg1: i32, %arg2: i32, %arg3: memref<16x32xbf16, #tpu.memory_space<vmem>>, %arg4: memref<32x96xbf16, #tpu.memory_space<vmem>>, %arg5: memref<1x96xf32, #tpu.memory_space<vmem>>, %arg6: memref<16x96xbf16, #tpu.memory_space<vmem>>, %arg7: memref<16x96xf32, #tpu.memory_space<vmem>>) attributes {dimension_semantics = [#tpu.dimension_semantics<parallel>, #tpu.dimension_semantics<parallel>, #tpu.dimension_semantics<arbitrary>], iteration_bounds = array<i64: 1, 1, 1>, scalar_prefetch = 0 : i64, scratch_operands = 1 : i64, tpu.core_type = #tpu.core_type<tc>, window_params = [{transform_indices = @transform_0, window_bounds = array<i64: 16, 32>}, {transform_indices = @transform_1, window_bounds = array<i64: 32, 96>}, {transform_indices = @transform_2, window_bounds = array<i64: 1, 96>}, {transform_indices = @transform_3, window_bounds = array<i64: 16, 96>}]} {
    %c0_i32 = arith.constant 0 : i32
    %0 = arith.cmpi eq, %arg2, %c0_i32 : i32
    %1 = arith.extui %0 : i1 to i32
    %c0_i32_0 = arith.constant 0 : i32
    %2 = arith.cmpi ne, %1, %c0_i32_0 : i32
    scf.if %2 {
      %cst_10 = arith.constant 0.000000e+00 : f32
      %12 = vector.broadcast %cst_10 : f32 to vector<16x96xf32>
      %c0_11 = arith.constant 0 : index
      %c0_12 = arith.constant 0 : index
      %13 = vector.load %arg7[%c0_11, %c0_12] : memref<16x96xf32, #tpu.memory_space<vmem>>, vector<16x96xf32>
      tpu.vector_store %arg7[%c0_11, %c0_12], %12 {strides = array<i32>} : memref<16x96xf32, #tpu.memory_space<vmem>>, vector<16x96xf32>,
    } else {
    }
    %c0 = arith.constant 0 : index
    %c0_1 = arith.constant 0 : index
    %3 = vector.load %arg7[%c0, %c0_1] : memref<16x96xf32, #tpu.memory_space<vmem>>, vector<16x96xf32>
    %c0_2 = arith.constant 0 : index
    %c0_3 = arith.constant 0 : index
    %4 = vector.load %arg3[%c0_2, %c0_3] : memref<16x32xbf16, #tpu.memory_space<vmem>>, vector<16x32xbf16>
    %c0_4 = arith.constant 0 : index
    %c0_5 = arith.constant 0 : index
    %5 = vector.load %arg4[%c0_4, %c0_5] : memref<32x96xbf16, #tpu.memory_space<vmem>>, vector<32x96xbf16>
    %cst = arith.constant dense<0.000000e+00> : vector<16x96xf32>
    %6 = tpu.matmul %4, %5, %cst {dimension_numbers = #tpu.dot_dimension_numbers<[1], [0], [0], [1], [0, 0, 1, 1], [], []>} : vector<16x32xbf16>, vector<32x96xbf16>, vector<16x96xf32> -> vector<16x96xf32>
    %7 = arith.addf %3, %6 : vector<16x96xf32>
    %c0_6 = arith.constant 0 : index
    %c0_7 = arith.constant 0 : index
    %8 = vector.load %arg7[%c0_6, %c0_7] : memref<16x96xf32, #tpu.memory_space<vmem>>, vector<16x96xf32>
    tpu.vector_store %arg7[%c0_6, %c0_7], %7 {strides = array<i32>} : memref<16x96xf32, #tpu.memory_space<vmem>>, vector<16x96xf32>,
    %c0_i32_8 = arith.constant 0 : i32
    %9 = arith.cmpi eq, %arg2, %c0_i32_8 : i32
    %10 = arith.extui %9 : i1 to i32
    %c0_i32_9 = arith.constant 0 : i32
    %11 = arith.cmpi ne, %10, %c0_i32_9 : i32
    scf.if %11 {
      %c0_10 = arith.constant 0 : index
      %c0_11 = arith.constant 0 : index
      %12 = vector.load %arg7[%c0_10, %c0_11] : memref<16x96xf32, #tpu.memory_space<vmem>>, vector<16x96xf32>
      %c0_12 = arith.constant 0 : index
      %c0_13 = arith.constant 0 : index
      %13 = vector.load %arg5[%c0_12, %c0_13] : memref<1x96xf32, #tpu.memory_space<vmem>>, vector<1x96xf32>
      %14 = vector.broadcast %13 : vector<1x96xf32> to vector<16x96xf32>
      %15 = arith.addf %12, %14 : vector<16x96xf32>
      %16 = arith.truncf %15 : vector<16x96xf32> to vector<16x96xbf16>
      %c0_14 = arith.constant 0 : index
      %c0_15 = arith.constant 0 : index
      %17 = vector.load %arg6[%c0_14, %c0_15] : memref<16x96xbf16, #tpu.memory_space<vmem>>, vector<16x96xbf16>
      tpu.vector_store %arg6[%c0_14, %c0_15], %16 {strides = array<i32>} : memref<16x96xbf16, #tpu.memory_space<vmem>>, vector<16x96xbf16>,
    } else {
    }
    return
  }
  func.func @transform_0(%arg0: i32, %arg1: i32, %arg2: i32) -> (i32, i32) {
    %c0_i32 = arith.constant 0 : i32
    return %arg0, %arg2 : i32, i32
  }
  func.func @transform_1(%arg0: i32, %arg1: i32, %arg2: i32) -> (i32, i32) {
    %c0_i32 = arith.constant 0 : i32
    return %arg2, %arg1 : i32, i32
  }
  func.func @transform_2(%arg0: i32, %arg1: i32, %arg2: i32) -> (i32, i32) {
    %c0_i32 = arith.constant 0 : i32
    %c0_i32_0 = arith.constant 0 : i32
    return %c0_i32, %arg1 : i32, i32
  }
  func.func @transform_3(%arg0: i32, %arg1: i32, %arg2: i32) -> (i32, i32) {
    %c0_i32 = arith.constant 0 : i32
    return %arg0, %arg1 : i32, i32
  }
}

module attributes {stable_mosaic.version = 11 : i64} {
  func.func @_linear_res_ln_kernel(%arg0: i32, %arg1: i32, %arg2: memref<16x32xbf16, #tpu.memory_space<vmem>>, %arg3: memref<32x32xbf16, #tpu.memory_space<vmem>>, %arg4: memref<1x32xf32, #tpu.memory_space<vmem>>, %arg5: memref<16x32xbf16, #tpu.memory_space<vmem>>, %arg6: memref<1x32xf32, #tpu.memory_space<vmem>>, %arg7: memref<1x32xf32, #tpu.memory_space<vmem>>, %arg8: memref<16x32xbf16, #tpu.memory_space<vmem>>, %arg9: memref<16x32xf32, #tpu.memory_space<vmem>>) attributes {dimension_semantics = [#tpu.dimension_semantics<parallel>, #tpu.dimension_semantics<arbitrary>], iteration_bounds = array<i64: 1, 1>, scalar_prefetch = 0 : i64, scratch_operands = 1 : i64, tpu.core_type = #tpu.core_type<tc>, window_params = [{transform_indices = @transform_0, window_bounds = array<i64: 16, 32>}, {transform_indices = @transform_1, window_bounds = array<i64: 32, 32>}, {pipeline_mode = #tpu.pipeline_mode<synchronous>, transform_indices = @transform_2, window_bounds = array<i64: 1, 32>}, {transform_indices = @transform_3, window_bounds = array<i64: 16, 32>}, {pipeline_mode = #tpu.pipeline_mode<synchronous>, transform_indices = @transform_4, window_bounds = array<i64: 1, 32>}, {pipeline_mode = #tpu.pipeline_mode<synchronous>, transform_indices = @transform_5, window_bounds = array<i64: 1, 32>}, {transform_indices = @transform_6, window_bounds = array<i64: 16, 32>}]} {
    %c0_i32 = arith.constant 0 : i32
    %0 = arith.cmpi eq, %arg1, %c0_i32 : i32
    %1 = arith.extui %0 : i1 to i32
    %c0_i32_0 = arith.constant 0 : i32
    %2 = arith.cmpi ne, %1, %c0_i32_0 : i32
    scf.if %2 {
      %cst_10 = arith.constant 0.000000e+00 : f32
      %12 = vector.broadcast %cst_10 : f32 to vector<16x32xf32>
      %c0_11 = arith.constant 0 : index
      %c0_12 = arith.constant 0 : index
      %13 = vector.load %arg9[%c0_11, %c0_12] : memref<16x32xf32, #tpu.memory_space<vmem>>, vector<16x32xf32>
      tpu.vector_store %arg9[%c0_11, %c0_12], %12 {strides = array<i32>} : memref<16x32xf32, #tpu.memory_space<vmem>>, vector<16x32xf32>,
    } else {
    }
    %c0 = arith.constant 0 : index
    %c0_1 = arith.constant 0 : index
    %3 = vector.load %arg9[%c0, %c0_1] : memref<16x32xf32, #tpu.memory_space<vmem>>, vector<16x32xf32>
    %c0_2 = arith.constant 0 : index
    %c0_3 = arith.constant 0 : index
    %4 = vector.load %arg2[%c0_2, %c0_3] : memref<16x32xbf16, #tpu.memory_space<vmem>>, vector<16x32xbf16>
    %c0_4 = arith.constant 0 : index
    %c0_5 = arith.constant 0 : index
    %5 = vector.load %arg3[%c0_4, %c0_5] : memref<32x32xbf16, #tpu.memory_space<vmem>>, vector<32x32xbf16>
    %cst = arith.constant dense<0.000000e+00> : vector<16x32xf32>
    %6 = tpu.matmul %4, %5, %cst {dimension_numbers = #tpu.dot_dimension_numbers<[1], [0], [0], [1], [0, 0, 1, 1], [], []>} : vector<16x32xbf16>, vector<32x32xbf16>, vector<16x32xf32> -> vector<16x32xf32>
    %7 = arith.addf %3, %6 : vector<16x32xf32>
    %c0_6 = arith.constant 0 : index
    %c0_7 = arith.constant 0 : index
    %8 = vector.load %arg9[%c0_6, %c0_7] : memref<16x32xf32, #tpu.memory_space<vmem>>, vector<16x32xf32>
    tpu.vector_store %arg9[%c0_6, %c0_7], %7 {strides = array<i32>} : memref<16x32xf32, #tpu.memory_space<vmem>>, vector<16x32xf32>,
    %c0_i32_8 = arith.constant 0 : i32
    %9 = arith.cmpi eq, %arg1, %c0_i32_8 : i32
    %10 = arith.extui %9 : i1 to i32
    %c0_i32_9 = arith.constant 0 : i32
    %11 = arith.cmpi ne, %10, %c0_i32_9 : i32
    scf.if %11 {
      %c0_10 = arith.constant 0 : index
      %c0_11 = arith.constant 0 : index
      %12 = vector.load %arg9[%c0_10, %c0_11] : memref<16x32xf32, #tpu.memory_space<vmem>>, vector<16x32xf32>
      %c0_12 = arith.constant 0 : index
      %c0_13 = arith.constant 0 : index
      %13 = vector.load %arg4[%c0_12, %c0_13] : memref<1x32xf32, #tpu.memory_space<vmem>>, vector<1x32xf32>
      %14 = vector.broadcast %13 : vector<1x32xf32> to vector<16x32xf32>
      %15 = arith.addf %12, %14 : vector<16x32xf32>
      %c0_14 = arith.constant 0 : index
      %c0_15 = arith.constant 0 : index
      %16 = vector.load %arg5[%c0_14, %c0_15] : memref<16x32xbf16, #tpu.memory_space<vmem>>, vector<16x32xbf16>
      %17 = arith.extf %16 : vector<16x32xbf16> to vector<16x32xf32>
      %18 = arith.addf %15, %17 : vector<16x32xf32>
      %cst_16 = arith.constant dense<0.000000e+00> : vector<16xf32>
      %19 = vector.multi_reduction <add>, %18, %cst_16 [1] : vector<16x32xf32> to vector<16xf32>
      %20 = vector.shape_cast %19 : vector<16xf32> to vector<16x1xf32>
      %cst_17 = arith.constant 3.200000e+01 : f32
      %21 = vector.broadcast %cst_17 : f32 to vector<16x1xf32>
      %22 = arith.divf %20, %21 : vector<16x1xf32>
      %23 = vector.broadcast %22 : vector<16x1xf32> to vector<16x32xf32>
      %24 = arith.subf %18, %23 : vector<16x32xf32>
      %25 = arith.mulf %24, %24 : vector<16x32xf32>
      %cst_18 = arith.constant dense<0.000000e+00> : vector<16xf32>
      %26 = vector.multi_reduction <add>, %25, %cst_18 [1] : vector<16x32xf32> to vector<16xf32>
      %27 = vector.shape_cast %26 : vector<16xf32> to vector<16x1xf32>
      %cst_19 = arith.constant 3.200000e+01 : f32
      %28 = vector.broadcast %cst_19 : f32 to vector<16x1xf32>
      %29 = arith.divf %27, %28 : vector<16x1xf32>
      %30 = vector.broadcast %22 : vector<16x1xf32> to vector<16x32xf32>
      %31 = arith.subf %18, %30 : vector<16x32xf32>
      %cst_20 = arith.constant 9.99999974E-6 : f32
      %32 = vector.broadcast %cst_20 : f32 to vector<16x1xf32>
      %33 = arith.addf %29, %32 : vector<16x1xf32>
      %34 = math.rsqrt %33 : vector<16x1xf32>
      %35 = vector.broadcast %34 : vector<16x1xf32> to vector<16x32xf32>
      %36 = arith.mulf %31, %35 : vector<16x32xf32>
      %c0_21 = arith.constant 0 : index
      %c0_22 = arith.constant 0 : index
      %37 = vector.load %arg6[%c0_21, %c0_22] : memref<1x32xf32, #tpu.memory_space<vmem>>, vector<1x32xf32>
      %38 = vector.broadcast %37 : vector<1x32xf32> to vector<16x32xf32>
      %39 = arith.mulf %36, %38 : vector<16x32xf32>
      %c0_23 = arith.constant 0 : index
      %c0_24 = arith.constant 0 : index
      %40 = vector.load %arg7[%c0_23, %c0_24] : memref<1x32xf32, #tpu.memory_space<vmem>>, vector<1x32xf32>
      %41 = vector.broadcast %40 : vector<1x32xf32> to vector<16x32xf32>
      %42 = arith.addf %39, %41 : vector<16x32xf32>
      %43 = arith.truncf %42 : vector<16x32xf32> to vector<16x32xbf16>
      %c0_25 = arith.constant 0 : index
      %c0_26 = arith.constant 0 : index
      %44 = vector.load %arg8[%c0_25, %c0_26] : memref<16x32xbf16, #tpu.memory_space<vmem>>, vector<16x32xbf16>
      tpu.vector_store %arg8[%c0_25, %c0_26], %43 {strides = array<i32>} : memref<16x32xbf16, #tpu.memory_space<vmem>>, vector<16x32xbf16>,
    } else {
    }
    return
  }
  func.func @transform_0(%arg0: i32, %arg1: i32) -> (i32, i32) {
    %c0_i32 = arith.constant 0 : i32
    return %arg0, %arg1 : i32, i32
  }
  func.func @transform_1(%arg0: i32, %arg1: i32) -> (i32, i32) {
    %c0_i32 = arith.constant 0 : i32
    %c0_i32_0 = arith.constant 0 : i32
    return %arg1, %c0_i32 : i32, i32
  }
  func.func @transform_2(%arg0: i32, %arg1: i32) -> (i32, i32) {
    %c0_i32 = arith.constant 0 : i32
    %c0_i32_0 = arith.constant 0 : i32
    %c0_i32_1 = arith.constant 0 : i32
    return %c0_i32, %c0_i32_0 : i32, i32
  }
  func.func @transform_3(%arg0: i32, %arg1: i32) -> (i32, i32) {
    %c0_i32 = arith.constant 0 : i32
    %c0_i32_0 = arith.constant 0 : i32
    return %arg0, %c0_i32 : i32, i32
  }
  func.func @transform_4(%arg0: i32, %arg1: i32) -> (i32, i32) {
    %c0_i32 = arith.constant 0 : i32
    %c0_i32_0 = arith.constant 0 : i32
    %c0_i32_1 = arith.constant 0 : i32
    return %c0_i32, %c0_i32_0 : i32, i32
  }
  func.func @transform_5(%arg0: i32, %arg1: i32) -> (i32, i32) {
    %c0_i32 = arith.constant 0 : i32
    %c0_i32_0 = arith.constant 0 : i32
    %c0_i32_1 = arith.constant 0 : i32
    return %c0_i32, %c0_i32_0 : i32, i32
  }
  func.func @transform_6(%arg0: i32, %arg1: i32) -> (i32, i32) {
    %c0_i32 = arith.constant 0 : i32
    %c0_i32_0 = arith.constant 0 : i32
    return %arg0, %c0_i32 : i32, i32
  }
}

module attributes {stable_mosaic.version = 11 : i64} {
  func.func @_mha_kernel(%arg0: i32, %arg1: i32, %arg2: memref<1x8x32xbf16, #tpu.memory_space<vmem>>, %arg3: memref<1x8x32xbf16, #tpu.memory_space<vmem>>, %arg4: memref<1x8x32xbf16, #tpu.memory_space<vmem>>, %arg5: memref<1x1x8xf32, #tpu.memory_space<vmem>>, %arg6: memref<1x8x32xbf16, #tpu.memory_space<vmem>>) attributes {dimension_semantics = [#tpu.dimension_semantics<parallel>, #tpu.dimension_semantics<parallel>], iteration_bounds = array<i64: 2, 1>, scalar_prefetch = 0 : i64, scratch_operands = 0 : i64, tpu.core_type = #tpu.core_type<tc>, window_params = [{transform_indices = @transform_0, window_bounds = array<i64: 1, 8, 32>}, {transform_indices = @transform_1, window_bounds = array<i64: 1, 8, 32>}, {transform_indices = @transform_2, window_bounds = array<i64: 1, 8, 32>}, {transform_indices = @transform_3, window_bounds = array<i64: 1, 1, 8>}, {transform_indices = @transform_4, window_bounds = array<i64: 1, 8, 32>}]} {
    %c0 = arith.constant 0 : index
    %c0_0 = arith.constant 0 : index
    %c0_1 = arith.constant 0 : index
    %0 = vector.load %arg2[%c0, %c0_0, %c0_1] : memref<1x8x32xbf16, #tpu.memory_space<vmem>>, vector<1x8x32xbf16>
    %1 = vector.shape_cast %0 : vector<1x8x32xbf16> to vector<8x32xbf16>
    %c0_2 = arith.constant 0 : index
    %c0_3 = arith.constant 0 : index
    %c0_4 = arith.constant 0 : index
    %2 = vector.load %arg3[%c0_2, %c0_3, %c0_4] : memref<1x8x32xbf16, #tpu.memory_space<vmem>>, vector<1x8x32xbf16>
    %3 = vector.shape_cast %2 : vector<1x8x32xbf16> to vector<8x32xbf16>
    %c0_5 = arith.constant 0 : index
    %c0_6 = arith.constant 0 : index
    %c0_7 = arith.constant 0 : index
    %4 = vector.load %arg4[%c0_5, %c0_6, %c0_7] : memref<1x8x32xbf16, #tpu.memory_space<vmem>>, vector<1x8x32xbf16>
    %5 = vector.shape_cast %4 : vector<1x8x32xbf16> to vector<8x32xbf16>
    %c0_8 = arith.constant 0 : index
    %c0_9 = arith.constant 0 : index
    %c0_10 = arith.constant 0 : index
    %6 = vector.load %arg5[%c0_8, %c0_9, %c0_10] : memref<1x1x8xf32, #tpu.memory_space<vmem>>, vector<1x1x8xf32>
    %7 = vector.shape_cast %6 : vector<1x1x8xf32> to vector<1x8xf32>
    %cst = arith.constant 5.000000e-01 : f32
    %8 = vector.broadcast %cst : f32 to vector<1x8xf32>
    %9 = arith.cmpf ogt, %7, %8 : vector<1x8xf32>
    %cst_11 = arith.constant 0.000000e+00 : f32
    %cst_12 = arith.constant -1.000000e+09 : f32
    %10 = vector.broadcast %cst_11 : f32 to vector<1x8xf32>
    %11 = vector.broadcast %cst_12 : f32 to vector<1x8xf32>
    %12 = arith.select %9, %10, %11 : vector<1x8xi1>, vector<1x8xf32>
    %13 = vector.extract_strided_slice %1 {offsets = [0, 0], sizes = [8, 8], strides = [1, 1]} : vector<8x32xbf16> to vector<8x8xbf16>
    %14 = vector.extract_strided_slice %3 {offsets = [0, 0], sizes = [8, 8], strides = [1, 1]} : vector<8x32xbf16> to vector<8x8xbf16>
    %15 = vector.extract_strided_slice %5 {offsets = [0, 0], sizes = [8, 8], strides = [1, 1]} : vector<8x32xbf16> to vector<8x8xbf16>
    %16 = tpu.transpose %14, [1, 0] : vector<8x8xbf16> -> vector<8x8xbf16>
    %cst_13 = arith.constant dense<0.000000e+00> : vector<8x8xf32>
    %17 = tpu.matmul %13, %16, %cst_13 {dimension_numbers = #tpu.dot_dimension_numbers<[1], [0], [0], [1], [0, 0, 1, 1], [], []>} : vector<8x8xbf16>, vector<8x8xbf16>, vector<8x8xf32> -> vector<8x8xf32>
    %cst_14 = arith.constant 0.353553385 : f32
    %18 = vector.broadcast %cst_14 : f32 to vector<8x8xf32>
    %19 = arith.mulf %17, %18 : vector<8x8xf32>
    %20 = vector.broadcast %12 : vector<1x8xf32> to vector<8x8xf32>
    %21 = arith.addf %19, %20 : vector<8x8xf32>
    %cst_15 = arith.constant dense<0xFF800000> : vector<8xf32>
    %22 = vector.multi_reduction <maximumf>, %21, %cst_15 [1] : vector<8x8xf32> to vector<8xf32>
    %23 = vector.shape_cast %22 : vector<8xf32> to vector<8x1xf32>
    %24 = vector.broadcast %23 : vector<8x1xf32> to vector<8x8xf32>
    %25 = arith.subf %21, %24 : vector<8x8xf32>
    %26 = math.exp %25 : vector<8x8xf32>
    %cst_16 = arith.constant dense<0.000000e+00> : vector<8xf32>
    %27 = vector.multi_reduction <add>, %26, %cst_16 [1] : vector<8x8xf32> to vector<8xf32>
    %28 = vector.shape_cast %27 : vector<8xf32> to vector<8x1xf32>
    %29 = arith.truncf %26 : vector<8x8xf32> to vector<8x8xbf16>
    %cst_17 = arith.constant dense<0.000000e+00> : vector<8x8xf32>
    %30 = tpu.matmul %29, %15, %cst_17 {dimension_numbers = #tpu.dot_dimension_numbers<[1], [0], [0], [1], [0, 0, 1, 1], [], []>} : vector<8x8xbf16>, vector<8x8xbf16>, vector<8x8xf32> -> vector<8x8xf32>
    %31 = tpu.reciprocal %28 {approx = true} : vector<8x1xf32> -> vector<8x1xf32>
    %32 = vector.broadcast %31 : vector<8x1xf32> to vector<8x8xf32>
    %33 = arith.mulf %30, %32 : vector<8x8xf32>
    %34 = arith.truncf %33 : vector<8x8xf32> to vector<8x8xbf16>
    %c0_18 = arith.constant 0 : index
    %c0_19 = arith.constant 0 : index
    %c0_20 = arith.constant 0 : index
    %35 = vector.load %arg6[%c0_18, %c0_19, %c0_20] : memref<1x8x32xbf16, #tpu.memory_space<vmem>>, vector<1x8x8xbf16>
    %36 = vector.shape_cast %35 : vector<1x8x8xbf16> to vector<8x8xbf16>
    %37 = vector.shape_cast %34 : vector<8x8xbf16> to vector<1x8x8xbf16>
    tpu.vector_store %arg6[%c0_18, %c0_19, %c0_20], %37 {strides = array<i32>} : memref<1x8x32xbf16, #tpu.memory_space<vmem>>, vector<1x8x8xbf16>,
    %38 = vector.extract_strided_slice %1 {offsets = [0, 8], sizes = [8, 8], strides = [1, 1]} : vector<8x32xbf16> to vector<8x8xbf16>
    %39 = vector.extract_strided_slice %3 {offsets = [0, 8], sizes = [8, 8], strides = [1, 1]} : vector<8x32xbf16> to vector<8x8xbf16>
    %40 = vector.extract_strided_slice %5 {offsets = [0, 8], sizes = [8, 8], strides = [1, 1]} : vector<8x32xbf16> to vector<8x8xbf16>
    %41 = tpu.transpose %39, [1, 0] : vector<8x8xbf16> -> vector<8x8xbf16>
    %cst_21 = arith.constant dense<0.000000e+00> : vector<8x8xf32>
    %42 = tpu.matmul %38, %41, %cst_21 {dimension_numbers = #tpu.dot_dimension_numbers<[1], [0], [0], [1], [0, 0, 1, 1], [], []>} : vector<8x8xbf16>, vector<8x8xbf16>, vector<8x8xf32> -> vector<8x8xf32>
    %cst_22 = arith.constant 0.353553385 : f32
    %43 = vector.broadcast %cst_22 : f32 to vector<8x8xf32>
    %44 = arith.mulf %42, %43 : vector<8x8xf32>
    %45 = vector.broadcast %12 : vector<1x8xf32> to vector<8x8xf32>
    %46 = arith.addf %44, %45 : vector<8x8xf32>
    %cst_23 = arith.constant dense<0xFF800000> : vector<8xf32>
    %47 = vector.multi_reduction <maximumf>, %46, %cst_23 [1] : vector<8x8xf32> to vector<8xf32>
    %48 = vector.shape_cast %47 : vector<8xf32> to vector<8x1xf32>
    %49 = vector.broadcast %48 : vector<8x1xf32> to vector<8x8xf32>
    %50 = arith.subf %46, %49 : vector<8x8xf32>
    %51 = math.exp %50 : vector<8x8xf32>
    %cst_24 = arith.constant dense<0.000000e+00> : vector<8xf32>
    %52 = vector.multi_reduction <add>, %51, %cst_24 [1] : vector<8x8xf32> to vector<8xf32>
    %53 = vector.shape_cast %52 : vector<8xf32> to vector<8x1xf32>
    %54 = arith.truncf %51 : vector<8x8xf32> to vector<8x8xbf16>
    %cst_25 = arith.constant dense<0.000000e+00> : vector<8x8xf32>
    %55 = tpu.matmul %54, %40, %cst_25 {dimension_numbers = #tpu.dot_dimension_numbers<[1], [0], [0], [1], [0, 0, 1, 1], [], []>} : vector<8x8xbf16>, vector<8x8xbf16>, vector<8x8xf32> -> vector<8x8xf32>
    %56 = tpu.reciprocal %53 {approx = true} : vector<8x1xf32> -> vector<8x1xf32>
    %57 = vector.broadcast %56 : vector<8x1xf32> to vector<8x8xf32>
    %58 = arith.mulf %55, %57 : vector<8x8xf32>
    %59 = arith.truncf %58 : vector<8x8xf32> to vector<8x8xbf16>
    %c0_26 = arith.constant 0 : index
    %c0_27 = arith.constant 0 : index
    %c8 = arith.constant 8 : index
    %60 = vector.load %arg6[%c0_26, %c0_27, %c8] : memref<1x8x32xbf16, #tpu.memory_space<vmem>>, vector<1x8x8xbf16>
    %61 = vector.shape_cast %60 : vector<1x8x8xbf16> to vector<8x8xbf16>
    %62 = vector.shape_cast %59 : vector<8x8xbf16> to vector<1x8x8xbf16>
    tpu.vector_store %arg6[%c0_26, %c0_27, %c8], %62 {strides = array<i32>} : memref<1x8x32xbf16, #tpu.memory_space<vmem>>, vector<1x8x8xbf16>,
    %63 = vector.extract_strided_slice %1 {offsets = [0, 16], sizes = [8, 8], strides = [1, 1]} : vector<8x32xbf16> to vector<8x8xbf16>
    %64 = vector.extract_strided_slice %3 {offsets = [0, 16], sizes = [8, 8], strides = [1, 1]} : vector<8x32xbf16> to vector<8x8xbf16>
    %65 = vector.extract_strided_slice %5 {offsets = [0, 16], sizes = [8, 8], strides = [1, 1]} : vector<8x32xbf16> to vector<8x8xbf16>
    %66 = tpu.transpose %64, [1, 0] : vector<8x8xbf16> -> vector<8x8xbf16>
    %cst_28 = arith.constant dense<0.000000e+00> : vector<8x8xf32>
    %67 = tpu.matmul %63, %66, %cst_28 {dimension_numbers = #tpu.dot_dimension_numbers<[1], [0], [0], [1], [0, 0, 1, 1], [], []>} : vector<8x8xbf16>, vector<8x8xbf16>, vector<8x8xf32> -> vector<8x8xf32>
    %cst_29 = arith.constant 0.353553385 : f32
    %68 = vector.broadcast %cst_29 : f32 to vector<8x8xf32>
    %69 = arith.mulf %67, %68 : vector<8x8xf32>
    %70 = vector.broadcast %12 : vector<1x8xf32> to vector<8x8xf32>
    %71 = arith.addf %69, %70 : vector<8x8xf32>
    %cst_30 = arith.constant dense<0xFF800000> : vector<8xf32>
    %72 = vector.multi_reduction <maximumf>, %71, %cst_30 [1] : vector<8x8xf32> to vector<8xf32>
    %73 = vector.shape_cast %72 : vector<8xf32> to vector<8x1xf32>
    %74 = vector.broadcast %73 : vector<8x1xf32> to vector<8x8xf32>
    %75 = arith.subf %71, %74 : vector<8x8xf32>
    %76 = math.exp %75 : vector<8x8xf32>
    %cst_31 = arith.constant dense<0.000000e+00> : vector<8xf32>
    %77 = vector.multi_reduction <add>, %76, %cst_31 [1] : vector<8x8xf32> to vector<8xf32>
    %78 = vector.shape_cast %77 : vector<8xf32> to vector<8x1xf32>
    %79 = arith.truncf %76 : vector<8x8xf32> to vector<8x8xbf16>
    %cst_32 = arith.constant dense<0.000000e+00> : vector<8x8xf32>
    %80 = tpu.matmul %79, %65, %cst_32 {dimension_numbers = #tpu.dot_dimension_numbers<[1], [0], [0], [1], [0, 0, 1, 1], [], []>} : vector<8x8xbf16>, vector<8x8xbf16>, vector<8x8xf32> -> vector<8x8xf32>
    %81 = tpu.reciprocal %78 {approx = true} : vector<8x1xf32> -> vector<8x1xf32>
    %82 = vector.broadcast %81 : vector<8x1xf32> to vector<8x8xf32>
    %83 = arith.mulf %80, %82 : vector<8x8xf32>
    %84 = arith.truncf %83 : vector<8x8xf32> to vector<8x8xbf16>
    %c0_33 = arith.constant 0 : index
    %c0_34 = arith.constant 0 : index
    %c16 = arith.constant 16 : index
    %85 = vector.load %arg6[%c0_33, %c0_34, %c16] : memref<1x8x32xbf16, #tpu.memory_space<vmem>>, vector<1x8x8xbf16>
    %86 = vector.shape_cast %85 : vector<1x8x8xbf16> to vector<8x8xbf16>
    %87 = vector.shape_cast %84 : vector<8x8xbf16> to vector<1x8x8xbf16>
    tpu.vector_store %arg6[%c0_33, %c0_34, %c16], %87 {strides = array<i32>} : memref<1x8x32xbf16, #tpu.memory_space<vmem>>, vector<1x8x8xbf16>,
    %88 = vector.extract_strided_slice %1 {offsets = [0, 24], sizes = [8, 8], strides = [1, 1]} : vector<8x32xbf16> to vector<8x8xbf16>
    %89 = vector.extract_strided_slice %3 {offsets = [0, 24], sizes = [8, 8], strides = [1, 1]} : vector<8x32xbf16> to vector<8x8xbf16>
    %90 = vector.extract_strided_slice %5 {offsets = [0, 24], sizes = [8, 8], strides = [1, 1]} : vector<8x32xbf16> to vector<8x8xbf16>
    %91 = tpu.transpose %89, [1, 0] : vector<8x8xbf16> -> vector<8x8xbf16>
    %cst_35 = arith.constant dense<0.000000e+00> : vector<8x8xf32>
    %92 = tpu.matmul %88, %91, %cst_35 {dimension_numbers = #tpu.dot_dimension_numbers<[1], [0], [0], [1], [0, 0, 1, 1], [], []>} : vector<8x8xbf16>, vector<8x8xbf16>, vector<8x8xf32> -> vector<8x8xf32>
    %cst_36 = arith.constant 0.353553385 : f32
    %93 = vector.broadcast %cst_36 : f32 to vector<8x8xf32>
    %94 = arith.mulf %92, %93 : vector<8x8xf32>
    %95 = vector.broadcast %12 : vector<1x8xf32> to vector<8x8xf32>
    %96 = arith.addf %94, %95 : vector<8x8xf32>
    %cst_37 = arith.constant dense<0xFF800000> : vector<8xf32>
    %97 = vector.multi_reduction <maximumf>, %96, %cst_37 [1] : vector<8x8xf32> to vector<8xf32>
    %98 = vector.shape_cast %97 : vector<8xf32> to vector<8x1xf32>
    %99 = vector.broadcast %98 : vector<8x1xf32> to vector<8x8xf32>
    %100 = arith.subf %96, %99 : vector<8x8xf32>
    %101 = math.exp %100 : vector<8x8xf32>
    %cst_38 = arith.constant dense<0.000000e+00> : vector<8xf32>
    %102 = vector.multi_reduction <add>, %101, %cst_38 [1] : vector<8x8xf32> to vector<8xf32>
    %103 = vector.shape_cast %102 : vector<8xf32> to vector<8x1xf32>
    %104 = arith.truncf %101 : vector<8x8xf32> to vector<8x8xbf16>
    %cst_39 = arith.constant dense<0.000000e+00> : vector<8x8xf32>
    %105 = tpu.matmul %104, %90, %cst_39 {dimension_numbers = #tpu.dot_dimension_numbers<[1], [0], [0], [1], [0, 0, 1, 1], [], []>} : vector<8x8xbf16>, vector<8x8xbf16>, vector<8x8xf32> -> vector<8x8xf32>
    %106 = tpu.reciprocal %103 {approx = true} : vector<8x1xf32> -> vector<8x1xf32>
    %107 = vector.broadcast %106 : vector<8x1xf32> to vector<8x8xf32>
    %108 = arith.mulf %105, %107 : vector<8x8xf32>
    %109 = arith.truncf %108 : vector<8x8xf32> to vector<8x8xbf16>
    %c0_40 = arith.constant 0 : index
    %c0_41 = arith.constant 0 : index
    %c24 = arith.constant 24 : index
    %110 = vector.load %arg6[%c0_40, %c0_41, %c24] : memref<1x8x32xbf16, #tpu.memory_space<vmem>>, vector<1x8x8xbf16>
    %111 = vector.shape_cast %110 : vector<1x8x8xbf16> to vector<8x8xbf16>
    %112 = vector.shape_cast %109 : vector<8x8xbf16> to vector<1x8x8xbf16>
    tpu.vector_store %arg6[%c0_40, %c0_41, %c24], %112 {strides = array<i32>} : memref<1x8x32xbf16, #tpu.memory_space<vmem>>, vector<1x8x8xbf16>,
    return
  }
  func.func @transform_0(%arg0: i32, %arg1: i32) -> (i32, i32, i32) {
    %c0_i32 = arith.constant 0 : i32
    %c0_i32_0 = arith.constant 0 : i32
    return %arg0, %arg1, %c0_i32 : i32, i32, i32
  }
  func.func @transform_1(%arg0: i32, %arg1: i32) -> (i32, i32, i32) {
    %c0_i32 = arith.constant 0 : i32
    %c0_i32_0 = arith.constant 0 : i32
    %c0_i32_1 = arith.constant 0 : i32
    return %arg0, %c0_i32, %c0_i32_0 : i32, i32, i32
  }
  func.func @transform_2(%arg0: i32, %arg1: i32) -> (i32, i32, i32) {
    %c0_i32 = arith.constant 0 : i32
    %c0_i32_0 = arith.constant 0 : i32
    %c0_i32_1 = arith.constant 0 : i32
    return %arg0, %c0_i32, %c0_i32_0 : i32, i32, i32
  }
  func.func @transform_3(%arg0: i32, %arg1: i32) -> (i32, i32, i32) {
    %c0_i32 = arith.constant 0 : i32
    %c0_i32_0 = arith.constant 0 : i32
    %c0_i32_1 = arith.constant 0 : i32
    return %arg0, %c0_i32, %c0_i32_0 : i32, i32, i32
  }
  func.func @transform_4(%arg0: i32, %arg1: i32) -> (i32, i32, i32) {
    %c0_i32 = arith.constant 0 : i32
    %c0_i32_0 = arith.constant 0 : i32
    return %arg0, %arg1, %c0_i32 : i32, i32, i32
  }
}

module attributes {stable_mosaic.version = 11 : i64} {
  func.func @_linear_kernel(%arg0: i32, %arg1: i32, %arg2: i32, %arg3: memref<16x32xbf16, #tpu.memory_space<vmem>>, %arg4: memref<32x64xbf16, #tpu.memory_space<vmem>>, %arg5: memref<1x64xf32, #tpu.memory_space<vmem>>, %arg6: memref<16x64xbf16, #tpu.memory_space<vmem>>, %arg7: memref<16x64xf32, #tpu.memory_space<vmem>>) attributes {dimension_semantics = [#tpu.dimension_semantics<parallel>, #tpu.dimension_semantics<parallel>, #tpu.dimension_semantics<arbitrary>], iteration_bounds = array<i64: 1, 1, 1>, scalar_prefetch = 0 : i64, scratch_operands = 1 : i64, tpu.core_type = #tpu.core_type<tc>, window_params = [{transform_indices = @transform_0, window_bounds = array<i64: 16, 32>}, {transform_indices = @transform_1, window_bounds = array<i64: 32, 64>}, {transform_indices = @transform_2, window_bounds = array<i64: 1, 64>}, {transform_indices = @transform_3, window_bounds = array<i64: 16, 64>}]} {
    %c0_i32 = arith.constant 0 : i32
    %0 = arith.cmpi eq, %arg2, %c0_i32 : i32
    %1 = arith.extui %0 : i1 to i32
    %c0_i32_0 = arith.constant 0 : i32
    %2 = arith.cmpi ne, %1, %c0_i32_0 : i32
    scf.if %2 {
      %cst_10 = arith.constant 0.000000e+00 : f32
      %12 = vector.broadcast %cst_10 : f32 to vector<16x64xf32>
      %c0_11 = arith.constant 0 : index
      %c0_12 = arith.constant 0 : index
      %13 = vector.load %arg7[%c0_11, %c0_12] : memref<16x64xf32, #tpu.memory_space<vmem>>, vector<16x64xf32>
      tpu.vector_store %arg7[%c0_11, %c0_12], %12 {strides = array<i32>} : memref<16x64xf32, #tpu.memory_space<vmem>>, vector<16x64xf32>,
    } else {
    }
    %c0 = arith.constant 0 : index
    %c0_1 = arith.constant 0 : index
    %3 = vector.load %arg7[%c0, %c0_1] : memref<16x64xf32, #tpu.memory_space<vmem>>, vector<16x64xf32>
    %c0_2 = arith.constant 0 : index
    %c0_3 = arith.constant 0 : index
    %4 = vector.load %arg3[%c0_2, %c0_3] : memref<16x32xbf16, #tpu.memory_space<vmem>>, vector<16x32xbf16>
    %c0_4 = arith.constant 0 : index
    %c0_5 = arith.constant 0 : index
    %5 = vector.load %arg4[%c0_4, %c0_5] : memref<32x64xbf16, #tpu.memory_space<vmem>>, vector<32x64xbf16>
    %cst = arith.constant dense<0.000000e+00> : vector<16x64xf32>
    %6 = tpu.matmul %4, %5, %cst {dimension_numbers = #tpu.dot_dimension_numbers<[1], [0], [0], [1], [0, 0, 1, 1], [], []>} : vector<16x32xbf16>, vector<32x64xbf16>, vector<16x64xf32> -> vector<16x64xf32>
    %7 = arith.addf %3, %6 : vector<16x64xf32>
    %c0_6 = arith.constant 0 : index
    %c0_7 = arith.constant 0 : index
    %8 = vector.load %arg7[%c0_6, %c0_7] : memref<16x64xf32, #tpu.memory_space<vmem>>, vector<16x64xf32>
    tpu.vector_store %arg7[%c0_6, %c0_7], %7 {strides = array<i32>} : memref<16x64xf32, #tpu.memory_space<vmem>>, vector<16x64xf32>,
    %c0_i32_8 = arith.constant 0 : i32
    %9 = arith.cmpi eq, %arg2, %c0_i32_8 : i32
    %10 = arith.extui %9 : i1 to i32
    %c0_i32_9 = arith.constant 0 : i32
    %11 = arith.cmpi ne, %10, %c0_i32_9 : i32
    scf.if %11 {
      %c0_10 = arith.constant 0 : index
      %c0_11 = arith.constant 0 : index
      %12 = vector.load %arg7[%c0_10, %c0_11] : memref<16x64xf32, #tpu.memory_space<vmem>>, vector<16x64xf32>
      %c0_12 = arith.constant 0 : index
      %c0_13 = arith.constant 0 : index
      %13 = vector.load %arg5[%c0_12, %c0_13] : memref<1x64xf32, #tpu.memory_space<vmem>>, vector<1x64xf32>
      %14 = vector.broadcast %13 : vector<1x64xf32> to vector<16x64xf32>
      %15 = arith.addf %12, %14 : vector<16x64xf32>
      %16 = arith.truncf %15 : vector<16x64xf32> to vector<16x64xbf16>
      %c0_14 = arith.constant 0 : index
      %c0_15 = arith.constant 0 : index
      %17 = vector.load %arg6[%c0_14, %c0_15] : memref<16x64xbf16, #tpu.memory_space<vmem>>, vector<16x64xbf16>
      tpu.vector_store %arg6[%c0_14, %c0_15], %16 {strides = array<i32>} : memref<16x64xbf16, #tpu.memory_space<vmem>>, vector<16x64xbf16>,
    } else {
    }
    return
  }
  func.func @transform_0(%arg0: i32, %arg1: i32, %arg2: i32) -> (i32, i32) {
    %c0_i32 = arith.constant 0 : i32
    return %arg0, %arg2 : i32, i32
  }
  func.func @transform_1(%arg0: i32, %arg1: i32, %arg2: i32) -> (i32, i32) {
    %c0_i32 = arith.constant 0 : i32
    return %arg2, %arg1 : i32, i32
  }
  func.func @transform_2(%arg0: i32, %arg1: i32, %arg2: i32) -> (i32, i32) {
    %c0_i32 = arith.constant 0 : i32
    %c0_i32_0 = arith.constant 0 : i32
    return %c0_i32, %arg1 : i32, i32
  }
  func.func @transform_3(%arg0: i32, %arg1: i32, %arg2: i32) -> (i32, i32) {
    %c0_i32 = arith.constant 0 : i32
    return %arg0, %arg1 : i32, i32
  }
}

module attributes {stable_mosaic.version = 11 : i64} {
  func.func @_linear_kernel(%arg0: i32, %arg1: i32, %arg2: i32, %arg3: memref<16x32xbf16, #tpu.memory_space<vmem>>, %arg4: memref<32x64xbf16, #tpu.memory_space<vmem>>, %arg5: memref<1x64xf32, #tpu.memory_space<vmem>>, %arg6: memref<16x64xbf16, #tpu.memory_space<vmem>>, %arg7: memref<16x64xf32, #tpu.memory_space<vmem>>) attributes {dimension_semantics = [#tpu.dimension_semantics<parallel>, #tpu.dimension_semantics<parallel>, #tpu.dimension_semantics<arbitrary>], iteration_bounds = array<i64: 1, 1, 1>, scalar_prefetch = 0 : i64, scratch_operands = 1 : i64, tpu.core_type = #tpu.core_type<tc>, window_params = [{transform_indices = @transform_0, window_bounds = array<i64: 16, 32>}, {transform_indices = @transform_1, window_bounds = array<i64: 32, 64>}, {transform_indices = @transform_2, window_bounds = array<i64: 1, 64>}, {transform_indices = @transform_3, window_bounds = array<i64: 16, 64>}]} {
    %c0_i32 = arith.constant 0 : i32
    %0 = arith.cmpi eq, %arg2, %c0_i32 : i32
    %1 = arith.extui %0 : i1 to i32
    %c0_i32_0 = arith.constant 0 : i32
    %2 = arith.cmpi ne, %1, %c0_i32_0 : i32
    scf.if %2 {
      %cst_10 = arith.constant 0.000000e+00 : f32
      %12 = vector.broadcast %cst_10 : f32 to vector<16x64xf32>
      %c0_11 = arith.constant 0 : index
      %c0_12 = arith.constant 0 : index
      %13 = vector.load %arg7[%c0_11, %c0_12] : memref<16x64xf32, #tpu.memory_space<vmem>>, vector<16x64xf32>
      tpu.vector_store %arg7[%c0_11, %c0_12], %12 {strides = array<i32>} : memref<16x64xf32, #tpu.memory_space<vmem>>, vector<16x64xf32>,
    } else {
    }
    %c0 = arith.constant 0 : index
    %c0_1 = arith.constant 0 : index
    %3 = vector.load %arg7[%c0, %c0_1] : memref<16x64xf32, #tpu.memory_space<vmem>>, vector<16x64xf32>
    %c0_2 = arith.constant 0 : index
    %c0_3 = arith.constant 0 : index
    %4 = vector.load %arg3[%c0_2, %c0_3] : memref<16x32xbf16, #tpu.memory_space<vmem>>, vector<16x32xbf16>
    %c0_4 = arith.constant 0 : index
    %c0_5 = arith.constant 0 : index
    %5 = vector.load %arg4[%c0_4, %c0_5] : memref<32x64xbf16, #tpu.memory_space<vmem>>, vector<32x64xbf16>
    %cst = arith.constant dense<0.000000e+00> : vector<16x64xf32>
    %6 = tpu.matmul %4, %5, %cst {dimension_numbers = #tpu.dot_dimension_numbers<[1], [0], [0], [1], [0, 0, 1, 1], [], []>} : vector<16x32xbf16>, vector<32x64xbf16>, vector<16x64xf32> -> vector<16x64xf32>
    %7 = arith.addf %3, %6 : vector<16x64xf32>
    %c0_6 = arith.constant 0 : index
    %c0_7 = arith.constant 0 : index
    %8 = vector.load %arg7[%c0_6, %c0_7] : memref<16x64xf32, #tpu.memory_space<vmem>>, vector<16x64xf32>
    tpu.vector_store %arg7[%c0_6, %c0_7], %7 {strides = array<i32>} : memref<16x64xf32, #tpu.memory_space<vmem>>, vector<16x64xf32>,
    %c0_i32_8 = arith.constant 0 : i32
    %9 = arith.cmpi eq, %arg2, %c0_i32_8 : i32
    %10 = arith.extui %9 : i1 to i32
    %c0_i32_9 = arith.constant 0 : i32
    %11 = arith.cmpi ne, %10, %c0_i32_9 : i32
    scf.if %11 {
      %c0_10 = arith.constant 0 : index
      %c0_11 = arith.constant 0 : index
      %12 = vector.load %arg7[%c0_10, %c0_11] : memref<16x64xf32, #tpu.memory_space<vmem>>, vector<16x64xf32>
      %c0_12 = arith.constant 0 : index
      %c0_13 = arith.constant 0 : index
      %13 = vector.load %arg5[%c0_12, %c0_13] : memref<1x64xf32, #tpu.memory_space<vmem>>, vector<1x64xf32>
      %14 = vector.broadcast %13 : vector<1x64xf32> to vector<16x64xf32>
      %15 = arith.addf %12, %14 : vector<16x64xf32>
      %cst_14 = arith.constant 0.000000e+00 : f32
      %16 = vector.broadcast %cst_14 : f32 to vector<16x64xf32>
      %17 = arith.maximumf %15, %16 : vector<16x64xf32>
      %18 = arith.truncf %17 : vector<16x64xf32> to vector<16x64xbf16>
      %c0_15 = arith.constant 0 : index
      %c0_16 = arith.constant 0 : index
      %19 = vector.load %arg6[%c0_15, %c0_16] : memref<16x64xbf16, #tpu.memory_space<vmem>>, vector<16x64xbf16>
      tpu.vector_store %arg6[%c0_15, %c0_16], %18 {strides = array<i32>} : memref<16x64xbf16, #tpu.memory_space<vmem>>, vector<16x64xbf16>,
    } else {
    }
    return
  }
  func.func @transform_0(%arg0: i32, %arg1: i32, %arg2: i32) -> (i32, i32) {
    %c0_i32 = arith.constant 0 : i32
    return %arg0, %arg2 : i32, i32
  }
  func.func @transform_1(%arg0: i32, %arg1: i32, %arg2: i32) -> (i32, i32) {
    %c0_i32 = arith.constant 0 : i32
    return %arg2, %arg1 : i32, i32
  }
  func.func @transform_2(%arg0: i32, %arg1: i32, %arg2: i32) -> (i32, i32) {
    %c0_i32 = arith.constant 0 : i32
    %c0_i32_0 = arith.constant 0 : i32
    return %c0_i32, %arg1 : i32, i32
  }
  func.func @transform_3(%arg0: i32, %arg1: i32, %arg2: i32) -> (i32, i32) {
    %c0_i32 = arith.constant 0 : i32
    return %arg0, %arg1 : i32, i32
  }
}

module attributes {stable_mosaic.version = 11 : i64} {
  func.func @_mha_kernel(%arg0: i32, %arg1: i32, %arg2: memref<1x8x32xbf16, #tpu.memory_space<vmem>>, %arg3: memref<1x8x32xbf16, #tpu.memory_space<vmem>>, %arg4: memref<1x8x32xbf16, #tpu.memory_space<vmem>>, %arg5: memref<1x1x8xf32, #tpu.memory_space<vmem>>, %arg6: memref<1x8x32xbf16, #tpu.memory_space<vmem>>) attributes {dimension_semantics = [#tpu.dimension_semantics<parallel>, #tpu.dimension_semantics<parallel>], iteration_bounds = array<i64: 2, 1>, scalar_prefetch = 0 : i64, scratch_operands = 0 : i64, tpu.core_type = #tpu.core_type<tc>, window_params = [{transform_indices = @transform_0, window_bounds = array<i64: 1, 8, 32>}, {transform_indices = @transform_1, window_bounds = array<i64: 1, 8, 32>}, {transform_indices = @transform_2, window_bounds = array<i64: 1, 8, 32>}, {transform_indices = @transform_3, window_bounds = array<i64: 1, 1, 8>}, {transform_indices = @transform_4, window_bounds = array<i64: 1, 8, 32>}]} {
    %c0 = arith.constant 0 : index
    %c0_0 = arith.constant 0 : index
    %c0_1 = arith.constant 0 : index
    %0 = vector.load %arg2[%c0, %c0_0, %c0_1] : memref<1x8x32xbf16, #tpu.memory_space<vmem>>, vector<1x8x32xbf16>
    %1 = vector.shape_cast %0 : vector<1x8x32xbf16> to vector<8x32xbf16>
    %c0_2 = arith.constant 0 : index
    %c0_3 = arith.constant 0 : index
    %c0_4 = arith.constant 0 : index
    %2 = vector.load %arg3[%c0_2, %c0_3, %c0_4] : memref<1x8x32xbf16, #tpu.memory_space<vmem>>, vector<1x8x32xbf16>
    %3 = vector.shape_cast %2 : vector<1x8x32xbf16> to vector<8x32xbf16>
    %c0_5 = arith.constant 0 : index
    %c0_6 = arith.constant 0 : index
    %c0_7 = arith.constant 0 : index
    %4 = vector.load %arg4[%c0_5, %c0_6, %c0_7] : memref<1x8x32xbf16, #tpu.memory_space<vmem>>, vector<1x8x32xbf16>
    %5 = vector.shape_cast %4 : vector<1x8x32xbf16> to vector<8x32xbf16>
    %c0_8 = arith.constant 0 : index
    %c0_9 = arith.constant 0 : index
    %c0_10 = arith.constant 0 : index
    %6 = vector.load %arg5[%c0_8, %c0_9, %c0_10] : memref<1x1x8xf32, #tpu.memory_space<vmem>>, vector<1x1x8xf32>
    %7 = vector.shape_cast %6 : vector<1x1x8xf32> to vector<1x8xf32>
    %cst = arith.constant 5.000000e-01 : f32
    %8 = vector.broadcast %cst : f32 to vector<1x8xf32>
    %9 = arith.cmpf ogt, %7, %8 : vector<1x8xf32>
    %cst_11 = arith.constant 0.000000e+00 : f32
    %cst_12 = arith.constant -1.000000e+09 : f32
    %10 = vector.broadcast %cst_11 : f32 to vector<1x8xf32>
    %11 = vector.broadcast %cst_12 : f32 to vector<1x8xf32>
    %12 = arith.select %9, %10, %11 : vector<1x8xi1>, vector<1x8xf32>
    %c8_i32 = arith.constant 8 : i32
    %13 = arith.muli %arg1, %c8_i32 : i32
    %14 = tpu.iota {dimensions = array<i32: 0>} : vector<8x8xi32>
    %15 = vector.broadcast %13 : i32 to vector<8x8xi32>
    %16 = arith.addi %14, %15 : vector<8x8xi32>
    %17 = tpu.iota {dimensions = array<i32: 1>} : vector<8x8xi32>
    %18 = arith.cmpi sge, %16, %17 : vector<8x8xi32>
    %cst_13 = arith.constant 0.000000e+00 : f32
    %cst_14 = arith.constant -1.000000e+04 : f32
    %19 = vector.broadcast %cst_13 : f32 to vector<8x8xf32>
    %20 = vector.broadcast %cst_14 : f32 to vector<8x8xf32>
    %21 = arith.select %18, %19, %20 : vector<8x8xi1>, vector<8x8xf32>
    %22 = vector.broadcast %12 : vector<1x8xf32> to vector<8x8xf32>
    %23 = arith.addf %22, %21 : vector<8x8xf32>
    %24 = vector.extract_strided_slice %1 {offsets = [0, 0], sizes = [8, 8], strides = [1, 1]} : vector<8x32xbf16> to vector<8x8xbf16>
    %25 = vector.extract_strided_slice %3 {offsets = [0, 0], sizes = [8, 8], strides = [1, 1]} : vector<8x32xbf16> to vector<8x8xbf16>
    %26 = vector.extract_strided_slice %5 {offsets = [0, 0], sizes = [8, 8], strides = [1, 1]} : vector<8x32xbf16> to vector<8x8xbf16>
    %27 = tpu.transpose %25, [1, 0] : vector<8x8xbf16> -> vector<8x8xbf16>
    %cst_15 = arith.constant dense<0.000000e+00> : vector<8x8xf32>
    %28 = tpu.matmul %24, %27, %cst_15 {dimension_numbers = #tpu.dot_dimension_numbers<[1], [0], [0], [1], [0, 0, 1, 1], [], []>} : vector<8x8xbf16>, vector<8x8xbf16>, vector<8x8xf32> -> vector<8x8xf32>
    %cst_16 = arith.constant 0.353553385 : f32
    %29 = vector.broadcast %cst_16 : f32 to vector<8x8xf32>
    %30 = arith.mulf %28, %29 : vector<8x8xf32>
    %31 = arith.addf %30, %23 : vector<8x8xf32>
    %cst_17 = arith.constant dense<0xFF800000> : vector<8xf32>
    %32 = vector.multi_reduction <maximumf>, %31, %cst_17 [1] : vector<8x8xf32> to vector<8xf32>
    %33 = vector.shape_cast %32 : vector<8xf32> to vector<8x1xf32>
    %34 = vector.broadcast %33 : vector<8x1xf32> to vector<8x8xf32>
    %35 = arith.subf %31, %34 : vector<8x8xf32>
    %36 = math.exp %35 : vector<8x8xf32>
    %cst_18 = arith.constant dense<0.000000e+00> : vector<8xf32>
    %37 = vector.multi_reduction <add>, %36, %cst_18 [1] : vector<8x8xf32> to vector<8xf32>
    %38 = vector.shape_cast %37 : vector<8xf32> to vector<8x1xf32>
    %39 = arith.truncf %36 : vector<8x8xf32> to vector<8x8xbf16>
    %cst_19 = arith.constant dense<0.000000e+00> : vector<8x8xf32>
    %40 = tpu.matmul %39, %26, %cst_19 {dimension_numbers = #tpu.dot_dimension_numbers<[1], [0], [0], [1], [0, 0, 1, 1], [], []>} : vector<8x8xbf16>, vector<8x8xbf16>, vector<8x8xf32> -> vector<8x8xf32>
    %41 = tpu.reciprocal %38 {approx = true} : vector<8x1xf32> -> vector<8x1xf32>
    %42 = vector.broadcast %41 : vector<8x1xf32> to vector<8x8xf32>
    %43 = arith.mulf %40, %42 : vector<8x8xf32>
    %44 = arith.truncf %43 : vector<8x8xf32> to vector<8x8xbf16>
    %c0_20 = arith.constant 0 : index
    %c0_21 = arith.constant 0 : index
    %c0_22 = arith.constant 0 : index
    %45 = vector.load %arg6[%c0_20, %c0_21, %c0_22] : memref<1x8x32xbf16, #tpu.memory_space<vmem>>, vector<1x8x8xbf16>
    %46 = vector.shape_cast %45 : vector<1x8x8xbf16> to vector<8x8xbf16>
    %47 = vector.shape_cast %44 : vector<8x8xbf16> to vector<1x8x8xbf16>
    tpu.vector_store %arg6[%c0_20, %c0_21, %c0_22], %47 {strides = array<i32>} : memref<1x8x32xbf16, #tpu.memory_space<vmem>>, vector<1x8x8xbf16>,
    %48 = vector.extract_strided_slice %1 {offsets = [0, 8], sizes = [8, 8], strides = [1, 1]} : vector<8x32xbf16> to vector<8x8xbf16>
    %49 = vector.extract_strided_slice %3 {offsets = [0, 8], sizes = [8, 8], strides = [1, 1]} : vector<8x32xbf16> to vector<8x8xbf16>
    %50 = vector.extract_strided_slice %5 {offsets = [0, 8], sizes = [8, 8], strides = [1, 1]} : vector<8x32xbf16> to vector<8x8xbf16>
    %51 = tpu.transpose %49, [1, 0] : vector<8x8xbf16> -> vector<8x8xbf16>
    %cst_23 = arith.constant dense<0.000000e+00> : vector<8x8xf32>
    %52 = tpu.matmul %48, %51, %cst_23 {dimension_numbers = #tpu.dot_dimension_numbers<[1], [0], [0], [1], [0, 0, 1, 1], [], []>} : vector<8x8xbf16>, vector<8x8xbf16>, vector<8x8xf32> -> vector<8x8xf32>
    %cst_24 = arith.constant 0.353553385 : f32
    %53 = vector.broadcast %cst_24 : f32 to vector<8x8xf32>
    %54 = arith.mulf %52, %53 : vector<8x8xf32>
    %55 = arith.addf %54, %23 : vector<8x8xf32>
    %cst_25 = arith.constant dense<0xFF800000> : vector<8xf32>
    %56 = vector.multi_reduction <maximumf>, %55, %cst_25 [1] : vector<8x8xf32> to vector<8xf32>
    %57 = vector.shape_cast %56 : vector<8xf32> to vector<8x1xf32>
    %58 = vector.broadcast %57 : vector<8x1xf32> to vector<8x8xf32>
    %59 = arith.subf %55, %58 : vector<8x8xf32>
    %60 = math.exp %59 : vector<8x8xf32>
    %cst_26 = arith.constant dense<0.000000e+00> : vector<8xf32>
    %61 = vector.multi_reduction <add>, %60, %cst_26 [1] : vector<8x8xf32> to vector<8xf32>
    %62 = vector.shape_cast %61 : vector<8xf32> to vector<8x1xf32>
    %63 = arith.truncf %60 : vector<8x8xf32> to vector<8x8xbf16>
    %cst_27 = arith.constant dense<0.000000e+00> : vector<8x8xf32>
    %64 = tpu.matmul %63, %50, %cst_27 {dimension_numbers = #tpu.dot_dimension_numbers<[1], [0], [0], [1], [0, 0, 1, 1], [], []>} : vector<8x8xbf16>, vector<8x8xbf16>, vector<8x8xf32> -> vector<8x8xf32>
    %65 = tpu.reciprocal %62 {approx = true} : vector<8x1xf32> -> vector<8x1xf32>
    %66 = vector.broadcast %65 : vector<8x1xf32> to vector<8x8xf32>
    %67 = arith.mulf %64, %66 : vector<8x8xf32>
    %68 = arith.truncf %67 : vector<8x8xf32> to vector<8x8xbf16>
    %c0_28 = arith.constant 0 : index
    %c0_29 = arith.constant 0 : index
    %c8 = arith.constant 8 : index
    %69 = vector.load %arg6[%c0_28, %c0_29, %c8] : memref<1x8x32xbf16, #tpu.memory_space<vmem>>, vector<1x8x8xbf16>
    %70 = vector.shape_cast %69 : vector<1x8x8xbf16> to vector<8x8xbf16>
    %71 = vector.shape_cast %68 : vector<8x8xbf16> to vector<1x8x8xbf16>
    tpu.vector_store %arg6[%c0_28, %c0_29, %c8], %71 {strides = array<i32>} : memref<1x8x32xbf16, #tpu.memory_space<vmem>>, vector<1x8x8xbf16>,
    %72 = vector.extract_strided_slice %1 {offsets = [0, 16], sizes = [8, 8], strides = [1, 1]} : vector<8x32xbf16> to vector<8x8xbf16>
    %73 = vector.extract_strided_slice %3 {offsets = [0, 16], sizes = [8, 8], strides = [1, 1]} : vector<8x32xbf16> to vector<8x8xbf16>
    %74 = vector.extract_strided_slice %5 {offsets = [0, 16], sizes = [8, 8], strides = [1, 1]} : vector<8x32xbf16> to vector<8x8xbf16>
    %75 = tpu.transpose %73, [1, 0] : vector<8x8xbf16> -> vector<8x8xbf16>
    %cst_30 = arith.constant dense<0.000000e+00> : vector<8x8xf32>
    %76 = tpu.matmul %72, %75, %cst_30 {dimension_numbers = #tpu.dot_dimension_numbers<[1], [0], [0], [1], [0, 0, 1, 1], [], []>} : vector<8x8xbf16>, vector<8x8xbf16>, vector<8x8xf32> -> vector<8x8xf32>
    %cst_31 = arith.constant 0.353553385 : f32
    %77 = vector.broadcast %cst_31 : f32 to vector<8x8xf32>
    %78 = arith.mulf %76, %77 : vector<8x8xf32>
    %79 = arith.addf %78, %23 : vector<8x8xf32>
    %cst_32 = arith.constant dense<0xFF800000> : vector<8xf32>
    %80 = vector.multi_reduction <maximumf>, %79, %cst_32 [1] : vector<8x8xf32> to vector<8xf32>
    %81 = vector.shape_cast %80 : vector<8xf32> to vector<8x1xf32>
    %82 = vector.broadcast %81 : vector<8x1xf32> to vector<8x8xf32>
    %83 = arith.subf %79, %82 : vector<8x8xf32>
    %84 = math.exp %83 : vector<8x8xf32>
    %cst_33 = arith.constant dense<0.000000e+00> : vector<8xf32>
    %85 = vector.multi_reduction <add>, %84, %cst_33 [1] : vector<8x8xf32> to vector<8xf32>
    %86 = vector.shape_cast %85 : vector<8xf32> to vector<8x1xf32>
    %87 = arith.truncf %84 : vector<8x8xf32> to vector<8x8xbf16>
    %cst_34 = arith.constant dense<0.000000e+00> : vector<8x8xf32>
    %88 = tpu.matmul %87, %74, %cst_34 {dimension_numbers = #tpu.dot_dimension_numbers<[1], [0], [0], [1], [0, 0, 1, 1], [], []>} : vector<8x8xbf16>, vector<8x8xbf16>, vector<8x8xf32> -> vector<8x8xf32>
    %89 = tpu.reciprocal %86 {approx = true} : vector<8x1xf32> -> vector<8x1xf32>
    %90 = vector.broadcast %89 : vector<8x1xf32> to vector<8x8xf32>
    %91 = arith.mulf %88, %90 : vector<8x8xf32>
    %92 = arith.truncf %91 : vector<8x8xf32> to vector<8x8xbf16>
    %c0_35 = arith.constant 0 : index
    %c0_36 = arith.constant 0 : index
    %c16 = arith.constant 16 : index
    %93 = vector.load %arg6[%c0_35, %c0_36, %c16] : memref<1x8x32xbf16, #tpu.memory_space<vmem>>, vector<1x8x8xbf16>
    %94 = vector.shape_cast %93 : vector<1x8x8xbf16> to vector<8x8xbf16>
    %95 = vector.shape_cast %92 : vector<8x8xbf16> to vector<1x8x8xbf16>
    tpu.vector_store %arg6[%c0_35, %c0_36, %c16], %95 {strides = array<i32>} : memref<1x8x32xbf16, #tpu.memory_space<vmem>>, vector<1x8x8xbf16>,
    %96 = vector.extract_strided_slice %1 {offsets = [0, 24], sizes = [8, 8], strides = [1, 1]} : vector<8x32xbf16> to vector<8x8xbf16>
    %97 = vector.extract_strided_slice %3 {offsets = [0, 24], sizes = [8, 8], strides = [1, 1]} : vector<8x32xbf16> to vector<8x8xbf16>
    %98 = vector.extract_strided_slice %5 {offsets = [0, 24], sizes = [8, 8], strides = [1, 1]} : vector<8x32xbf16> to vector<8x8xbf16>
    %99 = tpu.transpose %97, [1, 0] : vector<8x8xbf16> -> vector<8x8xbf16>
    %cst_37 = arith.constant dense<0.000000e+00> : vector<8x8xf32>
    %100 = tpu.matmul %96, %99, %cst_37 {dimension_numbers = #tpu.dot_dimension_numbers<[1], [0], [0], [1], [0, 0, 1, 1], [], []>} : vector<8x8xbf16>, vector<8x8xbf16>, vector<8x8xf32> -> vector<8x8xf32>
    %cst_38 = arith.constant 0.353553385 : f32
    %101 = vector.broadcast %cst_38 : f32 to vector<8x8xf32>
    %102 = arith.mulf %100, %101 : vector<8x8xf32>
    %103 = arith.addf %102, %23 : vector<8x8xf32>
    %cst_39 = arith.constant dense<0xFF800000> : vector<8xf32>
    %104 = vector.multi_reduction <maximumf>, %103, %cst_39 [1] : vector<8x8xf32> to vector<8xf32>
    %105 = vector.shape_cast %104 : vector<8xf32> to vector<8x1xf32>
    %106 = vector.broadcast %105 : vector<8x1xf32> to vector<8x8xf32>
    %107 = arith.subf %103, %106 : vector<8x8xf32>
    %108 = math.exp %107 : vector<8x8xf32>
    %cst_40 = arith.constant dense<0.000000e+00> : vector<8xf32>
    %109 = vector.multi_reduction <add>, %108, %cst_40 [1] : vector<8x8xf32> to vector<8xf32>
    %110 = vector.shape_cast %109 : vector<8xf32> to vector<8x1xf32>
    %111 = arith.truncf %108 : vector<8x8xf32> to vector<8x8xbf16>
    %cst_41 = arith.constant dense<0.000000e+00> : vector<8x8xf32>
    %112 = tpu.matmul %111, %98, %cst_41 {dimension_numbers = #tpu.dot_dimension_numbers<[1], [0], [0], [1], [0, 0, 1, 1], [], []>} : vector<8x8xbf16>, vector<8x8xbf16>, vector<8x8xf32> -> vector<8x8xf32>
    %113 = tpu.reciprocal %110 {approx = true} : vector<8x1xf32> -> vector<8x1xf32>
    %114 = vector.broadcast %113 : vector<8x1xf32> to vector<8x8xf32>
    %115 = arith.mulf %112, %114 : vector<8x8xf32>
    %116 = arith.truncf %115 : vector<8x8xf32> to vector<8x8xbf16>
    %c0_42 = arith.constant 0 : index
    %c0_43 = arith.constant 0 : index
    %c24 = arith.constant 24 : index
    %117 = vector.load %arg6[%c0_42, %c0_43, %c24] : memref<1x8x32xbf16, #tpu.memory_space<vmem>>, vector<1x8x8xbf16>
    %118 = vector.shape_cast %117 : vector<1x8x8xbf16> to vector<8x8xbf16>
    %119 = vector.shape_cast %116 : vector<8x8xbf16> to vector<1x8x8xbf16>
    tpu.vector_store %arg6[%c0_42, %c0_43, %c24], %119 {strides = array<i32>} : memref<1x8x32xbf16, #tpu.memory_space<vmem>>, vector<1x8x8xbf16>,
    return
  }
  func.func @transform_0(%arg0: i32, %arg1: i32) -> (i32, i32, i32) {
    %c0_i32 = arith.constant 0 : i32
    %c0_i32_0 = arith.constant 0 : i32
    return %arg0, %arg1, %c0_i32 : i32, i32, i32
  }
  func.func @transform_1(%arg0: i32, %arg1: i32) -> (i32, i32, i32) {
    %c0_i32 = arith.constant 0 : i32
    %c0_i32_0 = arith.constant 0 : i32
    %c0_i32_1 = arith.constant 0 : i32
    return %arg0, %c0_i32, %c0_i32_0 : i32, i32, i32
  }
  func.func @transform_2(%arg0: i32, %arg1: i32) -> (i32, i32, i32) {
    %c0_i32 = arith.constant 0 : i32
    %c0_i32_0 = arith.constant 0 : i32
    %c0_i32_1 = arith.constant 0 : i32
    return %arg0, %c0_i32, %c0_i32_0 : i32, i32, i32
  }
  func.func @transform_3(%arg0: i32, %arg1: i32) -> (i32, i32, i32) {
    %c0_i32 = arith.constant 0 : i32
    %c0_i32_0 = arith.constant 0 : i32
    %c0_i32_1 = arith.constant 0 : i32
    return %arg0, %c0_i32, %c0_i32_0 : i32, i32, i32
  }
  func.func @transform_4(%arg0: i32, %arg1: i32) -> (i32, i32, i32) {
    %c0_i32 = arith.constant 0 : i32
    %c0_i32_0 = arith.constant 0 : i32
    return %arg0, %arg1, %c0_i32 : i32, i32, i32
  }
}

module attributes {stable_mosaic.version = 11 : i64} {
  func.func @_linear_kernel(%arg0: i32, %arg1: i32, %arg2: i32, %arg3: memref<16x32xbf16, #tpu.memory_space<vmem>>, %arg4: memref<32x32xbf16, #tpu.memory_space<vmem>>, %arg5: memref<1x32xf32, #tpu.memory_space<vmem>>, %arg6: memref<16x32xbf16, #tpu.memory_space<vmem>>, %arg7: memref<16x32xf32, #tpu.memory_space<vmem>>) attributes {dimension_semantics = [#tpu.dimension_semantics<parallel>, #tpu.dimension_semantics<parallel>, #tpu.dimension_semantics<arbitrary>], iteration_bounds = array<i64: 1, 1, 1>, scalar_prefetch = 0 : i64, scratch_operands = 1 : i64, tpu.core_type = #tpu.core_type<tc>, window_params = [{transform_indices = @transform_0, window_bounds = array<i64: 16, 32>}, {transform_indices = @transform_1, window_bounds = array<i64: 32, 32>}, {transform_indices = @transform_2, window_bounds = array<i64: 1, 32>}, {transform_indices = @transform_3, window_bounds = array<i64: 16, 32>}]} {
    %c0_i32 = arith.constant 0 : i32
    %0 = arith.cmpi eq, %arg2, %c0_i32 : i32
    %1 = arith.extui %0 : i1 to i32
    %c0_i32_0 = arith.constant 0 : i32
    %2 = arith.cmpi ne, %1, %c0_i32_0 : i32
    scf.if %2 {
      %cst_10 = arith.constant 0.000000e+00 : f32
      %12 = vector.broadcast %cst_10 : f32 to vector<16x32xf32>
      %c0_11 = arith.constant 0 : index
      %c0_12 = arith.constant 0 : index
      %13 = vector.load %arg7[%c0_11, %c0_12] : memref<16x32xf32, #tpu.memory_space<vmem>>, vector<16x32xf32>
      tpu.vector_store %arg7[%c0_11, %c0_12], %12 {strides = array<i32>} : memref<16x32xf32, #tpu.memory_space<vmem>>, vector<16x32xf32>,
    } else {
    }
    %c0 = arith.constant 0 : index
    %c0_1 = arith.constant 0 : index
    %3 = vector.load %arg7[%c0, %c0_1] : memref<16x32xf32, #tpu.memory_space<vmem>>, vector<16x32xf32>
    %c0_2 = arith.constant 0 : index
    %c0_3 = arith.constant 0 : index
    %4 = vector.load %arg3[%c0_2, %c0_3] : memref<16x32xbf16, #tpu.memory_space<vmem>>, vector<16x32xbf16>
    %c0_4 = arith.constant 0 : index
    %c0_5 = arith.constant 0 : index
    %5 = vector.load %arg4[%c0_4, %c0_5] : memref<32x32xbf16, #tpu.memory_space<vmem>>, vector<32x32xbf16>
    %cst = arith.constant dense<0.000000e+00> : vector<16x32xf32>
    %6 = tpu.matmul %4, %5, %cst {dimension_numbers = #tpu.dot_dimension_numbers<[1], [0], [0], [1], [0, 0, 1, 1], [], []>} : vector<16x32xbf16>, vector<32x32xbf16>, vector<16x32xf32> -> vector<16x32xf32>
    %7 = arith.addf %3, %6 : vector<16x32xf32>
    %c0_6 = arith.constant 0 : index
    %c0_7 = arith.constant 0 : index
    %8 = vector.load %arg7[%c0_6, %c0_7] : memref<16x32xf32, #tpu.memory_space<vmem>>, vector<16x32xf32>
    tpu.vector_store %arg7[%c0_6, %c0_7], %7 {strides = array<i32>} : memref<16x32xf32, #tpu.memory_space<vmem>>, vector<16x32xf32>,
    %c0_i32_8 = arith.constant 0 : i32
    %9 = arith.cmpi eq, %arg2, %c0_i32_8 : i32
    %10 = arith.extui %9 : i1 to i32
    %c0_i32_9 = arith.constant 0 : i32
    %11 = arith.cmpi ne, %10, %c0_i32_9 : i32
    scf.if %11 {
      %c0_10 = arith.constant 0 : index
      %c0_11 = arith.constant 0 : index
      %12 = vector.load %arg7[%c0_10, %c0_11] : memref<16x32xf32, #tpu.memory_space<vmem>>, vector<16x32xf32>
      %c0_12 = arith.constant 0 : index
      %c0_13 = arith.constant 0 : index
      %13 = vector.load %arg5[%c0_12, %c0_13] : memref<1x32xf32, #tpu.memory_space<vmem>>, vector<1x32xf32>
      %14 = vector.broadcast %13 : vector<1x32xf32> to vector<16x32xf32>
      %15 = arith.addf %12, %14 : vector<16x32xf32>
      %16 = arith.truncf %15 : vector<16x32xf32> to vector<16x32xbf16>
      %c0_14 = arith.constant 0 : index
      %c0_15 = arith.constant 0 : index
      %17 = vector.load %arg6[%c0_14, %c0_15] : memref<16x32xbf16, #tpu.memory_space<vmem>>, vector<16x32xbf16>
      tpu.vector_store %arg6[%c0_14, %c0_15], %16 {strides = array<i32>} : memref<16x32xbf16, #tpu.memory_space<vmem>>, vector<16x32xbf16>,
    } else {
    }
    return
  }
  func.func @transform_0(%arg0: i32, %arg1: i32, %arg2: i32) -> (i32, i32) {
    %c0_i32 = arith.constant 0 : i32
    return %arg0, %arg2 : i32, i32
  }
  func.func @transform_1(%arg0: i32, %arg1: i32, %arg2: i32) -> (i32, i32) {
    %c0_i32 = arith.constant 0 : i32
    return %arg2, %arg1 : i32, i32
  }
  func.func @transform_2(%arg0: i32, %arg1: i32, %arg2: i32) -> (i32, i32) {
    %c0_i32 = arith.constant 0 : i32
    %c0_i32_0 = arith.constant 0 : i32
    return %c0_i32, %arg1 : i32, i32
  }
  func.func @transform_3(%arg0: i32, %arg1: i32, %arg2: i32) -> (i32, i32) {
    %c0_i32 = arith.constant 0 : i32
    return %arg0, %arg1 : i32, i32
  }
}

module attributes {stable_mosaic.version = 11 : i64} {
  func.func @_linear_res_ln_kernel(%arg0: i32, %arg1: i32, %arg2: memref<16x64xbf16, #tpu.memory_space<vmem>>, %arg3: memref<64x32xbf16, #tpu.memory_space<vmem>>, %arg4: memref<1x32xf32, #tpu.memory_space<vmem>>, %arg5: memref<16x32xbf16, #tpu.memory_space<vmem>>, %arg6: memref<1x32xf32, #tpu.memory_space<vmem>>, %arg7: memref<1x32xf32, #tpu.memory_space<vmem>>, %arg8: memref<16x32xbf16, #tpu.memory_space<vmem>>, %arg9: memref<16x32xf32, #tpu.memory_space<vmem>>) attributes {dimension_semantics = [#tpu.dimension_semantics<parallel>, #tpu.dimension_semantics<arbitrary>], iteration_bounds = array<i64: 1, 1>, scalar_prefetch = 0 : i64, scratch_operands = 1 : i64, tpu.core_type = #tpu.core_type<tc>, window_params = [{transform_indices = @transform_0, window_bounds = array<i64: 16, 64>}, {transform_indices = @transform_1, window_bounds = array<i64: 64, 32>}, {pipeline_mode = #tpu.pipeline_mode<synchronous>, transform_indices = @transform_2, window_bounds = array<i64: 1, 32>}, {transform_indices = @transform_3, window_bounds = array<i64: 16, 32>}, {pipeline_mode = #tpu.pipeline_mode<synchronous>, transform_indices = @transform_4, window_bounds = array<i64: 1, 32>}, {pipeline_mode = #tpu.pipeline_mode<synchronous>, transform_indices = @transform_5, window_bounds = array<i64: 1, 32>}, {transform_indices = @transform_6, window_bounds = array<i64: 16, 32>}]} {
    %c0_i32 = arith.constant 0 : i32
    %0 = arith.cmpi eq, %arg1, %c0_i32 : i32
    %1 = arith.extui %0 : i1 to i32
    %c0_i32_0 = arith.constant 0 : i32
    %2 = arith.cmpi ne, %1, %c0_i32_0 : i32
    scf.if %2 {
      %cst_10 = arith.constant 0.000000e+00 : f32
      %12 = vector.broadcast %cst_10 : f32 to vector<16x32xf32>
      %c0_11 = arith.constant 0 : index
      %c0_12 = arith.constant 0 : index
      %13 = vector.load %arg9[%c0_11, %c0_12] : memref<16x32xf32, #tpu.memory_space<vmem>>, vector<16x32xf32>
      tpu.vector_store %arg9[%c0_11, %c0_12], %12 {strides = array<i32>} : memref<16x32xf32, #tpu.memory_space<vmem>>, vector<16x32xf32>,
    } else {
    }
    %c0 = arith.constant 0 : index
    %c0_1 = arith.constant 0 : index
    %3 = vector.load %arg9[%c0, %c0_1] : memref<16x32xf32, #tpu.memory_space<vmem>>, vector<16x32xf32>
    %c0_2 = arith.constant 0 : index
    %c0_3 = arith.constant 0 : index
    %4 = vector.load %arg2[%c0_2, %c0_3] : memref<16x64xbf16, #tpu.memory_space<vmem>>, vector<16x64xbf16>
    %c0_4 = arith.constant 0 : index
    %c0_5 = arith.constant 0 : index
    %5 = vector.load %arg3[%c0_4, %c0_5] : memref<64x32xbf16, #tpu.memory_space<vmem>>, vector<64x32xbf16>
    %cst = arith.constant dense<0.000000e+00> : vector<16x32xf32>
    %6 = tpu.matmul %4, %5, %cst {dimension_numbers = #tpu.dot_dimension_numbers<[1], [0], [0], [1], [0, 0, 1, 1], [], []>} : vector<16x64xbf16>, vector<64x32xbf16>, vector<16x32xf32> -> vector<16x32xf32>
    %7 = arith.addf %3, %6 : vector<16x32xf32>
    %c0_6 = arith.constant 0 : index
    %c0_7 = arith.constant 0 : index
    %8 = vector.load %arg9[%c0_6, %c0_7] : memref<16x32xf32, #tpu.memory_space<vmem>>, vector<16x32xf32>
    tpu.vector_store %arg9[%c0_6, %c0_7], %7 {strides = array<i32>} : memref<16x32xf32, #tpu.memory_space<vmem>>, vector<16x32xf32>,
    %c0_i32_8 = arith.constant 0 : i32
    %9 = arith.cmpi eq, %arg1, %c0_i32_8 : i32
    %10 = arith.extui %9 : i1 to i32
    %c0_i32_9 = arith.constant 0 : i32
    %11 = arith.cmpi ne, %10, %c0_i32_9 : i32
    scf.if %11 {
      %c0_10 = arith.constant 0 : index
      %c0_11 = arith.constant 0 : index
      %12 = vector.load %arg9[%c0_10, %c0_11] : memref<16x32xf32, #tpu.memory_space<vmem>>, vector<16x32xf32>
      %c0_12 = arith.constant 0 : index
      %c0_13 = arith.constant 0 : index
      %13 = vector.load %arg4[%c0_12, %c0_13] : memref<1x32xf32, #tpu.memory_space<vmem>>, vector<1x32xf32>
      %14 = vector.broadcast %13 : vector<1x32xf32> to vector<16x32xf32>
      %15 = arith.addf %12, %14 : vector<16x32xf32>
      %c0_14 = arith.constant 0 : index
      %c0_15 = arith.constant 0 : index
      %16 = vector.load %arg5[%c0_14, %c0_15] : memref<16x32xbf16, #tpu.memory_space<vmem>>, vector<16x32xbf16>
      %17 = arith.extf %16 : vector<16x32xbf16> to vector<16x32xf32>
      %18 = arith.addf %15, %17 : vector<16x32xf32>
      %cst_16 = arith.constant dense<0.000000e+00> : vector<16xf32>
      %19 = vector.multi_reduction <add>, %18, %cst_16 [1] : vector<16x32xf32> to vector<16xf32>
      %20 = vector.shape_cast %19 : vector<16xf32> to vector<16x1xf32>
      %cst_17 = arith.constant 3.200000e+01 : f32
      %21 = vector.broadcast %cst_17 : f32 to vector<16x1xf32>
      %22 = arith.divf %20, %21 : vector<16x1xf32>
      %23 = vector.broadcast %22 : vector<16x1xf32> to vector<16x32xf32>
      %24 = arith.subf %18, %23 : vector<16x32xf32>
      %25 = arith.mulf %24, %24 : vector<16x32xf32>
      %cst_18 = arith.constant dense<0.000000e+00> : vector<16xf32>
      %26 = vector.multi_reduction <add>, %25, %cst_18 [1] : vector<16x32xf32> to vector<16xf32>
      %27 = vector.shape_cast %26 : vector<16xf32> to vector<16x1xf32>
      %cst_19 = arith.constant 3.200000e+01 : f32
      %28 = vector.broadcast %cst_19 : f32 to vector<16x1xf32>
      %29 = arith.divf %27, %28 : vector<16x1xf32>
      %30 = vector.broadcast %22 : vector<16x1xf32> to vector<16x32xf32>
      %31 = arith.subf %18, %30 : vector<16x32xf32>
      %cst_20 = arith.constant 9.99999974E-6 : f32
      %32 = vector.broadcast %cst_20 : f32 to vector<16x1xf32>
      %33 = arith.addf %29, %32 : vector<16x1xf32>
      %34 = math.rsqrt %33 : vector<16x1xf32>
      %35 = vector.broadcast %34 : vector<16x1xf32> to vector<16x32xf32>
      %36 = arith.mulf %31, %35 : vector<16x32xf32>
      %c0_21 = arith.constant 0 : index
      %c0_22 = arith.constant 0 : index
      %37 = vector.load %arg6[%c0_21, %c0_22] : memref<1x32xf32, #tpu.memory_space<vmem>>, vector<1x32xf32>
      %38 = vector.broadcast %37 : vector<1x32xf32> to vector<16x32xf32>
      %39 = arith.mulf %36, %38 : vector<16x32xf32>
      %c0_23 = arith.constant 0 : index
      %c0_24 = arith.constant 0 : index
      %40 = vector.load %arg7[%c0_23, %c0_24] : memref<1x32xf32, #tpu.memory_space<vmem>>, vector<1x32xf32>
      %41 = vector.broadcast %40 : vector<1x32xf32> to vector<16x32xf32>
      %42 = arith.addf %39, %41 : vector<16x32xf32>
      %43 = arith.truncf %42 : vector<16x32xf32> to vector<16x32xbf16>
      %c0_25 = arith.constant 0 : index
      %c0_26 = arith.constant 0 : index
      %44 = vector.load %arg8[%c0_25, %c0_26] : memref<16x32xbf16, #tpu.memory_space<vmem>>, vector<16x32xbf16>
      tpu.vector_store %arg8[%c0_25, %c0_26], %43 {strides = array<i32>} : memref<16x32xbf16, #tpu.memory_space<vmem>>, vector<16x32xbf16>,
    } else {
    }
    return
  }
  func.func @transform_0(%arg0: i32, %arg1: i32) -> (i32, i32) {
    %c0_i32 = arith.constant 0 : i32
    return %arg0, %arg1 : i32, i32
  }
  func.func @transform_1(%arg0: i32, %arg1: i32) -> (i32, i32) {
    %c0_i32 = arith.constant 0 : i32
    %c0_i32_0 = arith.constant 0 : i32
    return %arg1, %c0_i32 : i32, i32
  }
  func.func @transform_2(%arg0: i32, %arg1: i32) -> (i32, i32) {
    %c0_i32 = arith.constant 0 : i32
    %c0_i32_0 = arith.constant 0 : i32
    %c0_i32_1 = arith.constant 0 : i32
    return %c0_i32, %c0_i32_0 : i32, i32
  }
  func.func @transform_3(%arg0: i32, %arg1: i32) -> (i32, i32) {
    %c0_i32 = arith.constant 0 : i32
    %c0_i32_0 = arith.constant 0 : i32
    return %arg0, %c0_i32 : i32, i32
  }
  func.func @transform_4(%arg0: i32, %arg1: i32) -> (i32, i32) {
    %c0_i32 = arith.constant 0 : i32
    %c0_i32_0 = arith.constant 0 : i32
    %c0_i32_1 = arith.constant 0 : i32
    return %c0_i32, %c0_i32_0 : i32, i32
  }
  func.func @transform_5(%arg0: i32, %arg1: i32) -> (i32, i32) {
    %c0_i32 = arith.constant 0 : i32
    %c0_i32_0 = arith.constant 0 : i32
    %c0_i32_1 = arith.constant 0 : i32
    return %c0_i32, %c0_i32_0 : i32, i32
  }
  func.func @transform_6(%arg0: i32, %arg1: i32) -> (i32, i32) {
    %c0_i32 = arith.constant 0 : i32
    %c0_i32_0 = arith.constant 0 : i32
    return %arg0, %c0_i32 : i32, i32
  }
}

module attributes {stable_mosaic.version = 11 : i64} {
  func.func @_linear_kernel(%arg0: i32, %arg1: i32, %arg2: i32, %arg3: memref<16x32xbf16, #tpu.memory_space<vmem>>, %arg4: memref<32x32xbf16, #tpu.memory_space<vmem>>, %arg5: memref<1x32xf32, #tpu.memory_space<vmem>>, %arg6: memref<16x32xbf16, #tpu.memory_space<vmem>>, %arg7: memref<16x32xf32, #tpu.memory_space<vmem>>) attributes {dimension_semantics = [#tpu.dimension_semantics<parallel>, #tpu.dimension_semantics<parallel>, #tpu.dimension_semantics<arbitrary>], iteration_bounds = array<i64: 1, 1, 1>, scalar_prefetch = 0 : i64, scratch_operands = 1 : i64, tpu.core_type = #tpu.core_type<tc>, window_params = [{transform_indices = @transform_0, window_bounds = array<i64: 16, 32>}, {transform_indices = @transform_1, window_bounds = array<i64: 32, 32>}, {transform_indices = @transform_2, window_bounds = array<i64: 1, 32>}, {transform_indices = @transform_3, window_bounds = array<i64: 16, 32>}]} {
    %c0_i32 = arith.constant 0 : i32
    %0 = arith.cmpi eq, %arg2, %c0_i32 : i32
    %1 = arith.extui %0 : i1 to i32
    %c0_i32_0 = arith.constant 0 : i32
    %2 = arith.cmpi ne, %1, %c0_i32_0 : i32
    scf.if %2 {
      %cst_10 = arith.constant 0.000000e+00 : f32
      %12 = vector.broadcast %cst_10 : f32 to vector<16x32xf32>
      %c0_11 = arith.constant 0 : index
      %c0_12 = arith.constant 0 : index
      %13 = vector.load %arg7[%c0_11, %c0_12] : memref<16x32xf32, #tpu.memory_space<vmem>>, vector<16x32xf32>
      tpu.vector_store %arg7[%c0_11, %c0_12], %12 {strides = array<i32>} : memref<16x32xf32, #tpu.memory_space<vmem>>, vector<16x32xf32>,
    } else {
    }
    %c0 = arith.constant 0 : index
    %c0_1 = arith.constant 0 : index
    %3 = vector.load %arg7[%c0, %c0_1] : memref<16x32xf32, #tpu.memory_space<vmem>>, vector<16x32xf32>
    %c0_2 = arith.constant 0 : index
    %c0_3 = arith.constant 0 : index
    %4 = vector.load %arg3[%c0_2, %c0_3] : memref<16x32xbf16, #tpu.memory_space<vmem>>, vector<16x32xbf16>
    %c0_4 = arith.constant 0 : index
    %c0_5 = arith.constant 0 : index
    %5 = vector.load %arg4[%c0_4, %c0_5] : memref<32x32xbf16, #tpu.memory_space<vmem>>, vector<32x32xbf16>
    %cst = arith.constant dense<0.000000e+00> : vector<16x32xf32>
    %6 = tpu.matmul %4, %5, %cst {dimension_numbers = #tpu.dot_dimension_numbers<[1], [0], [0], [1], [0, 0, 1, 1], [], []>} : vector<16x32xbf16>, vector<32x32xbf16>, vector<16x32xf32> -> vector<16x32xf32>
    %7 = arith.addf %3, %6 : vector<16x32xf32>
    %c0_6 = arith.constant 0 : index
    %c0_7 = arith.constant 0 : index
    %8 = vector.load %arg7[%c0_6, %c0_7] : memref<16x32xf32, #tpu.memory_space<vmem>>, vector<16x32xf32>
    tpu.vector_store %arg7[%c0_6, %c0_7], %7 {strides = array<i32>} : memref<16x32xf32, #tpu.memory_space<vmem>>, vector<16x32xf32>,
    %c0_i32_8 = arith.constant 0 : i32
    %9 = arith.cmpi eq, %arg2, %c0_i32_8 : i32
    %10 = arith.extui %9 : i1 to i32
    %c0_i32_9 = arith.constant 0 : i32
    %11 = arith.cmpi ne, %10, %c0_i32_9 : i32
    scf.if %11 {
      %c0_10 = arith.constant 0 : index
      %c0_11 = arith.constant 0 : index
      %12 = vector.load %arg7[%c0_10, %c0_11] : memref<16x32xf32, #tpu.memory_space<vmem>>, vector<16x32xf32>
      %c0_12 = arith.constant 0 : index
      %c0_13 = arith.constant 0 : index
      %13 = vector.load %arg5[%c0_12, %c0_13] : memref<1x32xf32, #tpu.memory_space<vmem>>, vector<1x32xf32>
      %14 = vector.broadcast %13 : vector<1x32xf32> to vector<16x32xf32>
      %15 = arith.addf %12, %14 : vector<16x32xf32>
      %16 = math.tanh %15 : vector<16x32xf32>
      %17 = arith.truncf %16 : vector<16x32xf32> to vector<16x32xbf16>
      %c0_14 = arith.constant 0 : index
      %c0_15 = arith.constant 0 : index
      %18 = vector.load %arg6[%c0_14, %c0_15] : memref<16x32xbf16, #tpu.memory_space<vmem>>, vector<16x32xbf16>
      tpu.vector_store %arg6[%c0_14, %c0_15], %17 {strides = array<i32>} : memref<16x32xbf16, #tpu.memory_space<vmem>>, vector<16x32xbf16>,
    } else {
    }
    return
  }
  func.func @transform_0(%arg0: i32, %arg1: i32, %arg2: i32) -> (i32, i32) {
    %c0_i32 = arith.constant 0 : i32
    return %arg0, %arg2 : i32, i32
  }
  func.func @transform_1(%arg0: i32, %arg1: i32, %arg2: i32) -> (i32, i32) {
    %c0_i32 = arith.constant 0 : i32
    return %arg2, %arg1 : i32, i32
  }
  func.func @transform_2(%arg0: i32, %arg1: i32, %arg2: i32) -> (i32, i32) {
    %c0_i32 = arith.constant 0 : i32
    %c0_i32_0 = arith.constant 0 : i32
    return %c0_i32, %arg1 : i32, i32
  }
  func.func @transform_3(%arg0: i32, %arg1: i32, %arg2: i32) -> (i32, i32) {
    %c0_i32 = arith.constant 0 : i32
    return %arg0, %arg1 : i32, i32
  }
}

module attributes {stable_mosaic.version = 11 : i64} {
  func.func @_lmhead_xent_kernel(%arg0: i32, %arg1: i32, %arg2: memref<14x32xbf16, #tpu.memory_space<vmem>>, %arg3: memref<32x128xbf16, #tpu.memory_space<vmem>>, %arg4: memref<14x1xi32, #tpu.memory_space<vmem>>, %arg5: memref<14x1xf32, #tpu.memory_space<vmem>>, %arg6: memref<14x1xf32, #tpu.memory_space<vmem>>, %arg7: memref<14x1xf32, #tpu.memory_space<vmem>>, %arg8: memref<14x1xf32, #tpu.memory_space<vmem>>) attributes {dimension_semantics = [#tpu.dimension_semantics<parallel>, #tpu.dimension_semantics<arbitrary>], iteration_bounds = array<i64: 1, 1>, scalar_prefetch = 0 : i64, scratch_operands = 3 : i64, tpu.core_type = #tpu.core_type<tc>, window_params = [{transform_indices = @transform_0, window_bounds = array<i64: 14, 32>}, {transform_indices = @transform_1, window_bounds = array<i64: 32, 128>}, {transform_indices = @transform_2, window_bounds = array<i64: 14, 1>}, {transform_indices = @transform_3, window_bounds = array<i64: 14, 1>}]} {
    %c0_i32 = arith.constant 0 : i32
    %0 = arith.cmpi eq, %arg1, %c0_i32 : i32
    %1 = arith.extui %0 : i1 to i32
    %c0_i32_0 = arith.constant 0 : i32
    %2 = arith.cmpi ne, %1, %c0_i32_0 : i32
    scf.if %2 {
      %cst_28 = arith.constant -1.000000e+30 : f32
      %44 = vector.broadcast %cst_28 : f32 to vector<14x1xf32>
      %c0_29 = arith.constant 0 : index
      %c0_30 = arith.constant 0 : index
      %45 = vector.load %arg6[%c0_29, %c0_30] : memref<14x1xf32, #tpu.memory_space<vmem>>, vector<14x1xf32>
      tpu.vector_store %arg6[%c0_29, %c0_30], %44 {strides = array<i32>} : memref<14x1xf32, #tpu.memory_space<vmem>>, vector<14x1xf32>,
      %cst_31 = arith.constant 0.000000e+00 : f32
      %46 = vector.broadcast %cst_31 : f32 to vector<14x1xf32>
      %c0_32 = arith.constant 0 : index
      %c0_33 = arith.constant 0 : index
      %47 = vector.load %arg7[%c0_32, %c0_33] : memref<14x1xf32, #tpu.memory_space<vmem>>, vector<14x1xf32>
      tpu.vector_store %arg7[%c0_32, %c0_33], %46 {strides = array<i32>} : memref<14x1xf32, #tpu.memory_space<vmem>>, vector<14x1xf32>,
      %cst_34 = arith.constant 0.000000e+00 : f32
      %48 = vector.broadcast %cst_34 : f32 to vector<14x1xf32>
      %c0_35 = arith.constant 0 : index
      %c0_36 = arith.constant 0 : index
      %49 = vector.load %arg8[%c0_35, %c0_36] : memref<14x1xf32, #tpu.memory_space<vmem>>, vector<14x1xf32>
      tpu.vector_store %arg8[%c0_35, %c0_36], %48 {strides = array<i32>} : memref<14x1xf32, #tpu.memory_space<vmem>>, vector<14x1xf32>,
    } else {
    }
    %c0 = arith.constant 0 : index
    %c0_1 = arith.constant 0 : index
    %3 = vector.load %arg2[%c0, %c0_1] : memref<14x32xbf16, #tpu.memory_space<vmem>>, vector<14x32xbf16>
    %c0_2 = arith.constant 0 : index
    %c0_3 = arith.constant 0 : index
    %4 = vector.load %arg3[%c0_2, %c0_3] : memref<32x128xbf16, #tpu.memory_space<vmem>>, vector<32x128xbf16>
    %cst = arith.constant dense<0.000000e+00> : vector<14x128xf32>
    %5 = tpu.matmul %3, %4, %cst {dimension_numbers = #tpu.dot_dimension_numbers<[1], [0], [0], [1], [0, 0, 1, 1], [], []>} : vector<14x32xbf16>, vector<32x128xbf16>, vector<14x128xf32> -> vector<14x128xf32>
    %6 = tpu.iota {dimensions = array<i32: 1>} : vector<14x128xi32>
    %c128_i32 = arith.constant 128 : i32
    %7 = arith.muli %arg1, %c128_i32 : i32
    %8 = vector.broadcast %7 : i32 to vector<14x128xi32>
    %9 = arith.addi %6, %8 : vector<14x128xi32>
    %c128_i32_4 = arith.constant 128 : i32
    %10 = vector.broadcast %c128_i32_4 : i32 to vector<14x128xi32>
    %11 = arith.cmpi slt, %9, %10 : vector<14x128xi32>
    %cst_5 = arith.constant -1.000000e+30 : f32
    %12 = vector.broadcast %cst_5 : f32 to vector<14x128xf32>
    %13 = arith.select %11, %5, %12 : vector<14x128xi1>, vector<14x128xf32>
    %c0_6 = arith.constant 0 : index
    %c0_7 = arith.constant 0 : index
    %14 = vector.load %arg4[%c0_6, %c0_7] : memref<14x1xi32, #tpu.memory_space<vmem>>, vector<14x1xi32>
    %c0_8 = arith.constant 0 : index
    %c0_9 = arith.constant 0 : index
    %15 = vector.load %arg8[%c0_8, %c0_9] : memref<14x1xf32, #tpu.memory_space<vmem>>, vector<14x1xf32>
    %16 = vector.broadcast %14 : vector<14x1xi32> to vector<14x128xi32>
    %17 = arith.cmpi eq, %9, %16 : vector<14x128xi32>
    %cst_10 = arith.constant 0.000000e+00 : f32
    %18 = vector.broadcast %cst_10 : f32 to vector<14x128xf32>
    %19 = arith.select %17, %13, %18 : vector<14x128xi1>, vector<14x128xf32>
    %cst_11 = arith.constant dense<0.000000e+00> : vector<14xf32>
    %20 = vector.multi_reduction <add>, %19, %cst_11 [1] : vector<14x128xf32> to vector<14xf32>
    %21 = vector.shape_cast %20 : vector<14xf32> to vector<14x1xf32>
    %22 = arith.addf %15, %21 : vector<14x1xf32>
    %c0_12 = arith.constant 0 : index
    %c0_13 = arith.constant 0 : index
    %23 = vector.load %arg8[%c0_12, %c0_13] : memref<14x1xf32, #tpu.memory_space<vmem>>, vector<14x1xf32>
    tpu.vector_store %arg8[%c0_12, %c0_13], %22 {strides = array<i32>} : memref<14x1xf32, #tpu.memory_space<vmem>>, vector<14x1xf32>,
    %c0_14 = arith.constant 0 : index
    %c0_15 = arith.constant 0 : index
    %24 = vector.load %arg6[%c0_14, %c0_15] : memref<14x1xf32, #tpu.memory_space<vmem>>, vector<14x1xf32>
    %cst_16 = arith.constant dense<0xFF800000> : vector<14xf32>
    %25 = vector.multi_reduction <maximumf>, %13, %cst_16 [1] : vector<14x128xf32> to vector<14xf32>
    %26 = vector.shape_cast %25 : vector<14xf32> to vector<14x1xf32>
    %27 = arith.maximumf %24, %26 : vector<14x1xf32>
    %c0_17 = arith.constant 0 : index
    %c0_18 = arith.constant 0 : index
    %28 = vector.load %arg7[%c0_17, %c0_18] : memref<14x1xf32, #tpu.memory_space<vmem>>, vector<14x1xf32>
    %c0_19 = arith.constant 0 : index
    %c0_20 = arith.constant 0 : index
    %29 = vector.load %arg6[%c0_19, %c0_20] : memref<14x1xf32, #tpu.memory_space<vmem>>, vector<14x1xf32>
    %30 = arith.subf %29, %27 : vector<14x1xf32>
    %31 = math.exp %30 : vector<14x1xf32>
    %32 = arith.mulf %28, %31 : vector<14x1xf32>
    %33 = vector.broadcast %27 : vector<14x1xf32> to vector<14x128xf32>
    %34 = arith.subf %13, %33 : vector<14x128xf32>
    %35 = math.exp %34 : vector<14x128xf32>
    %cst_21 = arith.constant dense<0.000000e+00> : vector<14xf32>
    %36 = vector.multi_reduction <add>, %35, %cst_21 [1] : vector<14x128xf32> to vector<14xf32>
    %37 = vector.shape_cast %36 : vector<14xf32> to vector<14x1xf32>
    %38 = arith.addf %32, %37 : vector<14x1xf32>
    %c0_22 = arith.constant 0 : index
    %c0_23 = arith.constant 0 : index
    %39 = vector.load %arg7[%c0_22, %c0_23] : memref<14x1xf32, #tpu.memory_space<vmem>>, vector<14x1xf32>
    tpu.vector_store %arg7[%c0_22, %c0_23], %38 {strides = array<i32>} : memref<14x1xf32, #tpu.memory_space<vmem>>, vector<14x1xf32>,
    %c0_24 = arith.constant 0 : index
    %c0_25 = arith.constant 0 : index
    %40 = vector.load %arg6[%c0_24, %c0_25] : memref<14x1xf32, #tpu.memory_space<vmem>>, vector<14x1xf32>
    tpu.vector_store %arg6[%c0_24, %c0_25], %27 {strides = array<i32>} : memref<14x1xf32, #tpu.memory_space<vmem>>, vector<14x1xf32>,
    %c0_i32_26 = arith.constant 0 : i32
    %41 = arith.cmpi eq, %arg1, %c0_i32_26 : i32
    %42 = arith.extui %41 : i1 to i32
    %c0_i32_27 = arith.constant 0 : i32
    %43 = arith.cmpi ne, %42, %c0_i32_27 : i32
    scf.if %43 {
      %c0_28 = arith.constant 0 : index
      %c0_29 = arith.constant 0 : index
      %44 = vector.load %arg6[%c0_28, %c0_29] : memref<14x1xf32, #tpu.memory_space<vmem>>, vector<14x1xf32>
      %c0_30 = arith.constant 0 : index
      %c0_31 = arith.constant 0 : index
      %45 = vector.load %arg7[%c0_30, %c0_31] : memref<14x1xf32, #tpu.memory_space<vmem>>, vector<14x1xf32>
      %46 = math.log %45 : vector<14x1xf32>
      %47 = arith.addf %44, %46 : vector<14x1xf32>
      %c0_32 = arith.constant 0 : index
      %c0_33 = arith.constant 0 : index
      %48 = vector.load %arg8[%c0_32, %c0_33] : memref<14x1xf32, #tpu.memory_space<vmem>>, vector<14x1xf32>
      %49 = arith.subf %47, %48 : vector<14x1xf32>
      %c0_34 = arith.constant 0 : index
      %c0_35 = arith.constant 0 : index
      %50 = vector.load %arg5[%c0_34, %c0_35] : memref<14x1xf32, #tpu.memory_space<vmem>>, vector<14x1xf32>
      tpu.vector_store %arg5[%c0_34, %c0_35], %49 {strides = array<i32>} : memref<14x1xf32, #tpu.memory_space<vmem>>, vector<14x1xf32>,
    } else {
    }
    return
  }
  func.func @transform_0(%arg0: i32, %arg1: i32) -> (i32, i32) {
    %c0_i32 = arith.constant 0 : i32
    %c0_i32_0 = arith.constant 0 : i32
    return %arg0, %c0_i32 : i32, i32
  }
  func.func @transform_1(%arg0: i32, %arg1: i32) -> (i32, i32) {
    %c0_i32 = arith.constant 0 : i32
    %c0_i32_0 = arith.constant 0 : i32
    return %c0_i32, %arg1 : i32, i32
  }
  func.func @transform_2(%arg0: i32, %arg1: i32) -> (i32, i32) {
    %c0_i32 = arith.constant 0 : i32
    %c0_i32_0 = arith.constant 0 : i32
    return %arg0, %c0_i32 : i32, i32
  }
  func.func @transform_3(%arg0: i32, %arg1: i32) -> (i32, i32) {
    %c0_i32 = arith.constant 0 : i32
    %c0_i32_0 = arith.constant 0 : i32
    return %arg0, %c0_i32 : i32, i32
  }
}

</mosaic_0001>

<llo_original>
// kernel: seq2seq_forward.14
$region0: #{seq2seq_forward.14}
  #allocation0 [shape = 'u32[]', space=smem, size = 0x4, offset = 0x4, fixed_abs, tag = 'smem constant byte address 0x4 - core index']
  #allocation1 [shape = 'u32[72,128]{1,0:T(1,128)}', space=vmem, size = 0x9000, scoped, tag = 'internal scratch']
  #allocation2 [shape = 'f32[16,96]{1,0:T(8,128)}', space=vmem, size = 0x2000, scoped, tag = 'scratch operand']
  %s0 = inlined_call_operand.vmem [shape: bf16[16,32], index: 0, kind: input, shape index: {}]
  %s1 = inlined_call_operand.vmem [shape: bf16[32,96], index: 1, kind: input, shape index: {}]
  %s2 = inlined_call_operand.vmem [shape: f32[1,96], index: 2, kind: input, shape index: {}]
  %s3 = inlined_call_operand.vmem [shape: bf16[16,96], index: 3, kind: output, shape index: {}]
  %s4 = sld [smem:[#allocation0]]
  $region30: #{seq2seq_forward.14} parent=0
    _
  %s6 = ssub.s32 1, %s4
  %s7 = scalar_select 0, %s6, %s4
  // Predicated region
  $region2: #{seq2seq_forward.14} parent=0 // pred_check
    _
  $region3: #{seq2seq_forward.14} parent=0 // pred_check_branch
    %9 = sbr.rel (0) target = $region5
  $region4: #{seq2seq_forward.14} parent=0 // pred_region
    _
  $region5: #{seq2seq_forward.14} parent=0 // pred_fallthru
    _
  // Predicated region
  $region6: #{seq2seq_forward.14} parent=0 // pred_check
    _
  $region7: #{seq2seq_forward.14} parent=0 // pred_check_branch
    %11 = sbr.rel (0) target = $region9
  $region8: #{seq2seq_forward.14} parent=0 // pred_region
    _
  $region9: #{seq2seq_forward.14} parent=0 // pred_fallthru
    _
  // Predicated region
  $region10: #{seq2seq_forward.14} parent=0 // pred_check
    _
  $region11: #{seq2seq_forward.14} parent=0 // pred_check_branch
    %13 = sbr.rel (0) target = $region13
  $region12: #{seq2seq_forward.14} parent=0 // pred_region
    _
  $region13: #{seq2seq_forward.14} parent=0 // pred_fallthru
    _
  %p15 = scmp.eq.s32.totalorder 0, 0
  // Predicated region
  $region14: #{seq2seq_forward.14} parent=0 // pred_check
    %p16 = pneg %p15
  $region15: #{seq2seq_forward.14} parent=0 // pred_check_branch
    %18 = sbr.rel (%p16) target = $region17
  $region16: #{seq2seq_forward.14} parent=0 // pred_region
    %vm19 = vcmask 785408
    %20 = vst.msk [vmem:[#allocation2] sm:$0xff] %vm19, 0.0
    %21 = vst.msk [vmem:[#allocation2 + $0x8] sm:$0xff] %vm19, 0.0
  $region17: #{seq2seq_forward.14} parent=0 // pred_fallthru
    _
  %v22 = vld [vmem:[#allocation2] sm:$0xff]
  %v23 = vld [vmem:[#allocation2 + $0x8] sm:$0xff]
  %v24 = vld [vmem:[%s0] sm:$0xf]
  %v25 = vld [vmem:[%s0 + $0x4] sm:$0xf]
  %v26 = vld [vmem:[%s1] sm:$0xf]
  %v27 = vld [vmem:[%s1 + $0x4] sm:$0xf]
  %v28 = vld [vmem:[%s1 + $0x8] sm:$0xf]
  %v29 = vld [vmem:[%s1 + $0xc] sm:$0xf]
  %v32 = vunpack.c.l.b16 %v24
  %v33 = vunpack.c.l.b16 %v25
  %v34 = vpack.c.b16 %v33, %v32
  %v39 = vunpack.c.l.b16 %v26
  %v40 = vunpack.c.l.b16 %v27
  %v41 = vunpack.c.l.b16 %v28
  %v42 = vunpack.c.l.b16 %v29
  %v43 = vpack.c.b16 %v40, %v39
  %v44 = vpack.c.b16 %v42, %v41
  %vm47 = vcmask 261120
  %v49 = vsel %vm47, %v34, 0
  %51 = vmatpush.bf16.msra.mxu0 0
  %52 = vmatpush.bf16.msra.mxu0 0
  %53 = vmatpush.bf16.msra.mxu0 0
  %54 = vmatpush.bf16.msra.mxu0 0
  %55 = vmatpush.bf16.msra.mxu0 0
  %56 = vmatpush.bf16.msra.mxu0 0
  %57 = vmatpush.bf16.msra.mxu0 %v44
  %58 = vmatpush.bf16.msra.mxu0 %v43
  %59 = vmatmul.bf16.gmra.mxu0 %v49
  %v60 = vpop.f32.mrf.mxu0
  %v61 = vadd.f32 0.0, %v60
  %v62 = vpop.f32.mrf.mxu0
  %v63 = vadd.f32 0.0, %v62
  %64 = vdwg.mxu0
  %v65 = vadd.f32 %v22, %v61
  %v66 = vadd.f32 %v23, %v63
  %vm67 = vcmask 785408
  %68 = vst.msk [vmem:[#allocation2] sm:$0xff] %vm67, %v65
  %69 = vst.msk [vmem:[#allocation2 + $0x8] sm:$0xff] %vm67, %v66
  // Predicated region
  $region18: #{seq2seq_forward.14} parent=0 // pred_check
    %p70 = pneg %p15
  $region19: #{seq2seq_forward.14} parent=0 // pred_check_branch
    %72 = sbr.rel (%p70) target = $region21
  $region20: #{seq2seq_forward.14} parent=0 // pred_region
    %v73 = vld [vmem:[#allocation2] sm:$0xff]
    %v74 = vld [vmem:[#allocation2 + $0x8] sm:$0xff]
    %v75 = vld [vmem:[%s2] sm:$0x1]
    %v77 = vperm.slane %v75, 0
    %v79 = vadd.f32 %v73, %v77
    %v80 = vadd.f32 %v74, %v77
    %v81 = vpack.c.bf16 %v79, %v79
    %v82 = vpack.c.bf16 %v80, %v80
    %vm83 = vcmask 781312
    %84 = vst.msk [vmem:[%s3] sm:$0xf] %vm83, %v81
    %85 = vst.msk [vmem:[%s3 + $0x4] sm:$0xf] %vm83, %v82
  $region21: #{seq2seq_forward.14} parent=0 // pred_fallthru
    _
  // Predicated region
  $region22: #{seq2seq_forward.14} parent=0 // pred_check
    _
  $region23: #{seq2seq_forward.14} parent=0 // pred_check_branch
    %87 = sbr.rel (0) target = $region25
  $region24: #{seq2seq_forward.14} parent=0 // pred_region
    _
  $region25: #{seq2seq_forward.14} parent=0 // pred_fallthru
    _
  // Predicated region
  $region26: #{seq2seq_forward.14} parent=0 // pred_check
    _
  $region27: #{seq2seq_forward.14} parent=0 // pred_check_branch
    %89 = sbr.rel (0) target = $region29
  $region28: #{seq2seq_forward.14} parent=0 // pred_region
    _
  $region29: #{seq2seq_forward.14} parent=0 // pred_fallthru
    _

// kernel: seq2seq_forward.16
$region0: #{seq2seq_forward.16}
  #allocation0 [shape = 'u32[]', space=smem, size = 0x4, offset = 0x4, fixed_abs, tag = 'smem constant byte address 0x4 - core index']
  #allocation1 [shape = 'u32[72,128]{1,0:T(1,128)}', space=vmem, size = 0x9000, scoped, tag = 'internal scratch']
  #allocation2 [shape = 'f32[16,32]{1,0:T(8,128)}', space=vmem, size = 0x2000, scoped, tag = 'scratch operand']
  %s0 = inlined_call_operand.vmem [shape: bf16[16,32], index: 0, kind: input, shape index: {}]
  %s1 = inlined_call_operand.vmem [shape: bf16[32,32], index: 1, kind: input, shape index: {}]
  %s2 = inlined_call_operand.vmem [shape: f32[1,32], index: 2, kind: input, shape index: {}]
  %s3 = inlined_call_operand.vmem [shape: bf16[16,32], index: 3, kind: input, shape index: {}]
  %s4 = inlined_call_operand.vmem [shape: f32[1,32], index: 4, kind: input, shape index: {}]
  %s5 = inlined_call_operand.vmem [shape: f32[1,32], index: 5, kind: input, shape index: {}]
  %s6 = inlined_call_operand.vmem [shape: bf16[16,32], index: 6, kind: output, shape index: {}]
  %s7 = sld [smem:[#allocation0]]
  $region42: #{seq2seq_forward.16} parent=0
    _
  %s9 = ssub.s32 1, %s7
  %s10 = scalar_select 0, %s9, %s7
  // Predicated region
  $region2: #{seq2seq_forward.16} parent=0 // pred_check
    _
  $region3: #{seq2seq_forward.16} parent=0 // pred_check_branch
    %12 = sbr.rel (0) target = $region5
  $region4: #{seq2seq_forward.16} parent=0 // pred_region
    _
  $region5: #{seq2seq_forward.16} parent=0 // pred_fallthru
    _
  // Predicated region
  $region6: #{seq2seq_forward.16} parent=0 // pred_check
    _
  $region7: #{seq2seq_forward.16} parent=0 // pred_check_branch
    %14 = sbr.rel (0) target = $region9
  $region8: #{seq2seq_forward.16} parent=0 // pred_region
    _
  $region9: #{seq2seq_forward.16} parent=0 // pred_fallthru
    _
  // Predicated region
  $region10: #{seq2seq_forward.16} parent=0 // pred_check
    _
  $region11: #{seq2seq_forward.16} parent=0 // pred_check_branch
    %16 = sbr.rel (0) target = $region13
  $region12: #{seq2seq_forward.16} parent=0 // pred_region
    _
  $region13: #{seq2seq_forward.16} parent=0 // pred_fallthru
    _
  // Predicated region
  $region14: #{seq2seq_forward.16} parent=0 // pred_check
    _
  $region15: #{seq2seq_forward.16} parent=0 // pred_check_branch
    %18 = sbr.rel (0) target = $region17
  $region16: #{seq2seq_forward.16} parent=0 // pred_region
    _
  $region17: #{seq2seq_forward.16} parent=0 // pred_fallthru
    _
  // Predicated region
  $region18: #{seq2seq_forward.16} parent=0 // pred_check
    _
  $region19: #{seq2seq_forward.16} parent=0 // pred_check_branch
    %20 = sbr.rel (0) target = $region21
  $region20: #{seq2seq_forward.16} parent=0 // pred_region
    _
  $region21: #{seq2seq_forward.16} parent=0 // pred_fallthru
    _
  // Predicated region
  $region22: #{seq2seq_forward.16} parent=0 // pred_check
    _
  $region23: #{seq2seq_forward.16} parent=0 // pred_check_branch
    %22 = sbr.rel (0) target = $region25
  $region24: #{seq2seq_forward.16} parent=0 // pred_region
    _
  $region25: #{seq2seq_forward.16} parent=0 // pred_fallthru
    _
  %p24 = scmp.eq.s32.totalorder 0, 0
  // Predicated region
  $region26: #{seq2seq_forward.16} parent=0 // pred_check
    %p25 = pneg %p24
  $region27: #{seq2seq_forward.16} parent=0 // pred_check_branch
    %27 = sbr.rel (%p25) target = $region29
  $region28: #{seq2seq_forward.16} parent=0 // pred_region
    %vm28 = vcmask 261120
    %29 = vst.msk [vmem:[#allocation2] sm:$0xff] %vm28, 0.0
    %30 = vst.msk [vmem:[#allocation2 + $0x8] sm:$0xff] %vm28, 0.0
  $region29: #{seq2seq_forward.16} parent=0 // pred_fallthru
    _
  %v31 = vld [vmem:[#allocation2] sm:$0xff]
  %v32 = vld [vmem:[#allocation2 + $0x8] sm:$0xff]
  %v33 = vld [vmem:[%s0] sm:$0xf]
  %v34 = vld [vmem:[%s0 + $0x4] sm:$0xf]
  %v35 = vld [vmem:[%s1] sm:$0xf]
  %v36 = vld [vmem:[%s1 + $0x4] sm:$0xf]
  %v37 = vld [vmem:[%s1 + $0x8] sm:$0xf]
  %v38 = vld [vmem:[%s1 + $0xc] sm:$0xf]
  %v41 = vunpack.c.l.b16 %v33
  %v42 = vunpack.c.l.b16 %v34
  %v43 = vpack.c.b16 %v42, %v41
  %v48 = vunpack.c.l.b16 %v35
  %v49 = vunpack.c.l.b16 %v36
  %v50 = vunpack.c.l.b16 %v37
  %v51 = vunpack.c.l.b16 %v38
  %v52 = vpack.c.b16 %v49, %v48
  %v53 = vpack.c.b16 %v51, %v50
  %vm56 = vcmask 261120
  %v58 = vsel %vm56, %v43, 0
  %60 = vmatpush.bf16.msra.mxu0 0
  %61 = vmatpush.bf16.msra.mxu0 0
  %62 = vmatpush.bf16.msra.mxu0 0
  %63 = vmatpush.bf16.msra.mxu0 0
  %64 = vmatpush.bf16.msra.mxu0 0
  %65 = vmatpush.bf16.msra.mxu0 0
  %66 = vmatpush.bf16.msra.mxu0 %v53
  %67 = vmatpush.bf16.msra.mxu0 %v52
  %68 = vmatmul.bf16.gmra.mxu0 %v58
  %v69 = vpop.f32.mrf.mxu0
  %v70 = vadd.f32 0.0, %v69
  %v71 = vpop.f32.mrf.mxu0
  %v72 = vadd.f32 0.0, %v71
  %73 = vdwg.mxu0
  %v74 = vadd.f32 %v31, %v70
  %v75 = vadd.f32 %v32, %v72
  %76 = vst.msk [vmem:[#allocation2] sm:$0xff] %vm56, %v74
  %77 = vst.msk [vmem:[#allocation2 + $0x8] sm:$0xff] %vm56, %v75
  // Predicated region
  $region30: #{seq2seq_forward.16} parent=0 // pred_check
    %p78 = pneg %p24
  $region31: #{seq2seq_forward.16} parent=0 // pred_check_branch
    %80 = sbr.rel (%p78) target = $region33
  $region32: #{seq2seq_forward.16} parent=0 // pred_region
    %v81 = vld [vmem:[#allocation2] sm:$0xff]
    %v82 = vld [vmem:[#allocation2 + $0x8] sm:$0xff]
    %v83 = vld [vmem:[%s2] sm:$0x1]
    %v85 = vperm.slane %v83, 0
    %v87 = vadd.f32 %v81, %v85
    %v88 = vadd.f32 %v82, %v85
    %v89 = vld [vmem:[%s3] sm:$0xf]
    %v90 = vld [vmem:[%s3 + $0x4] sm:$0xf]
    %v91 = vunpack.c.l.bf16 %v89
    %v92 = vunpack.c.l.bf16 %v90
    %v93 = vadd.f32 %v87, %v91
    %v94 = vadd.f32 %v88, %v92
    %v95 = vsel %vm56, %v93, 0.0
    %96 = vadd.xlane.f32.xlu0 %v95
    %v97 = vpop.xlane.xlu0 %96
    %v98 = vsel %vm56, %v94, 0.0
    %99 = vadd.xlane.f32.xlu0 %v98
    %v100 = vpop.xlane.xlu0 %99
    %v101 = vrcp.pop 32.0
    %v102 = vmul.f32 32.0, %v101
    %v103 = vsub.f32 1.0, %v102
    %v104 = vmul.f32 %v101, %v103
    %v105 = vadd.f32 %v101, %v104
    %vm106 = vweird.f32 %v101
    %v107 = vsel %vm106, %v101, %v105
    %v108 = vmul.f32 %v97, %v107
    %v109 = vmul.f32 %v100, %v107
    %v110 = vsub.f32 %v93, %v108
    %v111 = vsub.f32 %v94, %v109
    %v112 = vmul.f32 %v110, %v110
    %v113 = vmul.f32 %v111, %v111
    %v114 = vsel %vm56, %v112, 0.0
    %115 = vadd.xlane.f32.xlu0 %v114
    %v116 = vpop.xlane.xlu0 %115
    %v117 = vsel %vm56, %v113, 0.0
    %118 = vadd.xlane.f32.xlu0 %v117
    %v119 = vpop.xlane.xlu0 %118
    %v120 = vmul.f32 %v116, %v107
    %v121 = vmul.f32 %v119, %v107
    %v122 = vadd.f32 %v120, 1e-05
    %v123 = vadd.f32 %v121, 1e-05
    %v124 = vrsqrt.pop %v122
    %v125 = vmul.f32 %v124, %v122
    %v126 = vmul.f32 %v125, %v124
    %v127 = vmul.f32 0.5, %v126
    %v128 = vsub.f32 1.5, %v127
    %v129 = vmul.f32 %v124, %v128
    %vm130 = vweird.f32 %v122
    %vm131 = vweird.f32 %v124
    %vm132 = vmor %vm130, %vm131
    %v133 = vsel %vm132, %v124, %v129
    %v134 = vrsqrt.pop %v123
    %v135 = vmul.f32 %v134, %v123
    %v136 = vmul.f32 %v135, %v134
    %v137 = vmul.f32 0.5, %v136
    %v138 = vsub.f32 1.5, %v137
    %v139 = vmul.f32 %v134, %v138
    %vm140 = vweird.f32 %v123
    %vm141 = vweird.f32 %v134
    %vm142 = vmor %vm140, %vm141
    %v143 = vsel %vm142, %v134, %v139
    %v144 = vmul.f32 %v110, %v133
    %v145 = vmul.f32 %v111, %v143
    %v146 = vld [vmem:[%s4] sm:$0x1]
    %v148 = vperm.slane %v146, 0
    %v150 = vmul.f32 %v144, %v148
    %v151 = vmul.f32 %v145, %v148
    %v152 = vld [vmem:[%s5] sm:$0x1]
    %v154 = vperm.slane %v152, 0
    %v156 = vadd.f32 %v150, %v154
    %v157 = vadd.f32 %v151, %v154
    %v158 = vpack.c.bf16 %v156, %v156
    %v159 = vpack.c.bf16 %v157, %v157
    %vm160 = vcmask 257024
    %161 = vst.msk [vmem:[%s6] sm:$0xf] %vm160, %v158
    %162 = vst.msk [vmem:[%s6 + $0x4] sm:$0xf] %vm160, %v159
  $region33: #{seq2seq_forward.16} parent=0 // pred_fallthru
    _
  // Predicated region
  $region34: #{seq2seq_forward.16} parent=0 // pred_check
    _
  $region35: #{seq2seq_forward.16} parent=0 // pred_check_branch
    %164 = sbr.rel (0) target = $region37
  $region36: #{seq2seq_forward.16} parent=0 // pred_region
    _
  $region37: #{seq2seq_forward.16} parent=0 // pred_fallthru
    _
  // Predicated region
  $region38: #{seq2seq_forward.16} parent=0 // pred_check
    _
  $region39: #{seq2seq_forward.16} parent=0 // pred_check_branch
    %166 = sbr.rel (0) target = $region41
  $region40: #{seq2seq_forward.16} parent=0 // pred_region
    _
  $region41: #{seq2seq_forward.16} parent=0 // pred_fallthru
    _

// kernel: seq2seq_forward.21
$region0: #{seq2seq_forward.21}
  #allocation0 [shape = 'u32[]', space=smem, size = 0x4, offset = 0x4, fixed_abs, tag = 'smem constant byte address 0x4 - core index']
  #allocation1 [shape = 'u32[72,128]{1,0:T(1,128)}', space=vmem, size = 0x9000, scoped, tag = 'internal scratch']
  #allocation2 [shape = 'f32[16,64]{1,0:T(8,128)}', space=vmem, size = 0x2000, scoped, tag = 'scratch operand']
  %s0 = inlined_call_operand.vmem [shape: bf16[16,32], index: 0, kind: input, shape index: {}]
  %s1 = inlined_call_operand.vmem [shape: bf16[32,64], index: 1, kind: input, shape index: {}]
  %s2 = inlined_call_operand.vmem [shape: f32[1,64], index: 2, kind: input, shape index: {}]
  %s3 = inlined_call_operand.vmem [shape: bf16[16,64], index: 3, kind: output, shape index: {}]
  %s4 = sld [smem:[#allocation0]]
  $region30: #{seq2seq_forward.21} parent=0
    _
  %s6 = ssub.s32 1, %s4
  %s7 = scalar_select 0, %s6, %s4
  // Predicated region
  $region2: #{seq2seq_forward.21} parent=0 // pred_check
    _
  $region3: #{seq2seq_forward.21} parent=0 // pred_check_branch
    %9 = sbr.rel (0) target = $region5
  $region4: #{seq2seq_forward.21} parent=0 // pred_region
    _
  $region5: #{seq2seq_forward.21} parent=0 // pred_fallthru
    _
  // Predicated region
  $region6: #{seq2seq_forward.21} parent=0 // pred_check
    _
  $region7: #{seq2seq_forward.21} parent=0 // pred_check_branch
    %11 = sbr.rel (0) target = $region9
  $region8: #{seq2seq_forward.21} parent=0 // pred_region
    _
  $region9: #{seq2seq_forward.21} parent=0 // pred_fallthru
    _
  // Predicated region
  $region10: #{seq2seq_forward.21} parent=0 // pred_check
    _
  $region11: #{seq2seq_forward.21} parent=0 // pred_check_branch
    %13 = sbr.rel (0) target = $region13
  $region12: #{seq2seq_forward.21} parent=0 // pred_region
    _
  $region13: #{seq2seq_forward.21} parent=0 // pred_fallthru
    _
  %p15 = scmp.eq.s32.totalorder 0, 0
  // Predicated region
  $region14: #{seq2seq_forward.21} parent=0 // pred_check
    %p16 = pneg %p15
  $region15: #{seq2seq_forward.21} parent=0 // pred_check_branch
    %18 = sbr.rel (%p16) target = $region17
  $region16: #{seq2seq_forward.21} parent=0 // pred_region
    %vm19 = vcmask 523264
    %20 = vst.msk [vmem:[#allocation2] sm:$0xff] %vm19, 0.0
    %21 = vst.msk [vmem:[#allocation2 + $0x8] sm:$0xff] %vm19, 0.0
  $region17: #{seq2seq_forward.21} parent=0 // pred_fallthru
    _
  %v22 = vld [vmem:[#allocation2] sm:$0xff]
  %v23 = vld [vmem:[#allocation2 + $0x8] sm:$0xff]
  %v24 = vld [vmem:[%s0] sm:$0xf]
  %v25 = vld [vmem:[%s0 + $0x4] sm:$0xf]
  %v26 = vld [vmem:[%s1] sm:$0xf]
  %v27 = vld [vmem:[%s1 + $0x4] sm:$0xf]
  %v28 = vld [vmem:[%s1 + $0x8] sm:$0xf]
  %v29 = vld [vmem:[%s1 + $0xc] sm:$0xf]
  %v32 = vunpack.c.l.b16 %v24
  %v33 = vunpack.c.l.b16 %v25
  %v34 = vpack.c.b16 %v33, %v32
  %v39 = vunpack.c.l.b16 %v26
  %v40 = vunpack.c.l.b16 %v27
  %v41 = vunpack.c.l.b16 %v28
  %v42 = vunpack.c.l.b16 %v29
  %v43 = vpack.c.b16 %v40, %v39
  %v44 = vpack.c.b16 %v42, %v41
  %vm47 = vcmask 261120
  %v49 = vsel %vm47, %v34, 0
  %51 = vmatpush.bf16.msra.mxu0 0
  %52 = vmatpush.bf16.msra.mxu0 0
  %53 = vmatpush.bf16.msra.mxu0 0
  %54 = vmatpush.bf16.msra.mxu0 0
  %55 = vmatpush.bf16.msra.mxu0 0
  %56 = vmatpush.bf16.msra.mxu0 0
  %57 = vmatpush.bf16.msra.mxu0 %v44
  %58 = vmatpush.bf16.msra.mxu0 %v43
  %59 = vmatmul.bf16.gmra.mxu0 %v49
  %v60 = vpop.f32.mrf.mxu0
  %v61 = vadd.f32 0.0, %v60
  %v62 = vpop.f32.mrf.mxu0
  %v63 = vadd.f32 0.0, %v62
  %64 = vdwg.mxu0
  %v65 = vadd.f32 %v22, %v61
  %v66 = vadd.f32 %v23, %v63
  %vm67 = vcmask 523264
  %68 = vst.msk [vmem:[#allocation2] sm:$0xff] %vm67, %v65
  %69 = vst.msk [vmem:[#allocation2 + $0x8] sm:$0xff] %vm67, %v66
  // Predicated region
  $region18: #{seq2seq_forward.21} parent=0 // pred_check
    %p70 = pneg %p15
  $region19: #{seq2seq_forward.21} parent=0 // pred_check_branch
    %72 = sbr.rel (%p70) target = $region21
  $region20: #{seq2seq_forward.21} parent=0 // pred_region
    %v73 = vld [vmem:[#allocation2] sm:$0xff]
    %v74 = vld [vmem:[#allocation2 + $0x8] sm:$0xff]
    %v75 = vld [vmem:[%s2] sm:$0x1]
    %v77 = vperm.slane %v75, 0
    %v79 = vadd.f32 %v73, %v77
    %v80 = vadd.f32 %v74, %v77
    %v81 = vpack.c.bf16 %v79, %v79
    %v82 = vpack.c.bf16 %v80, %v80
    %vm83 = vcmask 519168
    %84 = vst.msk [vmem:[%s3] sm:$0xf] %vm83, %v81
    %85 = vst.msk [vmem:[%s3 + $0x4] sm:$0xf] %vm83, %v82
  $region21: #{seq2seq_forward.21} parent=0 // pred_fallthru
    _
  // Predicated region
  $region22: #{seq2seq_forward.21} parent=0 // pred_check
    _
  $region23: #{seq2seq_forward.21} parent=0 // pred_check_branch
    %87 = sbr.rel (0) target = $region25
  $region24: #{seq2seq_forward.21} parent=0 // pred_region
    _
  $region25: #{seq2seq_forward.21} parent=0 // pred_fallthru
    _
  // Predicated region
  $region26: #{seq2seq_forward.21} parent=0 // pred_check
    _
  $region27: #{seq2seq_forward.21} parent=0 // pred_check_branch
    %89 = sbr.rel (0) target = $region29
  $region28: #{seq2seq_forward.21} parent=0 // pred_region
    _
  $region29: #{seq2seq_forward.21} parent=0 // pred_fallthru
    _

// kernel: seq2seq_forward.15
$region0: #{seq2seq_forward.15}
  #allocation0 [shape = 'u32[]', space=smem, size = 0x4, offset = 0x4, fixed_abs, tag = 'smem constant byte address 0x4 - core index']
  #allocation1 [shape = 'u32[72,128]{1,0:T(1,128)}', space=vmem, size = 0x9000, scoped, tag = 'internal scratch']
  %s0 = inlined_call_operand.vmem [shape: bf16[2,8,32], index: 0, kind: input, shape index: {}]
  %s1 = inlined_call_operand.vmem [shape: bf16[2,8,32], index: 1, kind: input, shape index: {}]
  %s2 = inlined_call_operand.vmem [shape: bf16[2,8,32], index: 2, kind: input, shape index: {}]
  %s3 = inlined_call_operand.vmem [shape: f32[2,1,8], index: 3, kind: input, shape index: {}]
  %s4 = inlined_call_operand.vmem [shape: bf16[2,8,32], index: 4, kind: output, shape index: {}]
  %s5 = sld [smem:[#allocation0]]
  $region49: #{seq2seq_forward.15} parent=0
    _
  %s7 = ssub.s32 1, %s5
  %s8 = scalar_select 0, %s7, %s5
  loop: start=0, step=1, limit=4
  $region2: #{seq2seq_forward.15} parent=0 // loop_pre_header
    _
  $region3: #{seq2seq_forward.15} parent=0 // loop_header
    %s10 = sphi 0, %s14
    %p11 = scmp.ge.s32.totalorder %s10, 4
    %s17 = sphi 0, %s29
    %s18 = sphi 0, %s25
    %s19 = sphi 0, %s17
    %s20 = sphi 0, %s18
    %s21 = sphi 0, %s19
    %s22 = sphi 0, %s20
    %s34 = sphi 0, %s36
    %s37 = sphi 0, %s34
    %s38 = sphi 0, %s37
    %s54 = sphi 0, %s38
    %s60 = sphi 0, %s62
    %s63 = sphi 0, %s60
    %s64 = sphi 0, %s63
    %s80 = sphi 0, %s64
    %s86 = sphi 0, %s88
    %s89 = sphi 0, %s86
    %s90 = sphi 0, %s89
    %s106 = sphi 0, %s90
    %s112 = sphi 0, %s114
    %s115 = sphi 0, %s112
    %s116 = sphi 0, %s115
    %s132 = sphi 0, %s116
    %s140 = sphi 0, %s142
    %s143 = sphi 0, %s140
    %s144 = sphi 0, %s143
    %s160 = sphi 0, %s144
  $region4: #{seq2seq_forward.15} parent=0 // loop_header_branch
    %13 = sbr.rel (%p11) target = $region8
  $region5: #{seq2seq_forward.15} parent=0 // loop_body
    %s15 = ssub.s32 %s10, 1
    %s16 = ssub.s32 %s10, 2
    %s23 = sadd.s32 1, %s18
    %p24 = scmp.ge.s32.totalorder %s23, 1
    %s25 = scalar_select %p24, 0, %s23
    %s26 = sadd.s32 1, %s17
    %s27 = scalar_select %p24, %s26, %s17
    %p28 = scmp.ge.s32.totalorder %s27, 2
    %s29 = scalar_select %p28, 0, %s27
    %s30 = ssub.s32 %s17, %s29
    %s31 = ssub.s32 %s18, %s25
    %s32 = sor.u32 %s30, %s31
    %p33 = scmp.eq.s32.totalorder %s32, 0
    %s35 = sadd.s32 %s34, 1
    %s36 = scalar_select %p33, %s34, %s35
    %p39 = pneg %p33
    %p40 = scmp.eq.s32.totalorder %s10, 1
    %p41 = por %p39, %p40
    %p42 = scmp.ne.s32.totalorder %s34, %s37
    %p43 = scmp.eq.s32.totalorder %s10, 0
    %p44 = por %p42, %p43
    %p45 = scmp.ne.s32.totalorder %s34, %s37
    %p46 = scmp.eq.s32.totalorder %s15, 1
    %p47 = por %p45, %p46
    %p48 = scmp.ne.s32.totalorder %s37, %s38
    %p49 = scmp.eq.s32.totalorder %s15, 0
    %p50 = por %p48, %p49
    %p51 = scmp.ne.s32.totalorder %s37, %s38
    %p52 = scmp.eq.s32.totalorder %s16, 1
    %p53 = por %p51, %p52
    %p55 = scmp.ne.s32.totalorder %s38, %s54
    %p56 = scmp.eq.s32.totalorder %s16, 0
    %p57 = por %p55, %p56
    %s58 = ssub.s32 %s17, %s29
    %p59 = scmp.eq.s32.totalorder %s58, 0
    %s61 = sadd.s32 %s60, 1
    %s62 = scalar_select %p59, %s60, %s61
    %p65 = pneg %p59
    %p66 = scmp.eq.s32.totalorder %s10, 1
    %p67 = por %p65, %p66
    %p68 = scmp.ne.s32.totalorder %s60, %s63
    %p69 = scmp.eq.s32.totalorder %s10, 0
    %p70 = por %p68, %p69
    %p71 = scmp.ne.s32.totalorder %s60, %s63
    %p72 = scmp.eq.s32.totalorder %s15, 1
    %p73 = por %p71, %p72
    %p74 = scmp.ne.s32.totalorder %s63, %s64
    %p75 = scmp.eq.s32.totalorder %s15, 0
    %p76 = por %p74, %p75
    %p77 = scmp.ne.s32.totalorder %s63, %s64
    %p78 = scmp.eq.s32.totalorder %s16, 1
    %p79 = por %p77, %p78
    %p81 = scmp.ne.s32.totalorder %s64, %s80
    %p82 = scmp.eq.s32.totalorder %s16, 0
    %p83 = por %p81, %p82
    %s84 = ssub.s32 %s17, %s29
    %p85 = scmp.eq.s32.totalorder %s84, 0
    %s87 = sadd.s32 %s86, 1
    %s88 = scalar_select %p85, %s86, %s87
    %p91 = pneg %p85
    %p92 = scmp.eq.s32.totalorder %s10, 1
    %p93 = por %p91, %p92
    %p94 = scmp.ne.s32.totalorder %s86, %s89
    %p95 = scmp.eq.s32.totalorder %s10, 0
    %p96 = por %p94, %p95
    %p97 = scmp.ne.s32.totalorder %s86, %s89
    %p98 = scmp.eq.s32.totalorder %s15, 1
    %p99 = por %p97, %p98
    %p100 = scmp.ne.s32.totalorder %s89, %s90
    %p101 = scmp.eq.s32.totalorder %s15, 0
    %p102 = por %p100, %p101
    %p103 = scmp.ne.s32.totalorder %s89, %s90
    %p104 = scmp.eq.s32.totalorder %s16, 1
    %p105 = por %p103, %p104
    %p107 = scmp.ne.s32.totalorder %s90, %s106
    %p108 = scmp.eq.s32.totalorder %s16, 0
    %p109 = por %p107, %p108
    %s110 = ssub.s32 %s17, %s29
    %p111 = scmp.eq.s32.totalorder %s110, 0
    %s113 = sadd.s32 %s112, 1
    %s114 = scalar_select %p111, %s112, %s113
    %p117 = pneg %p111
    %p118 = scmp.eq.s32.totalorder %s10, 1
    %p119 = por %p117, %p118
    %p120 = scmp.ne.s32.totalorder %s112, %s115
    %p121 = scmp.eq.s32.totalorder %s10, 0
    %p122 = por %p120, %p121
    %p123 = scmp.ne.s32.totalorder %s112, %s115
    %p124 = scmp.eq.s32.totalorder %s15, 1
    %p125 = por %p123, %p124
    %p126 = scmp.ne.s32.totalorder %s115, %s116
    %p127 = scmp.eq.s32.totalorder %s15, 0
    %p128 = por %p126, %p127
    %p129 = scmp.ne.s32.totalorder %s115, %s116
    %p130 = scmp.eq.s32.totalorder %s16, 1
    %p131 = por %p129, %p130
    %p133 = scmp.ne.s32.totalorder %s116, %s132
    %p134 = scmp.eq.s32.totalorder %s16, 0
    %p135 = por %p133, %p134
    %s136 = ssub.s32 %s17, %s29
    %s137 = ssub.s32 %s18, %s25
    %s138 = sor.u32 %s136, %s137
    %p139 = scmp.eq.s32.totalorder %s138, 0
    %s141 = sadd.s32 %s140, 1
    %s142 = scalar_select %p139, %s140, %s141
    %p145 = pneg %p139
    %p146 = scmp.eq.s32.totalorder %s10, 1
    %p147 = por %p145, %p146
    %p148 = scmp.ne.s32.totalorder %s140, %s143
    %p149 = scmp.eq.s32.totalorder %s10, 0
    %p150 = por %p148, %p149
    %p151 = scmp.ne.s32.totalorder %s140, %s143
    %p152 = scmp.eq.s32.totalorder %s15, 1
    %p153 = por %p151, %p152
    %p154 = scmp.ne.s32.totalorder %s143, %s144
    %p155 = scmp.eq.s32.totalorder %s15, 0
    %p156 = por %p154, %p155
    %p157 = scmp.ne.s32.totalorder %s143, %s144
    %p158 = scmp.eq.s32.totalorder %s16, 1
    %p159 = por %p157, %p158
    %p161 = scmp.ne.s32.totalorder %s144, %s160
    %p162 = scmp.eq.s32.totalorder %s16, 0
    %p163 = por %p161, %p162
    %p164 = scmp.le.s32.totalorder 1, %s10
    %p165 = scmp.lt.s32.totalorder %s10, 3
    %p166 = pnand %p164, %p165
    %p167 = pneg %p166
    // Predicated region
    $region9: #{seq2seq_forward.15} parent=5 // pred_check
      _
    $region10: #{seq2seq_forward.15} parent=5 // pred_check_branch
      %169 = sbr.rel (%p166) target = $region12
    $region11: #{seq2seq_forward.15} parent=5 // pred_region
      %s170 = ssub.s32 %s10, 1
    $region12: #{seq2seq_forward.15} parent=5 // pred_fallthru
      _
    %p171 = scmp.lt.s32.totalorder %s10, 2
    // Predicated region
    $region13: #{seq2seq_forward.15} parent=5 // pred_check
      %p172 = pneg %p171
    $region14: #{seq2seq_forward.15} parent=5 // pred_check_branch
      %174 = sbr.rel (%p172) target = $region16
    $region15: #{seq2seq_forward.15} parent=5 // pred_region
      // Predicated region
      $region17: #{seq2seq_forward.15} parent=15 // pred_check
        %p175 = pneg %p44
      $region18: #{seq2seq_forward.15} parent=15 // pred_check_branch
        %177 = sbr.rel (%p175) target = $region20
      $region19: #{seq2seq_forward.15} parent=15 // pred_region
        %p178 = scmp.lt.s32.totalorder %s17, 1
        %s179 = scalar_select %p178, %s17, 1
        %p180 = scmp.lt.s32.totalorder %s18, 0
        %s181 = scalar_select %p180, %s18, 0
        %s182 = sadd.s32 %s181, %s179
        %s183 = smul.addr %s182, 4
        %s184 = scalar_lea.vmem %s0, %s183
      $region20: #{seq2seq_forward.15} parent=15 // pred_fallthru
        _
      // Predicated region
      $region21: #{seq2seq_forward.15} parent=15 // pred_check
        %p185 = pneg %p70
      $region22: #{seq2seq_forward.15} parent=15 // pred_check_branch
        %187 = sbr.rel (%p185) target = $region24
      $region23: #{seq2seq_forward.15} parent=15 // pred_region
        %p188 = scmp.lt.s32.totalorder %s17, 1
        %s189 = scalar_select %p188, %s17, 1
        %s190 = smul.addr %s189, 4
        %s191 = scalar_lea.vmem %s1, %s190
      $region24: #{seq2seq_forward.15} parent=15 // pred_fallthru
        _
      // Predicated region
      $region25: #{seq2seq_forward.15} parent=15 // pred_check
        %p192 = pneg %p96
      $region26: #{seq2seq_forward.15} parent=15 // pred_check_branch
        %194 = sbr.rel (%p192) target = $region28
      $region27: #{seq2seq_forward.15} parent=15 // pred_region
        %p195 = scmp.lt.s32.totalorder %s17, 1
        %s196 = scalar_select %p195, %s17, 1
        %s197 = smul.addr %s196, 4
        %s198 = scalar_lea.vmem %s2, %s197
      $region28: #{seq2seq_forward.15} parent=15 // pred_fallthru
        _
      // Predicated region
      $region29: #{seq2seq_forward.15} parent=15 // pred_check
        %p199 = pneg %p122
      $region30: #{seq2seq_forward.15} parent=15 // pred_check_branch
        %201 = sbr.rel (%p199) target = $region32
      $region31: #{seq2seq_forward.15} parent=15 // pred_region
        %p202 = scmp.lt.s32.totalorder %s17, 1
        %s203 = scalar_select %p202, %s17, 1
        %s204 = scalar_lea.vmem %s3, %s203
      $region32: #{seq2seq_forward.15} parent=15 // pred_fallthru
        _
    $region16: #{seq2seq_forward.15} parent=5 // pred_fallthru
      _
    %p205 = scmp.le.s32.totalorder 1, %s10
    %p206 = scmp.lt.s32.totalorder %s10, 3
    %p207 = pnand %p205, %p206
    %p208 = pneg %p207
    // Predicated region
    $region33: #{seq2seq_forward.15} parent=5 // pred_check
      _
    $region34: #{seq2seq_forward.15} parent=5 // pred_check_branch
      %210 = sbr.rel (%p207) target = $region36
    $region35: #{seq2seq_forward.15} parent=5 // pred_region
      %s211 = ssub.s32 %s10, 1
      %p212 = scmp.lt.s32.totalorder %s19, 1
      %s213 = scalar_select %p212, %s19, 1
      %p214 = scmp.lt.s32.totalorder %s20, 0
      %s215 = scalar_select %p214, %s20, 0
      %s216 = sadd.s32 %s215, %s213
      %s217 = smul.addr %s216, 4
      %s218 = scalar_lea.vmem %s0, %s217
      %p219 = pneg %p50
      %p220 = pneg %p47
      %p221 = scmp.lt.s32.totalorder %s19, 1
      %s222 = scalar_select %p221, %s19, 1
      %s223 = smul.addr %s222, 4
      %s224 = scalar_lea.vmem %s1, %s223
      %p225 = pneg %p76
      %p226 = pneg %p73
      %p227 = scmp.lt.s32.totalorder %s19, 1
      %s228 = scalar_select %p227, %s19, 1
      %s229 = smul.addr %s228, 4
      %s230 = scalar_lea.vmem %s2, %s229
      %p231 = pneg %p102
      %p232 = pneg %p99
      %p233 = scmp.lt.s32.totalorder %s19, 1
      %s234 = scalar_select %p233, %s19, 1
      %s235 = scalar_lea.vmem %s3, %s234
      %p236 = pneg %p128
      %p237 = pneg %p125
      %p238 = pneg %p156
      %p239 = pneg %p153
      %p240 = scmp.lt.s32.totalorder %s19, 1
      %s241 = scalar_select %p240, %s19, 1
      %p242 = scmp.lt.s32.totalorder %s20, 0
      %s243 = scalar_select %p242, %s20, 0
      %s244 = sadd.s32 %s243, %s241
      %s245 = smul.addr %s244, 4
      %s246 = scalar_lea.vmem %s4, %s245
      %p247 = scmp.lt.s32.totalorder %s19, 1
      %s248 = scalar_select %p247, %s19, 1
      %p249 = scmp.lt.s32.totalorder %s20, 0
      %s250 = scalar_select %p249, %s20, 0
      %s251 = sadd.s32 %s250, %s248
      %s252 = smul.addr %s251, 4
      %s253 = scalar_lea.vmem %s0, %s252
      %p254 = scmp.lt.s32.totalorder %s19, 1
      %s255 = scalar_select %p254, %s19, 1
      %s256 = smul.addr %s255, 4
      %s257 = scalar_lea.vmem %s1, %s256
      %p258 = scmp.lt.s32.totalorder %s19, 1
      %s259 = scalar_select %p258, %s19, 1
      %s260 = smul.addr %s259, 4
      %s261 = scalar_lea.vmem %s2, %s260
      %p262 = scmp.lt.s32.totalorder %s19, 1
      %s263 = scalar_select %p262, %s19, 1
      %s264 = scalar_lea.vmem %s3, %s263
      %p265 = scmp.lt.s32.totalorder %s19, 1
      %s266 = scalar_select %p265, %s19, 1
      %p267 = scmp.lt.s32.totalorder %s20, 0
      %s268 = scalar_select %p267, %s20, 0
      %s269 = sadd.s32 %s268, %s266
      %s270 = smul.addr %s269, 4
      %s271 = scalar_lea.vmem %s4, %s270
      %v273 = vld [vmem:[%s253] sm:$0xf]
      %v274 = vld [vmem:[%s257] sm:$0xf]
      %v275 = vld [vmem:[%s261] sm:$0xf]
      %v276 = vld [vmem:[%s264] sm:$0x1]
      %vm277 = vcmp.gt.f32.partialorder %v276, 0.5
      %v278 = vsel %vm277, 0.0, -1e+09
      %vm279 = vcmask 64512
      %v281 = vsel %vm279, %v273, 0
      %v284 = vsel %vm279, %v274, 0
      %286 = vmatpush.bf16.xpose.msra.mxu0 0
      %287 = vmatpush.bf16.xpose.msra.mxu0 0
      %288 = vmatpush.bf16.xpose.msra.mxu0 0
      %289 = vmatpush.bf16.xpose.msra.mxu0 0
      %290 = vmatpush.bf16.xpose.msra.mxu0 0
      %291 = vmatpush.bf16.xpose.msra.mxu0 0
      %292 = vmatpush.bf16.xpose.msra.mxu0 0
      %293 = vmatpush.bf16.xpose.msra.mxu0 %v284
      %294 = vmatmul.bf16.gmra.mxu0 %v281
      %v295 = vpop.f32.mrf.mxu0
      %v296 = vadd.f32 0.0, %v295
      %v297 = vpop.f32.mrf.mxu0
      %298 = vdwg.mxu0
      %v299 = vmul.f32 %v296, 0.35355338
      %v301 = vperm.slane %v278, 0
      %v303 = vadd.f32 %v299, %v301
      %v304 = vsel %vm279, %v303, -inf
      %305 = vmax.xlane.f32.xlu0 %v304
      %v306 = vpop.xlane.xlu0 %305
      %v307 = vsub.f32 %v303, %v306
      %v308 = vmul.f32 %v307, 1.442695
      %v309 = vpow.pop %v308
      %v310 = vsel %vm279, %v309, 0.0
      %311 = vadd.xlane.f32.xlu0 %v310
      %v312 = vpop.xlane.xlu0 %311
      %v313 = vpack.c.bf16 %v309, %v309
      %v315 = vsel %vm279, %v313, 0
      %vm317 = vcmask 1043456
      %v319 = vsel %vm317, %v275, 0
      %321 = vmatpush.bf16.msra.mxu0 0
      %322 = vmatpush.bf16.msra.mxu0 0
      %323 = vmatpush.bf16.msra.mxu0 0
      %324 = vmatpush.bf16.msra.mxu0 0
      %325 = vmatpush.bf16.msra.mxu0 0
      %326 = vmatpush.bf16.msra.mxu0 0
      %327 = vmatpush.bf16.msra.mxu0 0
      %328 = vmatpush.bf16.msra.mxu0 %v319
      %329 = vmatmul.bf16.gmra.mxu0 %v315
      %v330 = vpop.f32.mrf.mxu0
      %v331 = vadd.f32 0.0, %v330
      %v332 = vpop.f32.mrf.mxu0
      %333 = vdwg.mxu0
      %v334 = vrcp.pop %v312
      %v335 = vmul.f32 %v331, %v334
      %v336 = vpack.c.bf16 %v335, %v335
      %vm337 = vcmask 60416
      %338 = vst.msk [vmem:[%s271] sm:$0xf] %vm337, %v336
      %v340 = vunpack.c.l.b16 %v273
      %v341 = vpack.c.b16 %v340, %v340
      %342 = vrot.lane.b32.xlu0 %v341, 120
      %v343 = vpop.permute.xlu0 %342
      %v345 = vunpack.c.l.b16 %v274
      %v346 = vpack.c.b16 %v345, %v345
      %347 = vrot.lane.b32.xlu0 %v346, 120
      %v348 = vpop.permute.xlu0 %347
      %v350 = vsel %vm279, %v343, 0
      %v353 = vsel %vm279, %v348, 0
      %355 = vmatpush.bf16.xpose.msra.mxu0 0
      %356 = vmatpush.bf16.xpose.msra.mxu0 0
      %357 = vmatpush.bf16.xpose.msra.mxu0 0
      %358 = vmatpush.bf16.xpose.msra.mxu0 0
      %359 = vmatpush.bf16.xpose.msra.mxu0 0
      %360 = vmatpush.bf16.xpose.msra.mxu0 0
      %361 = vmatpush.bf16.xpose.msra.mxu0 0
      %362 = vmatpush.bf16.xpose.msra.mxu0 %v353
      %363 = vmatmul.bf16.gmra.mxu0 %v350
      %v364 = vpop.f32.mrf.mxu0
      %v365 = vadd.f32 0.0, %v364
      %v366 = vpop.f32.mrf.mxu0
      %367 = vdwg.mxu0
      %v368 = vmul.f32 %v365, 0.35355338
      %v369 = vadd.f32 %v368, %v301
      %v370 = vsel %vm279, %v369, -inf
      %371 = vmax.xlane.f32.xlu0 %v370
      %v372 = vpop.xlane.xlu0 %371
      %v373 = vsub.f32 %v369, %v372
      %v374 = vmul.f32 %v373, 1.442695
      %v375 = vpow.pop %v374
      %v376 = vsel %vm279, %v375, 0.0
      %377 = vadd.xlane.f32.xlu0 %v376
      %v378 = vpop.xlane.xlu0 %377
      %v379 = vpack.c.bf16 %v375, %v375
      %v381 = vunpack.c.l.b16 %v275
      %v382 = vpack.c.b16 %v381, %v381
      %383 = vrot.lane.b32.xlu0 %v382, 120
      %v384 = vpop.permute.xlu0 %383
      %v386 = vsel %vm279, %v379, 0
      %v389 = vsel %vm317, %v384, 0
      %391 = vmatpush.bf16.msra.mxu0 0
      %392 = vmatpush.bf16.msra.mxu0 0
      %393 = vmatpush.bf16.msra.mxu0 0
      %394 = vmatpush.bf16.msra.mxu0 0
      %395 = vmatpush.bf16.msra.mxu0 0
      %396 = vmatpush.bf16.msra.mxu0 0
      %397 = vmatpush.bf16.msra.mxu0 0
      %398 = vmatpush.bf16.msra.mxu0 %v389
      %399 = vmatmul.bf16.gmra.mxu0 %v386
      %v400 = vpop.f32.mrf.mxu0
      %v401 = vadd.f32 0.0, %v400
      %v402 = vpop.f32.mrf.mxu0
      %403 = vdwg.mxu0
      %v404 = vrcp.pop %v378
      %v405 = vmul.f32 %v401, %v404
      %v406 = vpack.c.bf16 %v405, %v405
      %408 = vrot.lane.b32.xlu0 %v406, 8
      %v409 = vpop.permute.xlu0 %408
      %vm411 = vcmask 126016
      %412 = vst.msk [vmem:[%s271] sm:$0xf] %vm411, %v409
      %413 = vrot.lane.b32.xlu0 %v341, 112
      %v414 = vpop.permute.xlu0 %413
      %415 = vrot.lane.b32.xlu0 %v346, 112
      %v416 = vpop.permute.xlu0 %415
      %v418 = vsel %vm279, %v414, 0
      %v421 = vsel %vm279, %v416, 0
      %423 = vmatpush.bf16.xpose.msra.mxu0 0
      %424 = vmatpush.bf16.xpose.msra.mxu0 0
      %425 = vmatpush.bf16.xpose.msra.mxu0 0
      %426 = vmatpush.bf16.xpose.msra.mxu0 0
      %427 = vmatpush.bf16.xpose.msra.mxu0 0
      %428 = vmatpush.bf16.xpose.msra.mxu0 0
      %429 = vmatpush.bf16.xpose.msra.mxu0 0
      %430 = vmatpush.bf16.xpose.msra.mxu0 %v421
      %431 = vmatmul.bf16.gmra.mxu0 %v418
      %v432 = vpop.f32.mrf.mxu0
      %v433 = vadd.f32 0.0, %v432
      %v434 = vpop.f32.mrf.mxu0
      %435 = vdwg.mxu0
      %v436 = vmul.f32 %v433, 0.35355338
      %v437 = vadd.f32 %v436, %v301
      %v438 = vsel %vm279, %v437, -inf
      %439 = vmax.xlane.f32.xlu0 %v438
      %v440 = vpop.xlane.xlu0 %439
      %v441 = vsub.f32 %v437, %v440
      %v442 = vmul.f32 %v441, 1.442695
      %v443 = vpow.pop %v442
      %v444 = vsel %vm279, %v443, 0.0
      %445 = vadd.xlane.f32.xlu0 %v444
      %v446 = vpop.xlane.xlu0 %445
      %v447 = vpack.c.bf16 %v443, %v443
      %448 = vrot.lane.b32.xlu0 %v382, 112
      %v449 = vpop.permute.xlu0 %448
      %v451 = vsel %vm279, %v447, 0
      %v454 = vsel %vm317, %v449, 0
      %456 = vmatpush.bf16.msra.mxu0 0
      %457 = vmatpush.bf16.msra.mxu0 0
      %458 = vmatpush.bf16.msra.mxu0 0
      %459 = vmatpush.bf16.msra.mxu0 0
      %460 = vmatpush.bf16.msra.mxu0 0
      %461 = vmatpush.bf16.msra.mxu0 0
      %462 = vmatpush.bf16.msra.mxu0 0
      %463 = vmatpush.bf16.msra.mxu0 %v454
      %464 = vmatmul.bf16.gmra.mxu0 %v451
      %v465 = vpop.f32.mrf.mxu0
      %v466 = vadd.f32 0.0, %v465
      %v467 = vpop.f32.mrf.mxu0
      %468 = vdwg.mxu0
      %v469 = vrcp.pop %v446
      %v470 = vmul.f32 %v466, %v469
      %v471 = vpack.c.bf16 %v470, %v470
      %473 = vrot.lane.b32.xlu0 %v471, 16
      %v474 = vpop.permute.xlu0 %473
      %vm476 = vcmask 191616
      %477 = vst.msk [vmem:[%s271] sm:$0xf] %vm476, %v474
      %478 = vrot.lane.b32.xlu0 %v341, 104
      %v479 = vpop.permute.xlu0 %478
      %480 = vrot.lane.b32.xlu0 %v346, 104
      %v481 = vpop.permute.xlu0 %480
      %v483 = vsel %vm279, %v479, 0
      %v486 = vsel %vm279, %v481, 0
      %488 = vmatpush.bf16.xpose.msra.mxu0 0
      %489 = vmatpush.bf16.xpose.msra.mxu0 0
      %490 = vmatpush.bf16.xpose.msra.mxu0 0
      %491 = vmatpush.bf16.xpose.msra.mxu0 0
      %492 = vmatpush.bf16.xpose.msra.mxu0 0
      %493 = vmatpush.bf16.xpose.msra.mxu0 0
      %494 = vmatpush.bf16.xpose.msra.mxu0 0
      %495 = vmatpush.bf16.xpose.msra.mxu0 %v486
      %496 = vmatmul.bf16.gmra.mxu0 %v483
      %v497 = vpop.f32.mrf.mxu0
      %v498 = vadd.f32 0.0, %v497
      %v499 = vpop.f32.mrf.mxu0
      %500 = vdwg.mxu0
      %v501 = vmul.f32 %v498, 0.35355338
      %v502 = vadd.f32 %v501, %v301
      %v503 = vsel %vm279, %v502, -inf
      %504 = vmax.xlane.f32.xlu0 %v503
      %v505 = vpop.xlane.xlu0 %504
      %v506 = vsub.f32 %v502, %v505
      %v507 = vmul.f32 %v506, 1.442695
      %v508 = vpow.pop %v507
      %v509 = vsel %vm279, %v508, 0.0
      %510 = vadd.xlane.f32.xlu0 %v509
      %v511 = vpop.xlane.xlu0 %510
      %v512 = vpack.c.bf16 %v508, %v508
      %513 = vrot.lane.b32.xlu0 %v382, 104
      %v514 = vpop.permute.xlu0 %513
      %v516 = vsel %vm279, %v512, 0
      %v519 = vsel %vm317, %v514, 0
      %521 = vmatpush.bf16.msra.mxu0 0
      %522 = vmatpush.bf16.msra.mxu0 0
      %523 = vmatpush.bf16.msra.mxu0 0
      %524 = vmatpush.bf16.msra.mxu0 0
      %525 = vmatpush.bf16.msra.mxu0 0
      %526 = vmatpush.bf16.msra.mxu0 0
      %527 = vmatpush.bf16.msra.mxu0 0
      %528 = vmatpush.bf16.msra.mxu0 %v519
      %529 = vmatmul.bf16.gmra.mxu0 %v516
      %v530 = vpop.f32.mrf.mxu0
      %v531 = vadd.f32 0.0, %v530
      %v532 = vpop.f32.mrf.mxu0
      %533 = vdwg.mxu0
      %v534 = vrcp.pop %v511
      %v535 = vmul.f32 %v531, %v534
      %v536 = vpack.c.bf16 %v535, %v535
      %538 = vrot.lane.b32.xlu0 %v536, 24
      %v539 = vpop.permute.xlu0 %538
      %vm541 = vcmask 257216
      %542 = vst.msk [vmem:[%s271] sm:$0xf] %vm541, %v539
      %p543 = scmp.lt.s32.totalorder %s19, 1
      %s544 = scalar_select %p543, %s19, 1
      %p545 = scmp.lt.s32.totalorder %s20, 0
      %s546 = scalar_select %p545, %s20, 0
      %s547 = sadd.s32 %s546, %s544
      %s548 = smul.addr %s547, 4
      %s549 = scalar_lea.vmem %s4, %s548
      // Predicated region
      $region37: #{seq2seq_forward.15} parent=35 // pred_check
        %p550 = pneg %p153
      $region38: #{seq2seq_forward.15} parent=35 // pred_check_branch
        %552 = sbr.rel (%p550) target = $region40
      $region39: #{seq2seq_forward.15} parent=35 // pred_region
        _
      $region40: #{seq2seq_forward.15} parent=35 // pred_fallthru
        _
    $region36: #{seq2seq_forward.15} parent=5 // pred_fallthru
      _
    %p553 = scmp.le.s32.totalorder 2, %s10
    // Predicated region
    $region41: #{seq2seq_forward.15} parent=5 // pred_check
      %p554 = pneg %p553
    $region42: #{seq2seq_forward.15} parent=5 // pred_check_branch
      %556 = sbr.rel (%p554) target = $region44
    $region43: #{seq2seq_forward.15} parent=5 // pred_region
      %s557 = ssub.s32 %s10, 2
      // Predicated region
      $region45: #{seq2seq_forward.15} parent=43 // pred_check
        %p558 = pneg %p159
      $region46: #{seq2seq_forward.15} parent=43 // pred_check_branch
        %560 = sbr.rel (%p558) target = $region48
      $region47: #{seq2seq_forward.15} parent=43 // pred_region
        %p561 = scmp.lt.s32.totalorder %s21, 1
        %s562 = scalar_select %p561, %s21, 1
        %p563 = scmp.lt.s32.totalorder %s22, 0
        %s564 = scalar_select %p563, %s22, 0
        %s565 = sadd.s32 %s564, %s562
        %s566 = smul.addr %s565, 4
        %s567 = scalar_lea.vmem %s4, %s566
      $region48: #{seq2seq_forward.15} parent=43 // pred_fallthru
        _
    $region44: #{seq2seq_forward.15} parent=5 // pred_fallthru
      _
  $region6: #{seq2seq_forward.15} parent=0 // loop_footer
    %s14 = sadd.s32 1, %s10
  $region7: #{seq2seq_forward.15} parent=0 // loop_footer_branch
    %9 = sbr.rel target = $region3
  $region8: #{seq2seq_forward.15} parent=0 // loop_exit
    _

// kernel: seq2seq_forward.24
$region0: #{seq2seq_forward.24}
  #allocation0 [shape = 'u32[]', space=smem, size = 0x4, offset = 0x4, fixed_abs, tag = 'smem constant byte address 0x4 - core index']
  #allocation1 [shape = 'u32[72,128]{1,0:T(1,128)}', space=vmem, size = 0x9000, scoped, tag = 'internal scratch']
  #allocation2 [shape = 'f32[16,64]{1,0:T(8,128)}', space=vmem, size = 0x2000, scoped, tag = 'scratch operand']
  %s0 = inlined_call_operand.vmem [shape: bf16[16,32], index: 0, kind: input, shape index: {}]
  %s1 = inlined_call_operand.vmem [shape: bf16[32,64], index: 1, kind: input, shape index: {}]
  %s2 = inlined_call_operand.vmem [shape: f32[1,64], index: 2, kind: input, shape index: {}]
  %s3 = inlined_call_operand.vmem [shape: bf16[16,64], index: 3, kind: output, shape index: {}]
  %s4 = sld [smem:[#allocation0]]
  $region30: #{seq2seq_forward.24} parent=0
    _
  %s6 = ssub.s32 1, %s4
  %s7 = scalar_select 0, %s6, %s4
  // Predicated region
  $region2: #{seq2seq_forward.24} parent=0 // pred_check
    _
  $region3: #{seq2seq_forward.24} parent=0 // pred_check_branch
    %9 = sbr.rel (0) target = $region5
  $region4: #{seq2seq_forward.24} parent=0 // pred_region
    _
  $region5: #{seq2seq_forward.24} parent=0 // pred_fallthru
    _
  // Predicated region
  $region6: #{seq2seq_forward.24} parent=0 // pred_check
    _
  $region7: #{seq2seq_forward.24} parent=0 // pred_check_branch
    %11 = sbr.rel (0) target = $region9
  $region8: #{seq2seq_forward.24} parent=0 // pred_region
    _
  $region9: #{seq2seq_forward.24} parent=0 // pred_fallthru
    _
  // Predicated region
  $region10: #{seq2seq_forward.24} parent=0 // pred_check
    _
  $region11: #{seq2seq_forward.24} parent=0 // pred_check_branch
    %13 = sbr.rel (0) target = $region13
  $region12: #{seq2seq_forward.24} parent=0 // pred_region
    _
  $region13: #{seq2seq_forward.24} parent=0 // pred_fallthru
    _
  %p15 = scmp.eq.s32.totalorder 0, 0
  // Predicated region
  $region14: #{seq2seq_forward.24} parent=0 // pred_check
    %p16 = pneg %p15
  $region15: #{seq2seq_forward.24} parent=0 // pred_check_branch
    %18 = sbr.rel (%p16) target = $region17
  $region16: #{seq2seq_forward.24} parent=0 // pred_region
    %vm19 = vcmask 523264
    %20 = vst.msk [vmem:[#allocation2] sm:$0xff] %vm19, 0.0
    %21 = vst.msk [vmem:[#allocation2 + $0x8] sm:$0xff] %vm19, 0.0
  $region17: #{seq2seq_forward.24} parent=0 // pred_fallthru
    _
  %v22 = vld [vmem:[#allocation2] sm:$0xff]
  %v23 = vld [vmem:[#allocation2 + $0x8] sm:$0xff]
  %v24 = vld [vmem:[%s0] sm:$0xf]
  %v25 = vld [vmem:[%s0 + $0x4] sm:$0xf]
  %v26 = vld [vmem:[%s1] sm:$0xf]
  %v27 = vld [vmem:[%s1 + $0x4] sm:$0xf]
  %v28 = vld [vmem:[%s1 + $0x8] sm:$0xf]
  %v29 = vld [vmem:[%s1 + $0xc] sm:$0xf]
  %v32 = vunpack.c.l.b16 %v24
  %v33 = vunpack.c.l.b16 %v25
  %v34 = vpack.c.b16 %v33, %v32
  %v39 = vunpack.c.l.b16 %v26
  %v40 = vunpack.c.l.b16 %v27
  %v41 = vunpack.c.l.b16 %v28
  %v42 = vunpack.c.l.b16 %v29
  %v43 = vpack.c.b16 %v40, %v39
  %v44 = vpack.c.b16 %v42, %v41
  %vm47 = vcmask 261120
  %v49 = vsel %vm47, %v34, 0
  %51 = vmatpush.bf16.msra.mxu0 0
  %52 = vmatpush.bf16.msra.mxu0 0
  %53 = vmatpush.bf16.msra.mxu0 0
  %54 = vmatpush.bf16.msra.mxu0 0
  %55 = vmatpush.bf16.msra.mxu0 0
  %56 = vmatpush.bf16.msra.mxu0 0
  %57 = vmatpush.bf16.msra.mxu0 %v44
  %58 = vmatpush.bf16.msra.mxu0 %v43
  %59 = vmatmul.bf16.gmra.mxu0 %v49
  %v60 = vpop.f32.mrf.mxu0
  %v61 = vadd.f32 0.0, %v60
  %v62 = vpop.f32.mrf.mxu0
  %v63 = vadd.f32 0.0, %v62
  %64 = vdwg.mxu0
  %v65 = vadd.f32 %v22, %v61
  %v66 = vadd.f32 %v23, %v63
  %vm67 = vcmask 523264
  %68 = vst.msk [vmem:[#allocation2] sm:$0xff] %vm67, %v65
  %69 = vst.msk [vmem:[#allocation2 + $0x8] sm:$0xff] %vm67, %v66
  // Predicated region
  $region18: #{seq2seq_forward.24} parent=0 // pred_check
    %p70 = pneg %p15
  $region19: #{seq2seq_forward.24} parent=0 // pred_check_branch
    %72 = sbr.rel (%p70) target = $region21
  $region20: #{seq2seq_forward.24} parent=0 // pred_region
    %v73 = vld [vmem:[#allocation2] sm:$0xff]
    %v74 = vld [vmem:[#allocation2 + $0x8] sm:$0xff]
    %v75 = vld [vmem:[%s2] sm:$0x1]
    %v77 = vperm.slane %v75, 0
    %v79 = vadd.f32 %v73, %v77
    %v80 = vadd.f32 %v74, %v77
    %v81 = vmax.f32 %v79, 0.0
    %v82 = vmax.f32 %v80, 0.0
    %v83 = vpack.c.bf16 %v81, %v81
    %v84 = vpack.c.bf16 %v82, %v82
    %vm85 = vcmask 519168
    %86 = vst.msk [vmem:[%s3] sm:$0xf] %vm85, %v83
    %87 = vst.msk [vmem:[%s3 + $0x4] sm:$0xf] %vm85, %v84
  $region21: #{seq2seq_forward.24} parent=0 // pred_fallthru
    _
  // Predicated region
  $region22: #{seq2seq_forward.24} parent=0 // pred_check
    _
  $region23: #{seq2seq_forward.24} parent=0 // pred_check_branch
    %89 = sbr.rel (0) target = $region25
  $region24: #{seq2seq_forward.24} parent=0 // pred_region
    _
  $region25: #{seq2seq_forward.24} parent=0 // pred_fallthru
    _
  // Predicated region
  $region26: #{seq2seq_forward.24} parent=0 // pred_check
    _
  $region27: #{seq2seq_forward.24} parent=0 // pred_check_branch
    %91 = sbr.rel (0) target = $region29
  $region28: #{seq2seq_forward.24} parent=0 // pred_region
    _
  $region29: #{seq2seq_forward.24} parent=0 // pred_fallthru
    _

// kernel: seq2seq_forward.20
$region0: #{seq2seq_forward.20}
  #allocation0 [shape = 'u32[]', space=smem, size = 0x4, offset = 0x4, fixed_abs, tag = 'smem constant byte address 0x4 - core index']
  #allocation1 [shape = 'u32[72,128]{1,0:T(1,128)}', space=vmem, size = 0x9000, scoped, tag = 'internal scratch']
  #allocation2 [shape = 'f32[16,32]{1,0:T(8,128)}', space=vmem, size = 0x2000, scoped, tag = 'scratch operand']
  %s0 = inlined_call_operand.vmem [shape: bf16[16,32], index: 0, kind: input, shape index: {}]
  %s1 = inlined_call_operand.vmem [shape: bf16[32,32], index: 1, kind: input, shape index: {}]
  %s2 = inlined_call_operand.vmem [shape: f32[1,32], index: 2, kind: input, shape index: {}]
  %s3 = inlined_call_operand.vmem [shape: bf16[16,32], index: 3, kind: output, shape index: {}]
  %s4 = sld [smem:[#allocation0]]
  $region30: #{seq2seq_forward.20} parent=0
    _
  %s6 = ssub.s32 1, %s4
  %s7 = scalar_select 0, %s6, %s4
  // Predicated region
  $region2: #{seq2seq_forward.20} parent=0 // pred_check
    _
  $region3: #{seq2seq_forward.20} parent=0 // pred_check_branch
    %9 = sbr.rel (0) target = $region5
  $region4: #{seq2seq_forward.20} parent=0 // pred_region
    _
  $region5: #{seq2seq_forward.20} parent=0 // pred_fallthru
    _
  // Predicated region
  $region6: #{seq2seq_forward.20} parent=0 // pred_check
    _
  $region7: #{seq2seq_forward.20} parent=0 // pred_check_branch
    %11 = sbr.rel (0) target = $region9
  $region8: #{seq2seq_forward.20} parent=0 // pred_region
    _
  $region9: #{seq2seq_forward.20} parent=0 // pred_fallthru
    _
  // Predicated region
  $region10: #{seq2seq_forward.20} parent=0 // pred_check
    _
  $region11: #{seq2seq_forward.20} parent=0 // pred_check_branch
    %13 = sbr.rel (0) target = $region13
  $region12: #{seq2seq_forward.20} parent=0 // pred_region
    _
  $region13: #{seq2seq_forward.20} parent=0 // pred_fallthru
    _
  %p15 = scmp.eq.s32.totalorder 0, 0
  // Predicated region
  $region14: #{seq2seq_forward.20} parent=0 // pred_check
    %p16 = pneg %p15
  $region15: #{seq2seq_forward.20} parent=0 // pred_check_branch
    %18 = sbr.rel (%p16) target = $region17
  $region16: #{seq2seq_forward.20} parent=0 // pred_region
    %vm19 = vcmask 261120
    %20 = vst.msk [vmem:[#allocation2] sm:$0xff] %vm19, 0.0
    %21 = vst.msk [vmem:[#allocation2 + $0x8] sm:$0xff] %vm19, 0.0
  $region17: #{seq2seq_forward.20} parent=0 // pred_fallthru
    _
  %v22 = vld [vmem:[#allocation2] sm:$0xff]
  %v23 = vld [vmem:[#allocation2 + $0x8] sm:$0xff]
  %v24 = vld [vmem:[%s0] sm:$0xf]
  %v25 = vld [vmem:[%s0 + $0x4] sm:$0xf]
  %v26 = vld [vmem:[%s1] sm:$0xf]
  %v27 = vld [vmem:[%s1 + $0x4] sm:$0xf]
  %v28 = vld [vmem:[%s1 + $0x8] sm:$0xf]
  %v29 = vld [vmem:[%s1 + $0xc] sm:$0xf]
  %v32 = vunpack.c.l.b16 %v24
  %v33 = vunpack.c.l.b16 %v25
  %v34 = vpack.c.b16 %v33, %v32
  %v39 = vunpack.c.l.b16 %v26
  %v40 = vunpack.c.l.b16 %v27
  %v41 = vunpack.c.l.b16 %v28
  %v42 = vunpack.c.l.b16 %v29
  %v43 = vpack.c.b16 %v40, %v39
  %v44 = vpack.c.b16 %v42, %v41
  %vm47 = vcmask 261120
  %v49 = vsel %vm47, %v34, 0
  %51 = vmatpush.bf16.msra.mxu0 0
  %52 = vmatpush.bf16.msra.mxu0 0
  %53 = vmatpush.bf16.msra.mxu0 0
  %54 = vmatpush.bf16.msra.mxu0 0
  %55 = vmatpush.bf16.msra.mxu0 0
  %56 = vmatpush.bf16.msra.mxu0 0
  %57 = vmatpush.bf16.msra.mxu0 %v44
  %58 = vmatpush.bf16.msra.mxu0 %v43
  %59 = vmatmul.bf16.gmra.mxu0 %v49
  %v60 = vpop.f32.mrf.mxu0
  %v61 = vadd.f32 0.0, %v60
  %v62 = vpop.f32.mrf.mxu0
  %v63 = vadd.f32 0.0, %v62
  %64 = vdwg.mxu0
  %v65 = vadd.f32 %v22, %v61
  %v66 = vadd.f32 %v23, %v63
  %67 = vst.msk [vmem:[#allocation2] sm:$0xff] %vm47, %v65
  %68 = vst.msk [vmem:[#allocation2 + $0x8] sm:$0xff] %vm47, %v66
  // Predicated region
  $region18: #{seq2seq_forward.20} parent=0 // pred_check
    %p69 = pneg %p15
  $region19: #{seq2seq_forward.20} parent=0 // pred_check_branch
    %71 = sbr.rel (%p69) target = $region21
  $region20: #{seq2seq_forward.20} parent=0 // pred_region
    %v72 = vld [vmem:[#allocation2] sm:$0xff]
    %v73 = vld [vmem:[#allocation2 + $0x8] sm:$0xff]
    %v74 = vld [vmem:[%s2] sm:$0x1]
    %v76 = vperm.slane %v74, 0
    %v78 = vadd.f32 %v72, %v76
    %v79 = vadd.f32 %v73, %v76
    %v80 = vpack.c.bf16 %v78, %v78
    %v81 = vpack.c.bf16 %v79, %v79
    %vm82 = vcmask 257024
    %83 = vst.msk [vmem:[%s3] sm:$0xf] %vm82, %v80
    %84 = vst.msk [vmem:[%s3 + $0x4] sm:$0xf] %vm82, %v81
  $region21: #{seq2seq_forward.20} parent=0 // pred_fallthru
    _
  // Predicated region
  $region22: #{seq2seq_forward.20} parent=0 // pred_check
    _
  $region23: #{seq2seq_forward.20} parent=0 // pred_check_branch
    %86 = sbr.rel (0) target = $region25
  $region24: #{seq2seq_forward.20} parent=0 // pred_region
    _
  $region25: #{seq2seq_forward.20} parent=0 // pred_fallthru
    _
  // Predicated region
  $region26: #{seq2seq_forward.20} parent=0 // pred_check
    _
  $region27: #{seq2seq_forward.20} parent=0 // pred_check_branch
    %88 = sbr.rel (0) target = $region29
  $region28: #{seq2seq_forward.20} parent=0 // pred_region
    _
  $region29: #{seq2seq_forward.20} parent=0 // pred_fallthru
    _

// kernel: seq2seq_forward.18
$region0: #{seq2seq_forward.18}
  #allocation0 [shape = 'u32[]', space=smem, size = 0x4, offset = 0x4, fixed_abs, tag = 'smem constant byte address 0x4 - core index']
  #allocation1 [shape = 'u32[72,128]{1,0:T(1,128)}', space=vmem, size = 0x9000, scoped, tag = 'internal scratch']
  %s0 = inlined_call_operand.vmem [shape: bf16[2,8,32], index: 0, kind: input, shape index: {}]
  %s1 = inlined_call_operand.vmem [shape: bf16[2,8,32], index: 1, kind: input, shape index: {}]
  %s2 = inlined_call_operand.vmem [shape: bf16[2,8,32], index: 2, kind: input, shape index: {}]
  %s3 = inlined_call_operand.vmem [shape: f32[2,1,8], index: 3, kind: input, shape index: {}]
  %s4 = inlined_call_operand.vmem [shape: bf16[2,8,32], index: 4, kind: output, shape index: {}]
  %s5 = sld [smem:[#allocation0]]
  $region49: #{seq2seq_forward.18} parent=0
    _
  %s7 = ssub.s32 1, %s5
  %s8 = scalar_select 0, %s7, %s5
  loop: start=0, step=1, limit=4
  $region2: #{seq2seq_forward.18} parent=0 // loop_pre_header
    _
  $region3: #{seq2seq_forward.18} parent=0 // loop_header
    %s10 = sphi 0, %s14
    %p11 = scmp.ge.s32.totalorder %s10, 4
    %s17 = sphi 0, %s29
    %s18 = sphi 0, %s25
    %s19 = sphi 0, %s17
    %s20 = sphi 0, %s18
    %s21 = sphi 0, %s19
    %s22 = sphi 0, %s20
    %s34 = sphi 0, %s36
    %s37 = sphi 0, %s34
    %s38 = sphi 0, %s37
    %s54 = sphi 0, %s38
    %s60 = sphi 0, %s62
    %s63 = sphi 0, %s60
    %s64 = sphi 0, %s63
    %s80 = sphi 0, %s64
    %s86 = sphi 0, %s88
    %s89 = sphi 0, %s86
    %s90 = sphi 0, %s89
    %s106 = sphi 0, %s90
    %s112 = sphi 0, %s114
    %s115 = sphi 0, %s112
    %s116 = sphi 0, %s115
    %s132 = sphi 0, %s116
    %s140 = sphi 0, %s142
    %s143 = sphi 0, %s140
    %s144 = sphi 0, %s143
    %s160 = sphi 0, %s144
  $region4: #{seq2seq_forward.18} parent=0 // loop_header_branch
    %13 = sbr.rel (%p11) target = $region8
  $region5: #{seq2seq_forward.18} parent=0 // loop_body
    %s15 = ssub.s32 %s10, 1
    %s16 = ssub.s32 %s10, 2
    %s23 = sadd.s32 1, %s18
    %p24 = scmp.ge.s32.totalorder %s23, 1
    %s25 = scalar_select %p24, 0, %s23
    %s26 = sadd.s32 1, %s17
    %s27 = scalar_select %p24, %s26, %s17
    %p28 = scmp.ge.s32.totalorder %s27, 2
    %s29 = scalar_select %p28, 0, %s27
    %s30 = ssub.s32 %s17, %s29
    %s31 = ssub.s32 %s18, %s25
    %s32 = sor.u32 %s30, %s31
    %p33 = scmp.eq.s32.totalorder %s32, 0
    %s35 = sadd.s32 %s34, 1
    %s36 = scalar_select %p33, %s34, %s35
    %p39 = pneg %p33
    %p40 = scmp.eq.s32.totalorder %s10, 1
    %p41 = por %p39, %p40
    %p42 = scmp.ne.s32.totalorder %s34, %s37
    %p43 = scmp.eq.s32.totalorder %s10, 0
    %p44 = por %p42, %p43
    %p45 = scmp.ne.s32.totalorder %s34, %s37
    %p46 = scmp.eq.s32.totalorder %s15, 1
    %p47 = por %p45, %p46
    %p48 = scmp.ne.s32.totalorder %s37, %s38
    %p49 = scmp.eq.s32.totalorder %s15, 0
    %p50 = por %p48, %p49
    %p51 = scmp.ne.s32.totalorder %s37, %s38
    %p52 = scmp.eq.s32.totalorder %s16, 1
    %p53 = por %p51, %p52
    %p55 = scmp.ne.s32.totalorder %s38, %s54
    %p56 = scmp.eq.s32.totalorder %s16, 0
    %p57 = por %p55, %p56
    %s58 = ssub.s32 %s17, %s29
    %p59 = scmp.eq.s32.totalorder %s58, 0
    %s61 = sadd.s32 %s60, 1
    %s62 = scalar_select %p59, %s60, %s61
    %p65 = pneg %p59
    %p66 = scmp.eq.s32.totalorder %s10, 1
    %p67 = por %p65, %p66
    %p68 = scmp.ne.s32.totalorder %s60, %s63
    %p69 = scmp.eq.s32.totalorder %s10, 0
    %p70 = por %p68, %p69
    %p71 = scmp.ne.s32.totalorder %s60, %s63
    %p72 = scmp.eq.s32.totalorder %s15, 1
    %p73 = por %p71, %p72
    %p74 = scmp.ne.s32.totalorder %s63, %s64
    %p75 = scmp.eq.s32.totalorder %s15, 0
    %p76 = por %p74, %p75
    %p77 = scmp.ne.s32.totalorder %s63, %s64
    %p78 = scmp.eq.s32.totalorder %s16, 1
    %p79 = por %p77, %p78
    %p81 = scmp.ne.s32.totalorder %s64, %s80
    %p82 = scmp.eq.s32.totalorder %s16, 0
    %p83 = por %p81, %p82
    %s84 = ssub.s32 %s17, %s29
    %p85 = scmp.eq.s32.totalorder %s84, 0
    %s87 = sadd.s32 %s86, 1
    %s88 = scalar_select %p85, %s86, %s87
    %p91 = pneg %p85
    %p92 = scmp.eq.s32.totalorder %s10, 1
    %p93 = por %p91, %p92
    %p94 = scmp.ne.s32.totalorder %s86, %s89
    %p95 = scmp.eq.s32.totalorder %s10, 0
    %p96 = por %p94, %p95
    %p97 = scmp.ne.s32.totalorder %s86, %s89
    %p98 = scmp.eq.s32.totalorder %s15, 1
    %p99 = por %p97, %p98
    %p100 = scmp.ne.s32.totalorder %s89, %s90
    %p101 = scmp.eq.s32.totalorder %s15, 0
    %p102 = por %p100, %p101
    %p103 = scmp.ne.s32.totalorder %s89, %s90
    %p104 = scmp.eq.s32.totalorder %s16, 1
    %p105 = por %p103, %p104
    %p107 = scmp.ne.s32.totalorder %s90, %s106
    %p108 = scmp.eq.s32.totalorder %s16, 0
    %p109 = por %p107, %p108
    %s110 = ssub.s32 %s17, %s29
    %p111 = scmp.eq.s32.totalorder %s110, 0
    %s113 = sadd.s32 %s112, 1
    %s114 = scalar_select %p111, %s112, %s113
    %p117 = pneg %p111
    %p118 = scmp.eq.s32.totalorder %s10, 1
    %p119 = por %p117, %p118
    %p120 = scmp.ne.s32.totalorder %s112, %s115
    %p121 = scmp.eq.s32.totalorder %s10, 0
    %p122 = por %p120, %p121
    %p123 = scmp.ne.s32.totalorder %s112, %s115
    %p124 = scmp.eq.s32.totalorder %s15, 1
    %p125 = por %p123, %p124
    %p126 = scmp.ne.s32.totalorder %s115, %s116
    %p127 = scmp.eq.s32.totalorder %s15, 0
    %p128 = por %p126, %p127
    %p129 = scmp.ne.s32.totalorder %s115, %s116
    %p130 = scmp.eq.s32.totalorder %s16, 1
    %p131 = por %p129, %p130
    %p133 = scmp.ne.s32.totalorder %s116, %s132
    %p134 = scmp.eq.s32.totalorder %s16, 0
    %p135 = por %p133, %p134
    %s136 = ssub.s32 %s17, %s29
    %s137 = ssub.s32 %s18, %s25
    %s138 = sor.u32 %s136, %s137
    %p139 = scmp.eq.s32.totalorder %s138, 0
    %s141 = sadd.s32 %s140, 1
    %s142 = scalar_select %p139, %s140, %s141
    %p145 = pneg %p139
    %p146 = scmp.eq.s32.totalorder %s10, 1
    %p147 = por %p145, %p146
    %p148 = scmp.ne.s32.totalorder %s140, %s143
    %p149 = scmp.eq.s32.totalorder %s10, 0
    %p150 = por %p148, %p149
    %p151 = scmp.ne.s32.totalorder %s140, %s143
    %p152 = scmp.eq.s32.totalorder %s15, 1
    %p153 = por %p151, %p152
    %p154 = scmp.ne.s32.totalorder %s143, %s144
    %p155 = scmp.eq.s32.totalorder %s15, 0
    %p156 = por %p154, %p155
    %p157 = scmp.ne.s32.totalorder %s143, %s144
    %p158 = scmp.eq.s32.totalorder %s16, 1
    %p159 = por %p157, %p158
    %p161 = scmp.ne.s32.totalorder %s144, %s160
    %p162 = scmp.eq.s32.totalorder %s16, 0
    %p163 = por %p161, %p162
    %p164 = scmp.le.s32.totalorder 1, %s10
    %p165 = scmp.lt.s32.totalorder %s10, 3
    %p166 = pnand %p164, %p165
    %p167 = pneg %p166
    // Predicated region
    $region9: #{seq2seq_forward.18} parent=5 // pred_check
      _
    $region10: #{seq2seq_forward.18} parent=5 // pred_check_branch
      %169 = sbr.rel (%p166) target = $region12
    $region11: #{seq2seq_forward.18} parent=5 // pred_region
      %s170 = ssub.s32 %s10, 1
    $region12: #{seq2seq_forward.18} parent=5 // pred_fallthru
      _
    %p171 = scmp.lt.s32.totalorder %s10, 2
    // Predicated region
    $region13: #{seq2seq_forward.18} parent=5 // pred_check
      %p172 = pneg %p171
    $region14: #{seq2seq_forward.18} parent=5 // pred_check_branch
      %174 = sbr.rel (%p172) target = $region16
    $region15: #{seq2seq_forward.18} parent=5 // pred_region
      // Predicated region
      $region17: #{seq2seq_forward.18} parent=15 // pred_check
        %p175 = pneg %p44
      $region18: #{seq2seq_forward.18} parent=15 // pred_check_branch
        %177 = sbr.rel (%p175) target = $region20
      $region19: #{seq2seq_forward.18} parent=15 // pred_region
        %p178 = scmp.lt.s32.totalorder %s17, 1
        %s179 = scalar_select %p178, %s17, 1
        %p180 = scmp.lt.s32.totalorder %s18, 0
        %s181 = scalar_select %p180, %s18, 0
        %s182 = sadd.s32 %s181, %s179
        %s183 = smul.addr %s182, 4
        %s184 = scalar_lea.vmem %s0, %s183
      $region20: #{seq2seq_forward.18} parent=15 // pred_fallthru
        _
      // Predicated region
      $region21: #{seq2seq_forward.18} parent=15 // pred_check
        %p185 = pneg %p70
      $region22: #{seq2seq_forward.18} parent=15 // pred_check_branch
        %187 = sbr.rel (%p185) target = $region24
      $region23: #{seq2seq_forward.18} parent=15 // pred_region
        %p188 = scmp.lt.s32.totalorder %s17, 1
        %s189 = scalar_select %p188, %s17, 1
        %s190 = smul.addr %s189, 4
        %s191 = scalar_lea.vmem %s1, %s190
      $region24: #{seq2seq_forward.18} parent=15 // pred_fallthru
        _
      // Predicated region
      $region25: #{seq2seq_forward.18} parent=15 // pred_check
        %p192 = pneg %p96
      $region26: #{seq2seq_forward.18} parent=15 // pred_check_branch
        %194 = sbr.rel (%p192) target = $region28
      $region27: #{seq2seq_forward.18} parent=15 // pred_region
        %p195 = scmp.lt.s32.totalorder %s17, 1
        %s196 = scalar_select %p195, %s17, 1
        %s197 = smul.addr %s196, 4
        %s198 = scalar_lea.vmem %s2, %s197
      $region28: #{seq2seq_forward.18} parent=15 // pred_fallthru
        _
      // Predicated region
      $region29: #{seq2seq_forward.18} parent=15 // pred_check
        %p199 = pneg %p122
      $region30: #{seq2seq_forward.18} parent=15 // pred_check_branch
        %201 = sbr.rel (%p199) target = $region32
      $region31: #{seq2seq_forward.18} parent=15 // pred_region
        %p202 = scmp.lt.s32.totalorder %s17, 1
        %s203 = scalar_select %p202, %s17, 1
        %s204 = scalar_lea.vmem %s3, %s203
      $region32: #{seq2seq_forward.18} parent=15 // pred_fallthru
        _
    $region16: #{seq2seq_forward.18} parent=5 // pred_fallthru
      _
    %p205 = scmp.le.s32.totalorder 1, %s10
    %p206 = scmp.lt.s32.totalorder %s10, 3
    %p207 = pnand %p205, %p206
    %p208 = pneg %p207
    // Predicated region
    $region33: #{seq2seq_forward.18} parent=5 // pred_check
      _
    $region34: #{seq2seq_forward.18} parent=5 // pred_check_branch
      %210 = sbr.rel (%p207) target = $region36
    $region35: #{seq2seq_forward.18} parent=5 // pred_region
      %s211 = ssub.s32 %s10, 1
      %p212 = scmp.lt.s32.totalorder %s19, 1
      %s213 = scalar_select %p212, %s19, 1
      %p214 = scmp.lt.s32.totalorder %s20, 0
      %s215 = scalar_select %p214, %s20, 0
      %s216 = sadd.s32 %s215, %s213
      %s217 = smul.addr %s216, 4
      %s218 = scalar_lea.vmem %s0, %s217
      %p219 = pneg %p50
      %p220 = pneg %p47
      %p221 = scmp.lt.s32.totalorder %s19, 1
      %s222 = scalar_select %p221, %s19, 1
      %s223 = smul.addr %s222, 4
      %s224 = scalar_lea.vmem %s1, %s223
      %p225 = pneg %p76
      %p226 = pneg %p73
      %p227 = scmp.lt.s32.totalorder %s19, 1
      %s228 = scalar_select %p227, %s19, 1
      %s229 = smul.addr %s228, 4
      %s230 = scalar_lea.vmem %s2, %s229
      %p231 = pneg %p102
      %p232 = pneg %p99
      %p233 = scmp.lt.s32.totalorder %s19, 1
      %s234 = scalar_select %p233, %s19, 1
      %s235 = scalar_lea.vmem %s3, %s234
      %p236 = pneg %p128
      %p237 = pneg %p125
      %p238 = pneg %p156
      %p239 = pneg %p153
      %p240 = scmp.lt.s32.totalorder %s19, 1
      %s241 = scalar_select %p240, %s19, 1
      %p242 = scmp.lt.s32.totalorder %s20, 0
      %s243 = scalar_select %p242, %s20, 0
      %s244 = sadd.s32 %s243, %s241
      %s245 = smul.addr %s244, 4
      %s246 = scalar_lea.vmem %s4, %s245
      %p247 = scmp.lt.s32.totalorder %s19, 1
      %s248 = scalar_select %p247, %s19, 1
      %p249 = scmp.lt.s32.totalorder %s20, 0
      %s250 = scalar_select %p249, %s20, 0
      %s251 = sadd.s32 %s250, %s248
      %s252 = smul.addr %s251, 4
      %s253 = scalar_lea.vmem %s0, %s252
      %p254 = scmp.lt.s32.totalorder %s19, 1
      %s255 = scalar_select %p254, %s19, 1
      %s256 = smul.addr %s255, 4
      %s257 = scalar_lea.vmem %s1, %s256
      %p258 = scmp.lt.s32.totalorder %s19, 1
      %s259 = scalar_select %p258, %s19, 1
      %s260 = smul.addr %s259, 4
      %s261 = scalar_lea.vmem %s2, %s260
      %p262 = scmp.lt.s32.totalorder %s19, 1
      %s263 = scalar_select %p262, %s19, 1
      %s264 = scalar_lea.vmem %s3, %s263
      %p265 = scmp.lt.s32.totalorder %s19, 1
      %s266 = scalar_select %p265, %s19, 1
      %p267 = scmp.lt.s32.totalorder %s20, 0
      %s268 = scalar_select %p267, %s20, 0
      %s269 = sadd.s32 %s268, %s266
      %s270 = smul.addr %s269, 4
      %s271 = scalar_lea.vmem %s4, %s270
      %v273 = vld [vmem:[%s253] sm:$0xf]
      %v274 = vld [vmem:[%s257] sm:$0xf]
      %v275 = vld [vmem:[%s261] sm:$0xf]
      %v276 = vld [vmem:[%s264] sm:$0x1]
      %vm277 = vcmp.gt.f32.partialorder %v276, 0.5
      %v278 = vsel %vm277, 0.0, -1e+09
      %s279 = smul.u32 %s20, 8
      %v280 = vlaneseq
      %v281 = vshrl.u32 %v280, 7
      %v282 = vstv %s279
      %v283 = vadd.s32 %v281, %v282
      %v284 = vlaneseq
      %v285 = vand.u32 %v284, 127
      %vm286 = vcmp.ge.s32.totalorder %v283, %v285
      %v287 = vsel %vm286, 0.0, -10000.0
      %v289 = vperm.slane %v278, 0
      %v291 = vadd.f32 %v289, %v287
      %vm292 = vcmask 64512
      %v294 = vsel %vm292, %v273, 0
      %v297 = vsel %vm292, %v274, 0
      %299 = vmatpush.bf16.xpose.msra.mxu0 0
      %300 = vmatpush.bf16.xpose.msra.mxu0 0
      %301 = vmatpush.bf16.xpose.msra.mxu0 0
      %302 = vmatpush.bf16.xpose.msra.mxu0 0
      %303 = vmatpush.bf16.xpose.msra.mxu0 0
      %304 = vmatpush.bf16.xpose.msra.mxu0 0
      %305 = vmatpush.bf16.xpose.msra.mxu0 0
      %306 = vmatpush.bf16.xpose.msra.mxu0 %v297
      %307 = vmatmul.bf16.gmra.mxu0 %v294
      %v308 = vpop.f32.mrf.mxu0
      %v309 = vadd.f32 0.0, %v308
      %v310 = vpop.f32.mrf.mxu0
      %311 = vdwg.mxu0
      %v312 = vmul.f32 %v309, 0.35355338
      %v313 = vadd.f32 %v312, %v291
      %v314 = vsel %vm292, %v313, -inf
      %315 = vmax.xlane.f32.xlu0 %v314
      %v316 = vpop.xlane.xlu0 %315
      %v317 = vsub.f32 %v313, %v316
      %v318 = vmul.f32 %v317, 1.442695
      %v319 = vpow.pop %v318
      %v320 = vsel %vm292, %v319, 0.0
      %321 = vadd.xlane.f32.xlu0 %v320
      %v322 = vpop.xlane.xlu0 %321
      %v323 = vpack.c.bf16 %v319, %v319
      %v325 = vsel %vm292, %v323, 0
      %vm327 = vcmask 1043456
      %v329 = vsel %vm327, %v275, 0
      %331 = vmatpush.bf16.msra.mxu0 0
      %332 = vmatpush.bf16.msra.mxu0 0
      %333 = vmatpush.bf16.msra.mxu0 0
      %334 = vmatpush.bf16.msra.mxu0 0
      %335 = vmatpush.bf16.msra.mxu0 0
      %336 = vmatpush.bf16.msra.mxu0 0
      %337 = vmatpush.bf16.msra.mxu0 0
      %338 = vmatpush.bf16.msra.mxu0 %v329
      %339 = vmatmul.bf16.gmra.mxu0 %v325
      %v340 = vpop.f32.mrf.mxu0
      %v341 = vadd.f32 0.0, %v340
      %v342 = vpop.f32.mrf.mxu0
      %343 = vdwg.mxu0
      %v344 = vrcp.pop %v322
      %v345 = vmul.f32 %v341, %v344
      %v346 = vpack.c.bf16 %v345, %v345
      %vm347 = vcmask 60416
      %348 = vst.msk [vmem:[%s271] sm:$0xf] %vm347, %v346
      %v350 = vunpack.c.l.b16 %v273
      %v351 = vpack.c.b16 %v350, %v350
      %352 = vrot.lane.b32.xlu0 %v351, 120
      %v353 = vpop.permute.xlu0 %352
      %v355 = vunpack.c.l.b16 %v274
      %v356 = vpack.c.b16 %v355, %v355
      %357 = vrot.lane.b32.xlu0 %v356, 120
      %v358 = vpop.permute.xlu0 %357
      %v360 = vsel %vm292, %v353, 0
      %v363 = vsel %vm292, %v358, 0
      %365 = vmatpush.bf16.xpose.msra.mxu0 0
      %366 = vmatpush.bf16.xpose.msra.mxu0 0
      %367 = vmatpush.bf16.xpose.msra.mxu0 0
      %368 = vmatpush.bf16.xpose.msra.mxu0 0
      %369 = vmatpush.bf16.xpose.msra.mxu0 0
      %370 = vmatpush.bf16.xpose.msra.mxu0 0
      %371 = vmatpush.bf16.xpose.msra.mxu0 0
      %372 = vmatpush.bf16.xpose.msra.mxu0 %v363
      %373 = vmatmul.bf16.gmra.mxu0 %v360
      %v374 = vpop.f32.mrf.mxu0
      %v375 = vadd.f32 0.0, %v374
      %v376 = vpop.f32.mrf.mxu0
      %377 = vdwg.mxu0
      %v378 = vmul.f32 %v375, 0.35355338
      %v379 = vadd.f32 %v378, %v291
      %v380 = vsel %vm292, %v379, -inf
      %381 = vmax.xlane.f32.xlu0 %v380
      %v382 = vpop.xlane.xlu0 %381
      %v383 = vsub.f32 %v379, %v382
      %v384 = vmul.f32 %v383, 1.442695
      %v385 = vpow.pop %v384
      %v386 = vsel %vm292, %v385, 0.0
      %387 = vadd.xlane.f32.xlu0 %v386
      %v388 = vpop.xlane.xlu0 %387
      %v389 = vpack.c.bf16 %v385, %v385
      %v391 = vunpack.c.l.b16 %v275
      %v392 = vpack.c.b16 %v391, %v391
      %393 = vrot.lane.b32.xlu0 %v392, 120
      %v394 = vpop.permute.xlu0 %393
      %v396 = vsel %vm292, %v389, 0
      %v399 = vsel %vm327, %v394, 0
      %401 = vmatpush.bf16.msra.mxu0 0
      %402 = vmatpush.bf16.msra.mxu0 0
      %403 = vmatpush.bf16.msra.mxu0 0
      %404 = vmatpush.bf16.msra.mxu0 0
      %405 = vmatpush.bf16.msra.mxu0 0
      %406 = vmatpush.bf16.msra.mxu0 0
      %407 = vmatpush.bf16.msra.mxu0 0
      %408 = vmatpush.bf16.msra.mxu0 %v399
      %409 = vmatmul.bf16.gmra.mxu0 %v396
      %v410 = vpop.f32.mrf.mxu0
      %v411 = vadd.f32 0.0, %v410
      %v412 = vpop.f32.mrf.mxu0
      %413 = vdwg.mxu0
      %v414 = vrcp.pop %v388
      %v415 = vmul.f32 %v411, %v414
      %v416 = vpack.c.bf16 %v415, %v415
      %418 = vrot.lane.b32.xlu0 %v416, 8
      %v419 = vpop.permute.xlu0 %418
      %vm421 = vcmask 126016
      %422 = vst.msk [vmem:[%s271] sm:$0xf] %vm421, %v419
      %423 = vrot.lane.b32.xlu0 %v351, 112
      %v424 = vpop.permute.xlu0 %423
      %425 = vrot.lane.b32.xlu0 %v356, 112
      %v426 = vpop.permute.xlu0 %425
      %v428 = vsel %vm292, %v424, 0
      %v431 = vsel %vm292, %v426, 0
      %433 = vmatpush.bf16.xpose.msra.mxu0 0
      %434 = vmatpush.bf16.xpose.msra.mxu0 0
      %435 = vmatpush.bf16.xpose.msra.mxu0 0
      %436 = vmatpush.bf16.xpose.msra.mxu0 0
      %437 = vmatpush.bf16.xpose.msra.mxu0 0
      %438 = vmatpush.bf16.xpose.msra.mxu0 0
      %439 = vmatpush.bf16.xpose.msra.mxu0 0
      %440 = vmatpush.bf16.xpose.msra.mxu0 %v431
      %441 = vmatmul.bf16.gmra.mxu0 %v428
      %v442 = vpop.f32.mrf.mxu0
      %v443 = vadd.f32 0.0, %v442
      %v444 = vpop.f32.mrf.mxu0
      %445 = vdwg.mxu0
      %v446 = vmul.f32 %v443, 0.35355338
      %v447 = vadd.f32 %v446, %v291
      %v448 = vsel %vm292, %v447, -inf
      %449 = vmax.xlane.f32.xlu0 %v448
      %v450 = vpop.xlane.xlu0 %449
      %v451 = vsub.f32 %v447, %v450
      %v452 = vmul.f32 %v451, 1.442695
      %v453 = vpow.pop %v452
      %v454 = vsel %vm292, %v453, 0.0
      %455 = vadd.xlane.f32.xlu0 %v454
      %v456 = vpop.xlane.xlu0 %455
      %v457 = vpack.c.bf16 %v453, %v453
      %458 = vrot.lane.b32.xlu0 %v392, 112
      %v459 = vpop.permute.xlu0 %458
      %v461 = vsel %vm292, %v457, 0
      %v464 = vsel %vm327, %v459, 0
      %466 = vmatpush.bf16.msra.mxu0 0
      %467 = vmatpush.bf16.msra.mxu0 0
      %468 = vmatpush.bf16.msra.mxu0 0
      %469 = vmatpush.bf16.msra.mxu0 0
      %470 = vmatpush.bf16.msra.mxu0 0
      %471 = vmatpush.bf16.msra.mxu0 0
      %472 = vmatpush.bf16.msra.mxu0 0
      %473 = vmatpush.bf16.msra.mxu0 %v464
      %474 = vmatmul.bf16.gmra.mxu0 %v461
      %v475 = vpop.f32.mrf.mxu0
      %v476 = vadd.f32 0.0, %v475
      %v477 = vpop.f32.mrf.mxu0
      %478 = vdwg.mxu0
      %v479 = vrcp.pop %v456
      %v480 = vmul.f32 %v476, %v479
      %v481 = vpack.c.bf16 %v480, %v480
      %483 = vrot.lane.b32.xlu0 %v481, 16
      %v484 = vpop.permute.xlu0 %483
      %vm486 = vcmask 191616
      %487 = vst.msk [vmem:[%s271] sm:$0xf] %vm486, %v484
      %488 = vrot.lane.b32.xlu0 %v351, 104
      %v489 = vpop.permute.xlu0 %488
      %490 = vrot.lane.b32.xlu0 %v356, 104
      %v491 = vpop.permute.xlu0 %490
      %v493 = vsel %vm292, %v489, 0
      %v496 = vsel %vm292, %v491, 0
      %498 = vmatpush.bf16.xpose.msra.mxu0 0
      %499 = vmatpush.bf16.xpose.msra.mxu0 0
      %500 = vmatpush.bf16.xpose.msra.mxu0 0
      %501 = vmatpush.bf16.xpose.msra.mxu0 0
      %502 = vmatpush.bf16.xpose.msra.mxu0 0
      %503 = vmatpush.bf16.xpose.msra.mxu0 0
      %504 = vmatpush.bf16.xpose.msra.mxu0 0
      %505 = vmatpush.bf16.xpose.msra.mxu0 %v496
      %506 = vmatmul.bf16.gmra.mxu0 %v493
      %v507 = vpop.f32.mrf.mxu0
      %v508 = vadd.f32 0.0, %v507
      %v509 = vpop.f32.mrf.mxu0
      %510 = vdwg.mxu0
      %v511 = vmul.f32 %v508, 0.35355338
      %v512 = vadd.f32 %v511, %v291
      %v513 = vsel %vm292, %v512, -inf
      %514 = vmax.xlane.f32.xlu0 %v513
      %v515 = vpop.xlane.xlu0 %514
      %v516 = vsub.f32 %v512, %v515
      %v517 = vmul.f32 %v516, 1.442695
      %v518 = vpow.pop %v517
      %v519 = vsel %vm292, %v518, 0.0
      %520 = vadd.xlane.f32.xlu0 %v519
      %v521 = vpop.xlane.xlu0 %520
      %v522 = vpack.c.bf16 %v518, %v518
      %523 = vrot.lane.b32.xlu0 %v392, 104
      %v524 = vpop.permute.xlu0 %523
      %v526 = vsel %vm292, %v522, 0
      %v529 = vsel %vm327, %v524, 0
      %531 = vmatpush.bf16.msra.mxu0 0
      %532 = vmatpush.bf16.msra.mxu0 0
      %533 = vmatpush.bf16.msra.mxu0 0
      %534 = vmatpush.bf16.msra.mxu0 0
      %535 = vmatpush.bf16.msra.mxu0 0
      %536 = vmatpush.bf16.msra.mxu0 0
      %537 = vmatpush.bf16.msra.mxu0 0
      %538 = vmatpush.bf16.msra.mxu0 %v529
      %539 = vmatmul.bf16.gmra.mxu0 %v526
      %v540 = vpop.f32.mrf.mxu0
      %v541 = vadd.f32 0.0, %v540
      %v542 = vpop.f32.mrf.mxu0
      %543 = vdwg.mxu0
      %v544 = vrcp.pop %v521
      %v545 = vmul.f32 %v541, %v544
      %v546 = vpack.c.bf16 %v545, %v545
      %548 = vrot.lane.b32.xlu0 %v546, 24
      %v549 = vpop.permute.xlu0 %548
      %vm551 = vcmask 257216
      %552 = vst.msk [vmem:[%s271] sm:$0xf] %vm551, %v549
      %p553 = scmp.lt.s32.totalorder %s19, 1
      %s554 = scalar_select %p553, %s19, 1
      %p555 = scmp.lt.s32.totalorder %s20, 0
      %s556 = scalar_select %p555, %s20, 0
      %s557 = sadd.s32 %s556, %s554
      %s558 = smul.addr %s557, 4
      %s559 = scalar_lea.vmem %s4, %s558
      // Predicated region
      $region37: #{seq2seq_forward.18} parent=35 // pred_check
        %p560 = pneg %p153
      $region38: #{seq2seq_forward.18} parent=35 // pred_check_branch
        %562 = sbr.rel (%p560) target = $region40
      $region39: #{seq2seq_forward.18} parent=35 // pred_region
        _
      $region40: #{seq2seq_forward.18} parent=35 // pred_fallthru
        _
    $region36: #{seq2seq_forward.18} parent=5 // pred_fallthru
      _
    %p563 = scmp.le.s32.totalorder 2, %s10
    // Predicated region
    $region41: #{seq2seq_forward.18} parent=5 // pred_check
      %p564 = pneg %p563
    $region42: #{seq2seq_forward.18} parent=5 // pred_check_branch
      %566 = sbr.rel (%p564) target = $region44
    $region43: #{seq2seq_forward.18} parent=5 // pred_region
      %s567 = ssub.s32 %s10, 2
      // Predicated region
      $region45: #{seq2seq_forward.18} parent=43 // pred_check
        %p568 = pneg %p159
      $region46: #{seq2seq_forward.18} parent=43 // pred_check_branch
        %570 = sbr.rel (%p568) target = $region48
      $region47: #{seq2seq_forward.18} parent=43 // pred_region
        %p571 = scmp.lt.s32.totalorder %s21, 1
        %s572 = scalar_select %p571, %s21, 1
        %p573 = scmp.lt.s32.totalorder %s22, 0
        %s574 = scalar_select %p573, %s22, 0
        %s575 = sadd.s32 %s574, %s572
        %s576 = smul.addr %s575, 4
        %s577 = scalar_lea.vmem %s4, %s576
      $region48: #{seq2seq_forward.18} parent=43 // pred_fallthru
        _
    $region44: #{seq2seq_forward.18} parent=5 // pred_fallthru
      _
  $region6: #{seq2seq_forward.18} parent=0 // loop_footer
    %s14 = sadd.s32 1, %s10
  $region7: #{seq2seq_forward.18} parent=0 // loop_footer_branch
    %9 = sbr.rel target = $region3
  $region8: #{seq2seq_forward.18} parent=0 // loop_exit
    _

// kernel: seq2seq_forward.25
$region0: #{seq2seq_forward.25}
  #allocation0 [shape = 'u32[]', space=smem, size = 0x4, offset = 0x4, fixed_abs, tag = 'smem constant byte address 0x4 - core index']
  #allocation1 [shape = 'u32[72,128]{1,0:T(1,128)}', space=vmem, size = 0x9000, scoped, tag = 'internal scratch']
  #allocation2 [shape = 'f32[16,32]{1,0:T(8,128)}', space=vmem, size = 0x2000, scoped, tag = 'scratch operand']
  %s0 = inlined_call_operand.vmem [shape: bf16[16,64], index: 0, kind: input, shape index: {}]
  %s1 = inlined_call_operand.vmem [shape: bf16[64,32], index: 1, kind: input, shape index: {}]
  %s2 = inlined_call_operand.vmem [shape: f32[1,32], index: 2, kind: input, shape index: {}]
  %s3 = inlined_call_operand.vmem [shape: bf16[16,32], index: 3, kind: input, shape index: {}]
  %s4 = inlined_call_operand.vmem [shape: f32[1,32], index: 4, kind: input, shape index: {}]
  %s5 = inlined_call_operand.vmem [shape: f32[1,32], index: 5, kind: input, shape index: {}]
  %s6 = inlined_call_operand.vmem [shape: bf16[16,32], index: 6, kind: output, shape index: {}]
  %s7 = sld [smem:[#allocation0]]
  $region42: #{seq2seq_forward.25} parent=0
    _
  %s9 = ssub.s32 1, %s7
  %s10 = scalar_select 0, %s9, %s7
  // Predicated region
  $region2: #{seq2seq_forward.25} parent=0 // pred_check
    _
  $region3: #{seq2seq_forward.25} parent=0 // pred_check_branch
    %12 = sbr.rel (0) target = $region5
  $region4: #{seq2seq_forward.25} parent=0 // pred_region
    _
  $region5: #{seq2seq_forward.25} parent=0 // pred_fallthru
    _
  // Predicated region
  $region6: #{seq2seq_forward.25} parent=0 // pred_check
    _
  $region7: #{seq2seq_forward.25} parent=0 // pred_check_branch
    %14 = sbr.rel (0) target = $region9
  $region8: #{seq2seq_forward.25} parent=0 // pred_region
    _
  $region9: #{seq2seq_forward.25} parent=0 // pred_fallthru
    _
  // Predicated region
  $region10: #{seq2seq_forward.25} parent=0 // pred_check
    _
  $region11: #{seq2seq_forward.25} parent=0 // pred_check_branch
    %16 = sbr.rel (0) target = $region13
  $region12: #{seq2seq_forward.25} parent=0 // pred_region
    _
  $region13: #{seq2seq_forward.25} parent=0 // pred_fallthru
    _
  // Predicated region
  $region14: #{seq2seq_forward.25} parent=0 // pred_check
    _
  $region15: #{seq2seq_forward.25} parent=0 // pred_check_branch
    %18 = sbr.rel (0) target = $region17
  $region16: #{seq2seq_forward.25} parent=0 // pred_region
    _
  $region17: #{seq2seq_forward.25} parent=0 // pred_fallthru
    _
  // Predicated region
  $region18: #{seq2seq_forward.25} parent=0 // pred_check
    _
  $region19: #{seq2seq_forward.25} parent=0 // pred_check_branch
    %20 = sbr.rel (0) target = $region21
  $region20: #{seq2seq_forward.25} parent=0 // pred_region
    _
  $region21: #{seq2seq_forward.25} parent=0 // pred_fallthru
    _
  // Predicated region
  $region22: #{seq2seq_forward.25} parent=0 // pred_check
    _
  $region23: #{seq2seq_forward.25} parent=0 // pred_check_branch
    %22 = sbr.rel (0) target = $region25
  $region24: #{seq2seq_forward.25} parent=0 // pred_region
    _
  $region25: #{seq2seq_forward.25} parent=0 // pred_fallthru
    _
  %p24 = scmp.eq.s32.totalorder 0, 0
  // Predicated region
  $region26: #{seq2seq_forward.25} parent=0 // pred_check
    %p25 = pneg %p24
  $region27: #{seq2seq_forward.25} parent=0 // pred_check_branch
    %27 = sbr.rel (%p25) target = $region29
  $region28: #{seq2seq_forward.25} parent=0 // pred_region
    %vm28 = vcmask 261120
    %29 = vst.msk [vmem:[#allocation2] sm:$0xff] %vm28, 0.0
    %30 = vst.msk [vmem:[#allocation2 + $0x8] sm:$0xff] %vm28, 0.0
  $region29: #{seq2seq_forward.25} parent=0 // pred_fallthru
    _
  %v31 = vld [vmem:[#allocation2] sm:$0xff]
  %v32 = vld [vmem:[#allocation2 + $0x8] sm:$0xff]
  %v33 = vld [vmem:[%s0] sm:$0xf]
  %v34 = vld [vmem:[%s0 + $0x4] sm:$0xf]
  %v35 = vld [vmem:[%s1] sm:$0xf]
  %v36 = vld [vmem:[%s1 + $0x4] sm:$0xf]
  %v37 = vld [vmem:[%s1 + $0x8] sm:$0xf]
  %v38 = vld [vmem:[%s1 + $0xc] sm:$0xf]
  %v39 = vld [vmem:[%s1 + $0x10] sm:$0xf]
  %v40 = vld [vmem:[%s1 + $0x14] sm:$0xf]
  %v41 = vld [vmem:[%s1 + $0x18] sm:$0xf]
  %v42 = vld [vmem:[%s1 + $0x1c] sm:$0xf]
  %v45 = vunpack.c.l.b16 %v33
  %v46 = vunpack.c.l.b16 %v34
  %v47 = vpack.c.b16 %v46, %v45
  %v56 = vunpack.c.l.b16 %v35
  %v57 = vunpack.c.l.b16 %v36
  %v58 = vunpack.c.l.b16 %v37
  %v59 = vunpack.c.l.b16 %v38
  %v60 = vunpack.c.l.b16 %v39
  %v61 = vunpack.c.l.b16 %v40
  %v62 = vunpack.c.l.b16 %v41
  %v63 = vunpack.c.l.b16 %v42
  %v64 = vpack.c.b16 %v57, %v56
  %v65 = vpack.c.b16 %v59, %v58
  %v66 = vpack.c.b16 %v61, %v60
  %v67 = vpack.c.b16 %v63, %v62
  %vm72 = vcmask 523264
  %v74 = vsel %vm72, %v47, 0
  %76 = vmatpush.bf16.msra.mxu0 0
  %77 = vmatpush.bf16.msra.mxu0 0
  %78 = vmatpush.bf16.msra.mxu0 0
  %79 = vmatpush.bf16.msra.mxu0 0
  %80 = vmatpush.bf16.msra.mxu0 %v67
  %81 = vmatpush.bf16.msra.mxu0 %v66
  %82 = vmatpush.bf16.msra.mxu0 %v65
  %83 = vmatpush.bf16.msra.mxu0 %v64
  %84 = vmatmul.bf16.gmra.mxu0 %v74
  %v85 = vpop.f32.mrf.mxu0
  %v86 = vadd.f32 0.0, %v85
  %v87 = vpop.f32.mrf.mxu0
  %v88 = vadd.f32 0.0, %v87
  %89 = vdwg.mxu0
  %v90 = vadd.f32 %v31, %v86
  %v91 = vadd.f32 %v32, %v88
  %vm92 = vcmask 261120
  %93 = vst.msk [vmem:[#allocation2] sm:$0xff] %vm92, %v90
  %94 = vst.msk [vmem:[#allocation2 + $0x8] sm:$0xff] %vm92, %v91
  // Predicated region
  $region30: #{seq2seq_forward.25} parent=0 // pred_check
    %p95 = pneg %p24
  $region31: #{seq2seq_forward.25} parent=0 // pred_check_branch
    %97 = sbr.rel (%p95) target = $region33
  $region32: #{seq2seq_forward.25} parent=0 // pred_region
    %v98 = vld [vmem:[#allocation2] sm:$0xff]
    %v99 = vld [vmem:[#allocation2 + $0x8] sm:$0xff]
    %v100 = vld [vmem:[%s2] sm:$0x1]
    %v102 = vperm.slane %v100, 0
    %v104 = vadd.f32 %v98, %v102
    %v105 = vadd.f32 %v99, %v102
    %v106 = vld [vmem:[%s3] sm:$0xf]
    %v107 = vld [vmem:[%s3 + $0x4] sm:$0xf]
    %v108 = vunpack.c.l.bf16 %v106
    %v109 = vunpack.c.l.bf16 %v107
    %v110 = vadd.f32 %v104, %v108
    %v111 = vadd.f32 %v105, %v109
    %v112 = vsel %vm92, %v110, 0.0
    %113 = vadd.xlane.f32.xlu0 %v112
    %v114 = vpop.xlane.xlu0 %113
    %v115 = vsel %vm92, %v111, 0.0
    %116 = vadd.xlane.f32.xlu0 %v115
    %v117 = vpop.xlane.xlu0 %116
    %v118 = vrcp.pop 32.0
    %v119 = vmul.f32 32.0, %v118
    %v120 = vsub.f32 1.0, %v119
    %v121 = vmul.f32 %v118, %v120
    %v122 = vadd.f32 %v118, %v121
    %vm123 = vweird.f32 %v118
    %v124 = vsel %vm123, %v118, %v122
    %v125 = vmul.f32 %v114, %v124
    %v126 = vmul.f32 %v117, %v124
    %v127 = vsub.f32 %v110, %v125
    %v128 = vsub.f32 %v111, %v126
    %v129 = vmul.f32 %v127, %v127
    %v130 = vmul.f32 %v128, %v128
    %v131 = vsel %vm92, %v129, 0.0
    %132 = vadd.xlane.f32.xlu0 %v131
    %v133 = vpop.xlane.xlu0 %132
    %v134 = vsel %vm92, %v130, 0.0
    %135 = vadd.xlane.f32.xlu0 %v134
    %v136 = vpop.xlane.xlu0 %135
    %v137 = vmul.f32 %v133, %v124
    %v138 = vmul.f32 %v136, %v124
    %v139 = vadd.f32 %v137, 1e-05
    %v140 = vadd.f32 %v138, 1e-05
    %v141 = vrsqrt.pop %v139
    %v142 = vmul.f32 %v141, %v139
    %v143 = vmul.f32 %v142, %v141
    %v144 = vmul.f32 0.5, %v143
    %v145 = vsub.f32 1.5, %v144
    %v146 = vmul.f32 %v141, %v145
    %vm147 = vweird.f32 %v139
    %vm148 = vweird.f32 %v141
    %vm149 = vmor %vm147, %vm148
    %v150 = vsel %vm149, %v141, %v146
    %v151 = vrsqrt.pop %v140
    %v152 = vmul.f32 %v151, %v140
    %v153 = vmul.f32 %v152, %v151
    %v154 = vmul.f32 0.5, %v153
    %v155 = vsub.f32 1.5, %v154
    %v156 = vmul.f32 %v151, %v155
    %vm157 = vweird.f32 %v140
    %vm158 = vweird.f32 %v151
    %vm159 = vmor %vm157, %vm158
    %v160 = vsel %vm159, %v151, %v156
    %v161 = vmul.f32 %v127, %v150
    %v162 = vmul.f32 %v128, %v160
    %v163 = vld [vmem:[%s4] sm:$0x1]
    %v165 = vperm.slane %v163, 0
    %v167 = vmul.f32 %v161, %v165
    %v168 = vmul.f32 %v162, %v165
    %v169 = vld [vmem:[%s5] sm:$0x1]
    %v171 = vperm.slane %v169, 0
    %v173 = vadd.f32 %v167, %v171
    %v174 = vadd.f32 %v168, %v171
    %v175 = vpack.c.bf16 %v173, %v173
    %v176 = vpack.c.bf16 %v174, %v174
    %vm177 = vcmask 257024
    %178 = vst.msk [vmem:[%s6] sm:$0xf] %vm177, %v175
    %179 = vst.msk [vmem:[%s6 + $0x4] sm:$0xf] %vm177, %v176
  $region33: #{seq2seq_forward.25} parent=0 // pred_fallthru
    _
  // Predicated region
  $region34: #{seq2seq_forward.25} parent=0 // pred_check
    _
  $region35: #{seq2seq_forward.25} parent=0 // pred_check_branch
    %181 = sbr.rel (0) target = $region37
  $region36: #{seq2seq_forward.25} parent=0 // pred_region
    _
  $region37: #{seq2seq_forward.25} parent=0 // pred_fallthru
    _
  // Predicated region
  $region38: #{seq2seq_forward.25} parent=0 // pred_check
    _
  $region39: #{seq2seq_forward.25} parent=0 // pred_check_branch
    %183 = sbr.rel (0) target = $region41
  $region40: #{seq2seq_forward.25} parent=0 // pred_region
    _
  $region41: #{seq2seq_forward.25} parent=0 // pred_fallthru
    _

// kernel: seq2seq_forward.26
$region0: #{seq2seq_forward.26}
  #allocation0 [shape = 'u32[]', space=smem, size = 0x4, offset = 0x4, fixed_abs, tag = 'smem constant byte address 0x4 - core index']
  #allocation1 [shape = 'u32[72,128]{1,0:T(1,128)}', space=vmem, size = 0x9000, scoped, tag = 'internal scratch']
  #allocation2 [shape = 'f32[16,32]{1,0:T(8,128)}', space=vmem, size = 0x2000, scoped, tag = 'scratch operand']
  %s0 = inlined_call_operand.vmem [shape: bf16[16,32], index: 0, kind: input, shape index: {}]
  %s1 = inlined_call_operand.vmem [shape: bf16[32,32], index: 1, kind: input, shape index: {}]
  %s2 = inlined_call_operand.vmem [shape: f32[1,32], index: 2, kind: input, shape index: {}]
  %s3 = inlined_call_operand.vmem [shape: bf16[16,32], index: 3, kind: output, shape index: {}]
  %s4 = sld [smem:[#allocation0]]
  $region30: #{seq2seq_forward.26} parent=0
    _
  %s6 = ssub.s32 1, %s4
  %s7 = scalar_select 0, %s6, %s4
  // Predicated region
  $region2: #{seq2seq_forward.26} parent=0 // pred_check
    _
  $region3: #{seq2seq_forward.26} parent=0 // pred_check_branch
    %9 = sbr.rel (0) target = $region5
  $region4: #{seq2seq_forward.26} parent=0 // pred_region
    _
  $region5: #{seq2seq_forward.26} parent=0 // pred_fallthru
    _
  // Predicated region
  $region6: #{seq2seq_forward.26} parent=0 // pred_check
    _
  $region7: #{seq2seq_forward.26} parent=0 // pred_check_branch
    %11 = sbr.rel (0) target = $region9
  $region8: #{seq2seq_forward.26} parent=0 // pred_region
    _
  $region9: #{seq2seq_forward.26} parent=0 // pred_fallthru
    _
  // Predicated region
  $region10: #{seq2seq_forward.26} parent=0 // pred_check
    _
  $region11: #{seq2seq_forward.26} parent=0 // pred_check_branch
    %13 = sbr.rel (0) target = $region13
  $region12: #{seq2seq_forward.26} parent=0 // pred_region
    _
  $region13: #{seq2seq_forward.26} parent=0 // pred_fallthru
    _
  %p15 = scmp.eq.s32.totalorder 0, 0
  // Predicated region
  $region14: #{seq2seq_forward.26} parent=0 // pred_check
    %p16 = pneg %p15
  $region15: #{seq2seq_forward.26} parent=0 // pred_check_branch
    %18 = sbr.rel (%p16) target = $region17
  $region16: #{seq2seq_forward.26} parent=0 // pred_region
    %vm19 = vcmask 261120
    %20 = vst.msk [vmem:[#allocation2] sm:$0xff] %vm19, 0.0
    %21 = vst.msk [vmem:[#allocation2 + $0x8] sm:$0xff] %vm19, 0.0
  $region17: #{seq2seq_forward.26} parent=0 // pred_fallthru
    _
  %v22 = vld [vmem:[#allocation2] sm:$0xff]
  %v23 = vld [vmem:[#allocation2 + $0x8] sm:$0xff]
  %v24 = vld [vmem:[%s0] sm:$0xf]
  %v25 = vld [vmem:[%s0 + $0x4] sm:$0xf]
  %v26 = vld [vmem:[%s1] sm:$0xf]
  %v27 = vld [vmem:[%s1 + $0x4] sm:$0xf]
  %v28 = vld [vmem:[%s1 + $0x8] sm:$0xf]
  %v29 = vld [vmem:[%s1 + $0xc] sm:$0xf]
  %v32 = vunpack.c.l.b16 %v24
  %v33 = vunpack.c.l.b16 %v25
  %v34 = vpack.c.b16 %v33, %v32
  %v39 = vunpack.c.l.b16 %v26
  %v40 = vunpack.c.l.b16 %v27
  %v41 = vunpack.c.l.b16 %v28
  %v42 = vunpack.c.l.b16 %v29
  %v43 = vpack.c.b16 %v40, %v39
  %v44 = vpack.c.b16 %v42, %v41
  %vm47 = vcmask 261120
  %v49 = vsel %vm47, %v34, 0
  %51 = vmatpush.bf16.msra.mxu0 0
  %52 = vmatpush.bf16.msra.mxu0 0
  %53 = vmatpush.bf16.msra.mxu0 0
  %54 = vmatpush.bf16.msra.mxu0 0
  %55 = vmatpush.bf16.msra.mxu0 0
  %56 = vmatpush.bf16.msra.mxu0 0
  %57 = vmatpush.bf16.msra.mxu0 %v44
  %58 = vmatpush.bf16.msra.mxu0 %v43
  %59 = vmatmul.bf16.gmra.mxu0 %v49
  %v60 = vpop.f32.mrf.mxu0
  %v61 = vadd.f32 0.0, %v60
  %v62 = vpop.f32.mrf.mxu0
  %v63 = vadd.f32 0.0, %v62
  %64 = vdwg.mxu0
  %v65 = vadd.f32 %v22, %v61
  %v66 = vadd.f32 %v23, %v63
  %67 = vst.msk [vmem:[#allocation2] sm:$0xff] %vm47, %v65
  %68 = vst.msk [vmem:[#allocation2 + $0x8] sm:$0xff] %vm47, %v66
  // Predicated region
  $region18: #{seq2seq_forward.26} parent=0 // pred_check
    %p69 = pneg %p15
  $region19: #{seq2seq_forward.26} parent=0 // pred_check_branch
    %71 = sbr.rel (%p69) target = $region21
  $region20: #{seq2seq_forward.26} parent=0 // pred_region
    %v72 = vld [vmem:[#allocation2] sm:$0xff]
    %v73 = vld [vmem:[#allocation2 + $0x8] sm:$0xff]
    %v74 = vld [vmem:[%s2] sm:$0x1]
    %v76 = vperm.slane %v74, 0
    %v78 = vadd.f32 %v72, %v76
    %v79 = vadd.f32 %v73, %v76
    %v80 = vtanh.pop %v78
    %v81 = vtanh.pop %v79
    %v82 = vpack.c.bf16 %v80, %v80
    %v83 = vpack.c.bf16 %v81, %v81
    %vm84 = vcmask 257024
    %85 = vst.msk [vmem:[%s3] sm:$0xf] %vm84, %v82
    %86 = vst.msk [vmem:[%s3 + $0x4] sm:$0xf] %vm84, %v83
  $region21: #{seq2seq_forward.26} parent=0 // pred_fallthru
    _
  // Predicated region
  $region22: #{seq2seq_forward.26} parent=0 // pred_check
    _
  $region23: #{seq2seq_forward.26} parent=0 // pred_check_branch
    %88 = sbr.rel (0) target = $region25
  $region24: #{seq2seq_forward.26} parent=0 // pred_region
    _
  $region25: #{seq2seq_forward.26} parent=0 // pred_fallthru
    _
  // Predicated region
  $region26: #{seq2seq_forward.26} parent=0 // pred_check
    _
  $region27: #{seq2seq_forward.26} parent=0 // pred_check_branch
    %90 = sbr.rel (0) target = $region29
  $region28: #{seq2seq_forward.26} parent=0 // pred_region
    _
  $region29: #{seq2seq_forward.26} parent=0 // pred_fallthru
    _

// kernel: seq2seq_forward.27
$region0: #{seq2seq_forward.27}
  #allocation0 [shape = 'u32[]', space=smem, size = 0x4, offset = 0x4, fixed_abs, tag = 'smem constant byte address 0x4 - core index']
  #allocation1 [shape = 'u32[72,128]{1,0:T(1,128)}', space=vmem, size = 0x9000, scoped, tag = 'internal scratch']
  #allocation2 [shape = 'f32[14,1]{1,0:T(8,128)}', space=vmem, size = 0x2000, scoped, tag = 'scratch operand']
  #allocation3 [shape = 'f32[14,1]{1,0:T(8,128)}', space=vmem, size = 0x2000, scoped, tag = 'scratch operand']
  #allocation4 [shape = 'f32[14,1]{1,0:T(8,128)}', space=vmem, size = 0x2000, scoped, tag = 'scratch operand']
  %s0 = inlined_call_operand.vmem [shape: bf16[14,32], index: 0, kind: input, shape index: {}]
  %s1 = inlined_call_operand.vmem [shape: bf16[32,128], index: 1, kind: input, shape index: {}]
  %s2 = inlined_call_operand.vmem [shape: s32[14,1], index: 2, kind: input, shape index: {}]
  %s3 = inlined_call_operand.vmem [shape: f32[14,1], index: 3, kind: output, shape index: {}]
  %s4 = sld [smem:[#allocation0]]
  $region30: #{seq2seq_forward.27} parent=0
    _
  %s6 = ssub.s32 1, %s4
  %s7 = scalar_select 0, %s6, %s4
  // Predicated region
  $region2: #{seq2seq_forward.27} parent=0 // pred_check
    _
  $region3: #{seq2seq_forward.27} parent=0 // pred_check_branch
    %9 = sbr.rel (0) target = $region5
  $region4: #{seq2seq_forward.27} parent=0 // pred_region
    _
  $region5: #{seq2seq_forward.27} parent=0 // pred_fallthru
    _
  // Predicated region
  $region6: #{seq2seq_forward.27} parent=0 // pred_check
    _
  $region7: #{seq2seq_forward.27} parent=0 // pred_check_branch
    %11 = sbr.rel (0) target = $region9
  $region8: #{seq2seq_forward.27} parent=0 // pred_region
    _
  $region9: #{seq2seq_forward.27} parent=0 // pred_fallthru
    _
  // Predicated region
  $region10: #{seq2seq_forward.27} parent=0 // pred_check
    _
  $region11: #{seq2seq_forward.27} parent=0 // pred_check_branch
    %13 = sbr.rel (0) target = $region13
  $region12: #{seq2seq_forward.27} parent=0 // pred_region
    _
  $region13: #{seq2seq_forward.27} parent=0 // pred_fallthru
    _
  %p15 = scmp.eq.s32.totalorder 0, 0
  // Predicated region
  $region14: #{seq2seq_forward.27} parent=0 // pred_check
    %p16 = pneg %p15
  $region15: #{seq2seq_forward.27} parent=0 // pred_check_branch
    %18 = sbr.rel (%p16) target = $region17
  $region16: #{seq2seq_forward.27} parent=0 // pred_region
    %vm19 = vcmask 7168
    %20 = vst.msk [vmem:[#allocation2] sm:$0xff] %vm19, -1e+30
    %vm21 = vcmask 5120
    %22 = vst.msk [vmem:[#allocation2 + $0x8] sm:$0x3f] %vm21, -1e+30
    %23 = vst.msk [vmem:[#allocation3] sm:$0xff] %vm19, 0.0
    %24 = vst.msk [vmem:[#allocation3 + $0x8] sm:$0x3f] %vm21, 0.0
    %25 = vst.msk [vmem:[#allocation4] sm:$0xff] %vm19, 0.0
    %26 = vst.msk [vmem:[#allocation4 + $0x8] sm:$0x3f] %vm21, 0.0
  $region17: #{seq2seq_forward.27} parent=0 // pred_fallthru
    _
  %v27 = vld [vmem:[%s0] sm:$0xf]
  %v28 = vld [vmem:[%s0 + $0x4] sm:$0x7]
  %v29 = vld [vmem:[%s1] sm:$0xf]
  %v30 = vld [vmem:[%s1 + $0x4] sm:$0xf]
  %v31 = vld [vmem:[%s1 + $0x8] sm:$0xf]
  %v32 = vld [vmem:[%s1 + $0xc] sm:$0xf]
  %v35 = vunpack.c.l.b16 %v27
  %v36 = vunpack.c.l.b16 %v28
  %v37 = vpack.c.b16 %v36, %v35
  %v42 = vunpack.c.l.b16 %v29
  %v43 = vunpack.c.l.b16 %v30
  %v44 = vunpack.c.l.b16 %v31
  %v45 = vunpack.c.l.b16 %v32
  %v46 = vpack.c.b16 %v43, %v42
  %v47 = vpack.c.b16 %v45, %v44
  %vm50 = vcmask 261120
  %v52 = vsel %vm50, %v37, 0
  %54 = vmatpush.bf16.msra.mxu0 0
  %55 = vmatpush.bf16.msra.mxu0 0
  %56 = vmatpush.bf16.msra.mxu0 0
  %57 = vmatpush.bf16.msra.mxu0 0
  %58 = vmatpush.bf16.msra.mxu0 0
  %59 = vmatpush.bf16.msra.mxu0 0
  %60 = vmatpush.bf16.msra.mxu0 %v47
  %61 = vmatpush.bf16.msra.mxu0 %v46
  %62 = vmatmul.bf16.gmra.mxu0 %v52
  %v63 = vpop.f32.mrf.mxu0
  %v64 = vadd.f32 0.0, %v63
  %v65 = vpop.f32.mrf.mxu0
  %v66 = vadd.f32 0.0, %v65
  %67 = vdwg.mxu0
  %v68 = vlaneseq
  %v69 = vand.u32 %v68, 127
  %s70 = smul.u32 0, 128
  %v71 = vstv %s70
  %v72 = vadd.s32 %v69, %v71
  %vm73 = vcmp.lt.s32.totalorder %v72, 128
  %v74 = vsel %vm73, %v64, -1e+30
  %v75 = vsel %vm73, %v66, -1e+30
  %v76 = vld [vmem:[%s2] sm:$0xff]
  %v77 = vld [vmem:[%s2 + $0x8] sm:$0x3f]
  %v78 = vld [vmem:[#allocation4] sm:$0xff]
  %v79 = vld [vmem:[#allocation4 + $0x8] sm:$0x3f]
  %80 = vset.pattern.permute.xlu0 0
  %81 = vperm.xlu0 %80, %v76
  %v82 = vpop.permute.xlu0 %81
  %83 = vset.pattern.permute.xlu0 0
  %84 = vperm.xlu0 %83, %v77
  %v85 = vpop.permute.xlu0 %84
  %vm86 = vcmp.eq.s32.totalorder %v72, %v82
  %vm87 = vcmp.eq.s32.totalorder %v72, %v85
  %v88 = vsel %vm86, %v74, 0.0
  %v89 = vsel %vm87, %v75, 0.0
  %90 = vadd.xlane.f32.xlu0 %v88
  %v91 = vpop.xlane.xlu0 %90
  %vm92 = vcmask 1045504
  %v93 = vsel %vm92, %v89, 0.0
  %94 = vadd.xlane.f32.xlu0 %v93
  %v95 = vpop.xlane.xlu0 %94
  %v96 = vadd.f32 %v78, %v91
  %v97 = vadd.f32 %v79, %v95
  %vm98 = vcmask 7168
  %99 = vst.msk [vmem:[#allocation4] sm:$0xff] %vm98, %v96
  %vm100 = vcmask 5120
  %101 = vst.msk [vmem:[#allocation4 + $0x8] sm:$0x3f] %vm100, %v97
  %v102 = vld [vmem:[#allocation2] sm:$0xff]
  %v103 = vld [vmem:[#allocation2 + $0x8] sm:$0x3f]
  %104 = vmax.xlane.f32.xlu0 %v74
  %v105 = vpop.xlane.xlu0 %104
  %v106 = vsel %vm92, %v75, -inf
  %107 = vmax.xlane.f32.xlu0 %v106
  %v108 = vpop.xlane.xlu0 %107
  %v109 = vmax.f32 %v102, %v105
  %v110 = vmax.f32 %v103, %v108
  %v111 = vld [vmem:[#allocation3] sm:$0xff]
  %v112 = vld [vmem:[#allocation3 + $0x8] sm:$0x3f]
  %v113 = vsub.f32 %v102, %v109
  %v114 = vsub.f32 %v103, %v110
  %v115 = vmul.f32 %v113, 1.442695
  %v116 = vpow.pop %v115
  %v117 = vmul.f32 %v114, 1.442695
  %v118 = vpow.pop %v117
  %v119 = vmul.f32 %v111, %v116
  %v120 = vmul.f32 %v112, %v118
  %122 = vset.pattern.permute.xlu0 0
  %123 = vperm.xlu0 %122, %v109
  %v124 = vpop.permute.xlu0 %123
  %127 = vset.pattern.permute.xlu0 0
  %128 = vperm.xlu0 %127, %v110
  %v129 = vpop.permute.xlu0 %128
  %v131 = vsub.f32 %v74, %v124
  %v132 = vsub.f32 %v75, %v129
  %v133 = vmul.f32 %v131, 1.442695
  %v134 = vpow.pop %v133
  %v135 = vmul.f32 %v132, 1.442695
  %v136 = vpow.pop %v135
  %137 = vadd.xlane.f32.xlu0 %v134
  %v138 = vpop.xlane.xlu0 %137
  %v139 = vsel %vm92, %v136, 0.0
  %140 = vadd.xlane.f32.xlu0 %v139
  %v141 = vpop.xlane.xlu0 %140
  %v142 = vadd.f32 %v119, %v138
  %v143 = vadd.f32 %v120, %v141
  %144 = vst.msk [vmem:[#allocation3] sm:$0xff] %vm98, %v142
  %145 = vst.msk [vmem:[#allocation3 + $0x8] sm:$0x3f] %vm100, %v143
  %146 = vst.msk [vmem:[#allocation2] sm:$0xff] %vm98, %v109
  %147 = vst.msk [vmem:[#allocation2 + $0x8] sm:$0x3f] %vm100, %v110
  // Predicated region
  $region18: #{seq2seq_forward.27} parent=0 // pred_check
    %p148 = pneg %p15
  $region19: #{seq2seq_forward.27} parent=0 // pred_check_branch
    %150 = sbr.rel (%p148) target = $region21
  $region20: #{seq2seq_forward.27} parent=0 // pred_region
    %v151 = vld [vmem:[#allocation2] sm:$0xff]
    %v152 = vld [vmem:[#allocation2 + $0x8] sm:$0x3f]
    %v153 = vld [vmem:[#allocation3] sm:$0xff]
    %v154 = vld [vmem:[#allocation3 + $0x8] sm:$0x3f]
    %v155 = vlog2.pop %v153
    %v156 = vmul.f32 %v155, 0.6931472
    %v157 = vlog2.pop %v154
    %v158 = vmul.f32 %v157, 0.6931472
    %v159 = vadd.f32 %v151, %v156
    %v160 = vadd.f32 %v152, %v158
    %v161 = vld [vmem:[#allocation4] sm:$0xff]
    %v162 = vld [vmem:[#allocation4 + $0x8] sm:$0x3f]
    %v163 = vsub.f32 %v159, %v161
    %v164 = vsub.f32 %v160, %v162
    %165 = vst.msk [vmem:[%s3] sm:$0xff] %vm98, %v163
    %166 = vst.msk [vmem:[%s3 + $0x8] sm:$0x3f] %vm100, %v164
  $region21: #{seq2seq_forward.27} parent=0 // pred_fallthru
    _
  // Predicated region
  $region22: #{seq2seq_forward.27} parent=0 // pred_check
    _
  $region23: #{seq2seq_forward.27} parent=0 // pred_check_branch
    %168 = sbr.rel (0) target = $region25
  $region24: #{seq2seq_forward.27} parent=0 // pred_region
    _
  $region25: #{seq2seq_forward.27} parent=0 // pred_fallthru
    _
  // Predicated region
  $region26: #{seq2seq_forward.27} parent=0 // pred_check
    _
  $region27: #{seq2seq_forward.27} parent=0 // pred_check_branch
    %170 = sbr.rel (0) target = $region29
  $region28: #{seq2seq_forward.27} parent=0 // pred_region
    _
  $region29: #{seq2seq_forward.27} parent=0 // pred_fallthru
    _

</llo_original>
